<compile_context>
chip_gen: v6e
topology: v6e:2x2x1
jax: 0.10.0
libtpu: 0.0.40
codegen_flags: <defaults>
</compile_context>

<pallas_src>
import numpy as np
import jax
import jax.numpy as jnp
from jax import lax
from jax.experimental import pallas as pl
from jax.experimental.pallas import tpu as pltpu


# --------------------- host-side precompute (weights as GEMMs) ---------------------
def _toeplitz_conv_weights(w, b, W):
    """w: (3,3,Cin,Cout) HWIO, b: (Cout,), W = input width.

    Returns T: (3, W*Cin, (W-2)*Cout) with
        T[dy, (u+dx)*Cin + ci, u*Cout + co] = w[dy, dx, ci, co]
    and a bias row of shape (1, (W-2)*Cout), so that a VALID 3x3 conv on a (H, W*Cin)
    slab is   out = sum_dy  X[dy:dy+Ho, :] @ T[dy]  + bias.
    """
    w_np = np.asarray(w, np.float32)
    Cin, Cout = int(w_np.shape[2]), int(w_np.shape[3])
    Wo = W - 2
    T = np.zeros((3, W * Cin, Wo * Cout), np.float32)
    for dy in range(3):
        for dx in range(3):
            for u in range(Wo):
                T[dy, (u + dx) * Cin:(u + dx + 1) * Cin,
                  u * Cout:(u + 1) * Cout] = w_np[dy, dx]
    bias = np.tile(np.asarray(b, np.float32), Wo).reshape(1, Wo * Cout)
    return jnp.asarray(T), jnp.asarray(bias)


def _pool_selectors(H, W, C):
    """0/1 selection matrices for a 2x2/stride-2 max-pool on a (H, W*C) slab."""
    Hp, Wp = H // 2, W // 2
    sre = np.zeros((Hp, H), np.float32)
    sro = np.zeros((Hp, H), np.float32)
    sre[np.arange(Hp), 2 * np.arange(Hp)] = 1.0
    sro[np.arange(Hp), 2 * np.arange(Hp) + 1] = 1.0
    sce = np.zeros((W * C, Wp * C), np.float32)
    sco = np.zeros((W * C, Wp * C), np.float32)
    for j in range(Wp):
        for c in range(C):
            sce[(2 * j) * C + c, j * C + c] = 1.0
            sco[(2 * j + 1) * C + c, j * C + c] = 1.0
    return (jnp.asarray(sre), jnp.asarray(sro), jnp.asarray(sce), jnp.asarray(sco))


# ------------------------------- fused encoder kernel -------------------------------
def _make_encoder_kernel(plan):
    num_blocks = len(plan)

    def kernel(*refs):
        # ref layout: x, then per-block weights (4 or 8 refs), then outputs, then scratch.
        x_ref = refs[0]
        pos = 1
        block_refs = []
        for blk in plan:
            n = 8 if blk["pooled"] else 4
            block_refs.append(refs[pos:pos + n])
            pos += n
        out_refs = refs[pos:pos + num_blocks]
        pos += num_blocks
        scratch_refs = refs[pos:]

        def conv(src_ref, t_ref, b_ref, dst_ref, relu):
            ho = dst_ref.shape[0]
            acc = jnp.dot(src_ref[pl.ds(0, ho), :], t_ref[0],
                          preferred_element_type=jnp.float32)
            acc = acc + jnp.dot(src_ref[pl.ds(1, ho), :], t_ref[1],
                                preferred_element_type=jnp.float32)
            acc = acc + jnp.dot(src_ref[pl.ds(2, ho), :], t_ref[2],
                                preferred_element_type=jnp.float32)
            acc = acc + b_ref[...]
            if relu:
                acc = jnp.maximum(acc, 0.0)
            dst_ref[...] = acc.astype(dst_ref.dtype)

        def pool(src_ref, sre_ref, sro_ref, sce_ref, sco_ref, dst_ref):
            xv = src_ref[...]
            rows = jnp.maximum(
                jnp.dot(sre_ref[...], xv, preferred_element_type=jnp.float32),
                jnp.dot(sro_ref[...], xv, preferred_element_type=jnp.float32))
            dst_ref[...] = jnp.maximum(
                jnp.dot(rows, sce_ref[...], preferred_element_type=jnp.float32),
                jnp.dot(rows, sco_ref[...], preferred_element_type=jnp.float32),
            ).astype(dst_ref.dtype)

        cur = x_ref
        sidx = 0
        for bi, blk in enumerate(plan):
            wr = block_refs[bi]
            t1, b1, t2, b2 = wr[0], wr[1], wr[2], wr[3]
            h1 = scratch_refs[sidx]; sidx += 1
            conv(cur, t1, b1, h1, relu=True)             # conv1 + ReLU (VMEM scratch)
            conv(h1, t2, b2, out_refs[bi], relu=False)   # conv2 -> feature output
            if blk["pooled"]:
                sre, sro, sce, sco = wr[4], wr[5], wr[6], wr[7]
                pooled = scratch_refs[sidx]; sidx += 1
                pool(out_refs[bi], sre, sro, sce, sco, pooled)
                cur = pooled

    return kernel


def _build_encoder_tables(params, N, H0, W0, C0):
    plan, flat_inputs, weight_specs = [], [], []
    out_shapes, out_specs, scratch_shapes = [], [], []

    def full_spec(shape):
        zeros = (0,) * len(shape)
        return pl.BlockSpec(tuple(int(s) for s in shape), lambda n, _z=zeros: _z)

    H, W = H0, W0
    nb = len(params)
    for bi, (w1, b1, w2, b2) in enumerate(params):
        Cout = int(w1.shape[-1])
        T1, B1 = _toeplitz_conv_weights(w1, b1, W)       # conv1 on (H, W*Cin)
        H1, W1 = H - 2, W - 2
        T2, B2 = _toeplitz_conv_weights(w2, b2, W1)      # conv2 on (H1, W1*Cout)
        H2, W2 = H - 4, W - 4
        pooled = bi < nb - 1

        blk_inputs = [T1, B1, T2, B2]
        if pooled:
            blk_inputs.extend(_pool_selectors(H2, W2, Cout))
        flat_inputs.extend(blk_inputs)
        weight_specs.extend(full_spec(a.shape) for a in blk_inputs)

        out_shapes.append(jax.ShapeDtypeStruct((N, H2, W2 * Cout), jnp.float32))
        out_specs.append(pl.BlockSpec((None, H2, W2 * Cout), lambda n: (n, 0, 0)))
        scratch_shapes.append(pltpu.VMEM((H1, W1 * Cout), jnp.float32))
        plan.append({"pooled": pooled, "ftr_shape": (H2, W2, Cout)})
        if pooled:
            Hp, Wp = H2 // 2, W2 // 2
            scratch_shapes.append(pltpu.VMEM((Hp, Wp * Cout), jnp.float32))
            H, W = Hp, Wp

    return plan, flat_inputs, weight_specs, out_shapes, out_specs, scratch_shapes


def encoder_forward(x_nchw, params):
    """Pallas implementation. x_nchw: (N, C, H, W) f32. Returns list of NCHW features."""
    N, C0, H0, W0 = x_nchw.shape
    # NCHW -> channels-last slab (N, H, W*C); channels ride the 128-lane axis.
    x2 = jnp.transpose(x_nchw, (0, 2, 3, 1)).reshape(N, H0, W0 * C0)

    (plan, flat_inputs, weight_specs,
     out_shapes, out_specs, scratch_shapes) = _build_encoder_tables(params, N, H0, W0, C0)

    in_specs = [pl.BlockSpec((None, H0, W0 * C0), lambda n: (n, 0, 0))] + weight_specs

    outs = pl.pallas_call(
        _make_encoder_kernel(plan),
        out_shape=tuple(out_shapes),
        grid=(N,),
        in_specs=in_specs,
        out_specs=tuple(out_specs),
        scratch_shapes=tuple(scratch_shapes),
        compiler_params=pltpu.CompilerParams(dimension_semantics=("parallel",)),
    )(x2, *flat_inputs)

    ftrs = []
    for o, blk in zip(outs, plan):
        Ho, Wo, C = blk["ftr_shape"]
        ftrs.append(jnp.transpose(o.reshape(N, Ho, Wo, C), (0, 3, 1, 2)))  # -> NCHW
    return ftrs


# ----------------------------- params / pure-JAX reference --------------------------
def init_encoder_params(key, chs):
    params = []
    for i in range(len(chs) - 1):
        in_ch, out_ch = chs[i], chs[i + 1]
        key, k1, k2, k3, k4 = jax.random.split(key, 5)
        s1 = (in_ch * 9) ** -0.5
        s2 = (out_ch * 9) ** -0.5
        w1 = jax.random.normal(k1, (3, 3, in_ch, out_ch), jnp.float32) * s1
        b1 = jax.random.normal(k2, (out_ch,), jnp.float32) * 0.1
        w2 = jax.random.normal(k3, (3, 3, out_ch, out_ch), jnp.float32) * s2
        b2 = jax.random.normal(k4, (out_ch,), jnp.float32) * 0.1
        params.append((w1, b1, w2, b2))
    return params


def encoder_reference(x_nchw, params):
    x = x_nchw
    ftrs = []
    dn = ("NCHW", "HWIO", "NCHW")
    for idx, (w1, b1, w2, b2) in enumerate(params):
        x = lax.conv_general_dilated(x, w1, (1, 1), "VALID", dimension_numbers=dn,
                                     precision=lax.Precision.HIGHEST)
        x = jnp.maximum(x + b1[None, :, None, None], 0.0)
        x = lax.conv_general_dilated(x, w2, (1, 1), "VALID", dimension_numbers=dn,
                                     precision=lax.Precision.HIGHEST)
        x = x + b2[None, :, None, None]
        ftrs.append(x)
        if idx < len(params) - 1:
            x = lax.reduce_window(x, -jnp.inf, lax.max,
                                  (1, 1, 2, 2), (1, 1, 2, 2), "VALID")
    return ftrs


if __name__ == "__main__":
    chs = (3, 8, 16, 32)                                    # scaled-down UNet encoder
    key = jax.random.PRNGKey(0)
    k_params, k_x = jax.random.split(key)
    params = init_encoder_params(k_params, chs)
    x = jax.random.normal(k_x, (2, 3, 36, 36), jnp.float32)  # NCHW, like PyTorch

    ftrs = encoder_forward(x, params)
    for f in ftrs:
        jax.block_until_ready(f)

    refs = encoder_reference(x, params)
    assert len(ftrs) == len(refs)
    for f, r in zip(ftrs, refs):
        assert f.shape == r.shape, (f.shape, r.shape)
        max_diff = float(jnp.max(jnp.abs(f - r)))
        # 2e-2 covers the worst case where matmuls run at the MXU's default bf16-pass
        # precision; with full-f32 matmuls the observed diff is ~1e-5.
        assert max_diff < 2e-2, f"mismatch: max abs diff {max_diff}"

    print("KERNEL_OK")
</pallas_src>

<mosaic_0001>
module attributes {stable_mosaic.version = 11 : i64} {
  func.func @kernel(%arg0: i32, %arg1: memref<1x36x108xf32, #tpu.memory_space<vmem>>, %arg2: memref<3x108x272xf32, #tpu.memory_space<vmem>>, %arg3: memref<1x272xf32, #tpu.memory_space<vmem>>, %arg4: memref<3x272x256xf32, #tpu.memory_space<vmem>>, %arg5: memref<1x256xf32, #tpu.memory_space<vmem>>, %arg6: memref<16x32xf32, #tpu.memory_space<vmem>>, %arg7: memref<16x32xf32, #tpu.memory_space<vmem>>, %arg8: memref<256x128xf32, #tpu.memory_space<vmem>>, %arg9: memref<256x128xf32, #tpu.memory_space<vmem>>, %arg10: memref<3x128x224xf32, #tpu.memory_space<vmem>>, %arg11: memref<1x224xf32, #tpu.memory_space<vmem>>, %arg12: memref<3x224x192xf32, #tpu.memory_space<vmem>>, %arg13: memref<1x192xf32, #tpu.memory_space<vmem>>, %arg14: memref<6x12xf32, #tpu.memory_space<vmem>>, %arg15: memref<6x12xf32, #tpu.memory_space<vmem>>, %arg16: memref<192x96xf32, #tpu.memory_space<vmem>>, %arg17: memref<192x96xf32, #tpu.memory_space<vmem>>, %arg18: memref<3x96x128xf32, #tpu.memory_space<vmem>>, %arg19: memref<1x128xf32, #tpu.memory_space<vmem>>, %arg20: memref<3x128x64xf32, #tpu.memory_space<vmem>>, %arg21: memref<1x64xf32, #tpu.memory_space<vmem>>, %arg22: memref<1x32x256xf32, #tpu.memory_space<vmem>>, %arg23: memref<1x12x192xf32, #tpu.memory_space<vmem>>, %arg24: memref<1x2x64xf32, #tpu.memory_space<vmem>>, %arg25: memref<34x272xf32, #tpu.memory_space<vmem>>, %arg26: memref<16x128xf32, #tpu.memory_space<vmem>>, %arg27: memref<14x224xf32, #tpu.memory_space<vmem>>, %arg28: memref<6x96xf32, #tpu.memory_space<vmem>>, %arg29: memref<4x128xf32, #tpu.memory_space<vmem>>) attributes {dimension_semantics = [#tpu.dimension_semantics<parallel>], iteration_bounds = array<i64: 2>, scalar_prefetch = 0 : i64, scratch_operands = 5 : i64, tpu.core_type = #tpu.core_type<tc>, window_params = [{transform_indices = @transform_0, window_bounds = array<i64: 1, 36, 108>}, {pipeline_mode = #tpu.pipeline_mode<synchronous>, transform_indices = @transform_1, window_bounds = array<i64: 3, 108, 272>}, {pipeline_mode = #tpu.pipeline_mode<synchronous>, transform_indices = @transform_2, window_bounds = array<i64: 1, 272>}, {pipeline_mode = #tpu.pipeline_mode<synchronous>, transform_indices = @transform_3, window_bounds = array<i64: 3, 272, 256>}, {pipeline_mode = #tpu.pipeline_mode<synchronous>, transform_indices = @transform_4, window_bounds = array<i64: 1, 256>}, {pipeline_mode = #tpu.pipeline_mode<synchronous>, transform_indices = @transform_5, window_bounds = array<i64: 16, 32>}, {pipeline_mode = #tpu.pipeline_mode<synchronous>, transform_indices = @transform_6, window_bounds = array<i64: 16, 32>}, {pipeline_mode = #tpu.pipeline_mode<synchronous>, transform_indices = @transform_7, window_bounds = array<i64: 256, 128>}, {pipeline_mode = #tpu.pipeline_mode<synchronous>, transform_indices = @transform_8, window_bounds = array<i64: 256, 128>}, {pipeline_mode = #tpu.pipeline_mode<synchronous>, transform_indices = @transform_9, window_bounds = array<i64: 3, 128, 224>}, {pipeline_mode = #tpu.pipeline_mode<synchronous>, transform_indices = @transform_10, window_bounds = array<i64: 1, 224>}, {pipeline_mode = #tpu.pipeline_mode<synchronous>, transform_indices = @transform_11, window_bounds = array<i64: 3, 224, 192>}, {pipeline_mode = #tpu.pipeline_mode<synchronous>, transform_indices = @transform_12, window_bounds = array<i64: 1, 192>}, {pipeline_mode = #tpu.pipeline_mode<synchronous>, transform_indices = @transform_13, window_bounds = array<i64: 6, 12>}, {pipeline_mode = #tpu.pipeline_mode<synchronous>, transform_indices = @transform_14, window_bounds = array<i64: 6, 12>}, {pipeline_mode = #tpu.pipeline_mode<synchronous>, transform_indices = @transform_15, window_bounds = array<i64: 192, 96>}, {pipeline_mode = #tpu.pipeline_mode<synchronous>, transform_indices = @transform_16, window_bounds = array<i64: 192, 96>}, {pipeline_mode = #tpu.pipeline_mode<synchronous>, transform_indices = @transform_17, window_bounds = array<i64: 3, 96, 128>}, {pipeline_mode = #tpu.pipeline_mode<synchronous>, transform_indices = @transform_18, window_bounds = array<i64: 1, 128>}, {pipeline_mode = #tpu.pipeline_mode<synchronous>, transform_indices = @transform_19, window_bounds = array<i64: 3, 128, 64>}, {pipeline_mode = #tpu.pipeline_mode<synchronous>, transform_indices = @transform_20, window_bounds = array<i64: 1, 64>}, {transform_indices = @transform_21, window_bounds = array<i64: 1, 32, 256>}, {transform_indices = @transform_22, window_bounds = array<i64: 1, 12, 192>}, {transform_indices = @transform_23, window_bounds = array<i64: 1, 2, 64>}]} {
    %c0 = arith.constant 0 : index
    %c0_0 = arith.constant 0 : index
    %c0_1 = arith.constant 0 : index
    %0 = vector.load %arg1[%c0, %c0_0, %c0_1] : memref<1x36x108xf32, #tpu.memory_space<vmem>>, vector<1x34x108xf32>
    %1 = vector.shape_cast %0 : vector<1x34x108xf32> to vector<34x108xf32>
    %c0_2 = arith.constant 0 : index
    %c0_3 = arith.constant 0 : index
    %c0_4 = arith.constant 0 : index
    %2 = vector.load %arg2[%c0_2, %c0_3, %c0_4] : memref<3x108x272xf32, #tpu.memory_space<vmem>>, vector<1x108x272xf32>
    %3 = vector.shape_cast %2 : vector<1x108x272xf32> to vector<108x272xf32>
    %cst = arith.constant dense<0.000000e+00> : vector<34x272xf32>
    %4 = tpu.matmul %1, %3, %cst {dimension_numbers = #tpu.dot_dimension_numbers<[1], [0], [0], [1], [0, 0, 1, 1], [], []>} : vector<34x108xf32>, vector<108x272xf32>, vector<34x272xf32> -> vector<34x272xf32>
    %c0_5 = arith.constant 0 : index
    %c1 = arith.constant 1 : index
    %c0_6 = arith.constant 0 : index
    %5 = vector.load %arg1[%c0_5, %c1, %c0_6] : memref<1x36x108xf32, #tpu.memory_space<vmem>>, vector<1x34x108xf32>
    %6 = vector.shape_cast %5 : vector<1x34x108xf32> to vector<34x108xf32>
    %c1_7 = arith.constant 1 : index
    %c0_8 = arith.constant 0 : index
    %c0_9 = arith.constant 0 : index
    %7 = vector.load %arg2[%c1_7, %c0_8, %c0_9] : memref<3x108x272xf32, #tpu.memory_space<vmem>>, vector<1x108x272xf32>
    %8 = vector.shape_cast %7 : vector<1x108x272xf32> to vector<108x272xf32>
    %cst_10 = arith.constant dense<0.000000e+00> : vector<34x272xf32>
    %9 = tpu.matmul %6, %8, %cst_10 {dimension_numbers = #tpu.dot_dimension_numbers<[1], [0], [0], [1], [0, 0, 1, 1], [], []>} : vector<34x108xf32>, vector<108x272xf32>, vector<34x272xf32> -> vector<34x272xf32>
    %10 = arith.addf %4, %9 : vector<34x272xf32>
    %c0_11 = arith.constant 0 : index
    %c2 = arith.constant 2 : index
    %c0_12 = arith.constant 0 : index
    %11 = vector.load %arg1[%c0_11, %c2, %c0_12] : memref<1x36x108xf32, #tpu.memory_space<vmem>>, vector<1x34x108xf32>
    %12 = vector.shape_cast %11 : vector<1x34x108xf32> to vector<34x108xf32>
    %c2_13 = arith.constant 2 : index
    %c0_14 = arith.constant 0 : index
    %c0_15 = arith.constant 0 : index
    %13 = vector.load %arg2[%c2_13, %c0_14, %c0_15] : memref<3x108x272xf32, #tpu.memory_space<vmem>>, vector<1x108x272xf32>
    %14 = vector.shape_cast %13 : vector<1x108x272xf32> to vector<108x272xf32>
    %cst_16 = arith.constant dense<0.000000e+00> : vector<34x272xf32>
    %15 = tpu.matmul %12, %14, %cst_16 {dimension_numbers = #tpu.dot_dimension_numbers<[1], [0], [0], [1], [0, 0, 1, 1], [], []>} : vector<34x108xf32>, vector<108x272xf32>, vector<34x272xf32> -> vector<34x272xf32>
    %16 = arith.addf %10, %15 : vector<34x272xf32>
    %c0_17 = arith.constant 0 : index
    %c0_18 = arith.constant 0 : index
    %17 = vector.load %arg3[%c0_17, %c0_18] : memref<1x272xf32, #tpu.memory_space<vmem>>, vector<1x272xf32>
    %18 = vector.broadcast %17 : vector<1x272xf32> to vector<34x272xf32>
    %19 = arith.addf %16, %18 : vector<34x272xf32>
    %cst_19 = arith.constant 0.000000e+00 : f32
    %20 = vector.broadcast %cst_19 : f32 to vector<34x272xf32>
    %21 = arith.maximumf %19, %20 : vector<34x272xf32>
    %c0_20 = arith.constant 0 : index
    %c0_21 = arith.constant 0 : index
    %22 = vector.load %arg25[%c0_20, %c0_21] : memref<34x272xf32, #tpu.memory_space<vmem>>, vector<34x272xf32>
    tpu.vector_store %arg25[%c0_20, %c0_21], %21 {strides = array<i32>} : memref<34x272xf32, #tpu.memory_space<vmem>>, vector<34x272xf32>,
    %c0_22 = arith.constant 0 : index
    %c0_23 = arith.constant 0 : index
    %23 = vector.load %arg25[%c0_22, %c0_23] : memref<34x272xf32, #tpu.memory_space<vmem>>, vector<32x272xf32>
    %c0_24 = arith.constant 0 : index
    %c0_25 = arith.constant 0 : index
    %c0_26 = arith.constant 0 : index
    %24 = vector.load %arg4[%c0_24, %c0_25, %c0_26] : memref<3x272x256xf32, #tpu.memory_space<vmem>>, vector<1x272x256xf32>
    %25 = vector.shape_cast %24 : vector<1x272x256xf32> to vector<272x256xf32>
    %cst_27 = arith.constant dense<0.000000e+00> : vector<32x256xf32>
    %26 = tpu.matmul %23, %25, %cst_27 {dimension_numbers = #tpu.dot_dimension_numbers<[1], [0], [0], [1], [0, 0, 1, 1], [], []>} : vector<32x272xf32>, vector<272x256xf32>, vector<32x256xf32> -> vector<32x256xf32>
    %c1_28 = arith.constant 1 : index
    %c0_29 = arith.constant 0 : index
    %27 = vector.load %arg25[%c1_28, %c0_29] : memref<34x272xf32, #tpu.memory_space<vmem>>, vector<32x272xf32>
    %c1_30 = arith.constant 1 : index
    %c0_31 = arith.constant 0 : index
    %c0_32 = arith.constant 0 : index
    %28 = vector.load %arg4[%c1_30, %c0_31, %c0_32] : memref<3x272x256xf32, #tpu.memory_space<vmem>>, vector<1x272x256xf32>
    %29 = vector.shape_cast %28 : vector<1x272x256xf32> to vector<272x256xf32>
    %cst_33 = arith.constant dense<0.000000e+00> : vector<32x256xf32>
    %30 = tpu.matmul %27, %29, %cst_33 {dimension_numbers = #tpu.dot_dimension_numbers<[1], [0], [0], [1], [0, 0, 1, 1], [], []>} : vector<32x272xf32>, vector<272x256xf32>, vector<32x256xf32> -> vector<32x256xf32>
    %31 = arith.addf %26, %30 : vector<32x256xf32>
    %c2_34 = arith.constant 2 : index
    %c0_35 = arith.constant 0 : index
    %32 = vector.load %arg25[%c2_34, %c0_35] : memref<34x272xf32, #tpu.memory_space<vmem>>, vector<32x272xf32>
    %c2_36 = arith.constant 2 : index
    %c0_37 = arith.constant 0 : index
    %c0_38 = arith.constant 0 : index
    %33 = vector.load %arg4[%c2_36, %c0_37, %c0_38] : memref<3x272x256xf32, #tpu.memory_space<vmem>>, vector<1x272x256xf32>
    %34 = vector.shape_cast %33 : vector<1x272x256xf32> to vector<272x256xf32>
    %cst_39 = arith.constant dense<0.000000e+00> : vector<32x256xf32>
    %35 = tpu.matmul %32, %34, %cst_39 {dimension_numbers = #tpu.dot_dimension_numbers<[1], [0], [0], [1], [0, 0, 1, 1], [], []>} : vector<32x272xf32>, vector<272x256xf32>, vector<32x256xf32> -> vector<32x256xf32>
    %36 = arith.addf %31, %35 : vector<32x256xf32>
    %c0_40 = arith.constant 0 : index
    %c0_41 = arith.constant 0 : index
    %37 = vector.load %arg5[%c0_40, %c0_41] : memref<1x256xf32, #tpu.memory_space<vmem>>, vector<1x256xf32>
    %38 = vector.broadcast %37 : vector<1x256xf32> to vector<32x256xf32>
    %39 = arith.addf %36, %38 : vector<32x256xf32>
    %c0_42 = arith.constant 0 : index
    %c0_43 = arith.constant 0 : index
    %c0_44 = arith.constant 0 : index
    %40 = vector.load %arg22[%c0_42, %c0_43, %c0_44] : memref<1x32x256xf32, #tpu.memory_space<vmem>>, vector<1x32x256xf32>
    %41 = vector.shape_cast %40 : vector<1x32x256xf32> to vector<32x256xf32>
    %42 = vector.shape_cast %39 : vector<32x256xf32> to vector<1x32x256xf32>
    tpu.vector_store %arg22[%c0_42, %c0_43, %c0_44], %42 {strides = array<i32>} : memref<1x32x256xf32, #tpu.memory_space<vmem>>, vector<1x32x256xf32>,
    %c0_45 = arith.constant 0 : index
    %c0_46 = arith.constant 0 : index
    %c0_47 = arith.constant 0 : index
    %43 = vector.load %arg22[%c0_45, %c0_46, %c0_47] : memref<1x32x256xf32, #tpu.memory_space<vmem>>, vector<1x32x256xf32>
    %44 = vector.shape_cast %43 : vector<1x32x256xf32> to vector<32x256xf32>
    %c0_48 = arith.constant 0 : index
    %c0_49 = arith.constant 0 : index
    %45 = vector.load %arg6[%c0_48, %c0_49] : memref<16x32xf32, #tpu.memory_space<vmem>>, vector<16x32xf32>
    %cst_50 = arith.constant dense<0.000000e+00> : vector<16x256xf32>
    %46 = tpu.matmul %45, %44, %cst_50 {dimension_numbers = #tpu.dot_dimension_numbers<[1], [0], [0], [1], [0, 0, 1, 1], [], []>} : vector<16x32xf32>, vector<32x256xf32>, vector<16x256xf32> -> vector<16x256xf32>
    %c0_51 = arith.constant 0 : index
    %c0_52 = arith.constant 0 : index
    %47 = vector.load %arg7[%c0_51, %c0_52] : memref<16x32xf32, #tpu.memory_space<vmem>>, vector<16x32xf32>
    %cst_53 = arith.constant dense<0.000000e+00> : vector<16x256xf32>
    %48 = tpu.matmul %47, %44, %cst_53 {dimension_numbers = #tpu.dot_dimension_numbers<[1], [0], [0], [1], [0, 0, 1, 1], [], []>} : vector<16x32xf32>, vector<32x256xf32>, vector<16x256xf32> -> vector<16x256xf32>
    %49 = arith.maximumf %46, %48 : vector<16x256xf32>
    %c0_54 = arith.constant 0 : index
    %c0_55 = arith.constant 0 : index
    %50 = vector.load %arg8[%c0_54, %c0_55] : memref<256x128xf32, #tpu.memory_space<vmem>>, vector<256x128xf32>
    %cst_56 = arith.constant dense<0.000000e+00> : vector<16x128xf32>
    %51 = tpu.matmul %49, %50, %cst_56 {dimension_numbers = #tpu.dot_dimension_numbers<[1], [0], [0], [1], [0, 0, 1, 1], [], []>} : vector<16x256xf32>, vector<256x128xf32>, vector<16x128xf32> -> vector<16x128xf32>
    %c0_57 = arith.constant 0 : index
    %c0_58 = arith.constant 0 : index
    %52 = vector.load %arg9[%c0_57, %c0_58] : memref<256x128xf32, #tpu.memory_space<vmem>>, vector<256x128xf32>
    %cst_59 = arith.constant dense<0.000000e+00> : vector<16x128xf32>
    %53 = tpu.matmul %49, %52, %cst_59 {dimension_numbers = #tpu.dot_dimension_numbers<[1], [0], [0], [1], [0, 0, 1, 1], [], []>} : vector<16x256xf32>, vector<256x128xf32>, vector<16x128xf32> -> vector<16x128xf32>
    %54 = arith.maximumf %51, %53 : vector<16x128xf32>
    %c0_60 = arith.constant 0 : index
    %c0_61 = arith.constant 0 : index
    %55 = vector.load %arg26[%c0_60, %c0_61] : memref<16x128xf32, #tpu.memory_space<vmem>>, vector<16x128xf32>
    tpu.vector_store %arg26[%c0_60, %c0_61], %54 {strides = array<i32>} : memref<16x128xf32, #tpu.memory_space<vmem>>, vector<16x128xf32>,
    %c0_62 = arith.constant 0 : index
    %c0_63 = arith.constant 0 : index
    %56 = vector.load %arg26[%c0_62, %c0_63] : memref<16x128xf32, #tpu.memory_space<vmem>>, vector<14x128xf32>
    %c0_64 = arith.constant 0 : index
    %c0_65 = arith.constant 0 : index
    %c0_66 = arith.constant 0 : index
    %57 = vector.load %arg10[%c0_64, %c0_65, %c0_66] : memref<3x128x224xf32, #tpu.memory_space<vmem>>, vector<1x128x224xf32>
    %58 = vector.shape_cast %57 : vector<1x128x224xf32> to vector<128x224xf32>
    %cst_67 = arith.constant dense<0.000000e+00> : vector<14x224xf32>
    %59 = tpu.matmul %56, %58, %cst_67 {dimension_numbers = #tpu.dot_dimension_numbers<[1], [0], [0], [1], [0, 0, 1, 1], [], []>} : vector<14x128xf32>, vector<128x224xf32>, vector<14x224xf32> -> vector<14x224xf32>
    %c1_68 = arith.constant 1 : index
    %c0_69 = arith.constant 0 : index
    %60 = vector.load %arg26[%c1_68, %c0_69] : memref<16x128xf32, #tpu.memory_space<vmem>>, vector<14x128xf32>
    %c1_70 = arith.constant 1 : index
    %c0_71 = arith.constant 0 : index
    %c0_72 = arith.constant 0 : index
    %61 = vector.load %arg10[%c1_70, %c0_71, %c0_72] : memref<3x128x224xf32, #tpu.memory_space<vmem>>, vector<1x128x224xf32>
    %62 = vector.shape_cast %61 : vector<1x128x224xf32> to vector<128x224xf32>
    %cst_73 = arith.constant dense<0.000000e+00> : vector<14x224xf32>
    %63 = tpu.matmul %60, %62, %cst_73 {dimension_numbers = #tpu.dot_dimension_numbers<[1], [0], [0], [1], [0, 0, 1, 1], [], []>} : vector<14x128xf32>, vector<128x224xf32>, vector<14x224xf32> -> vector<14x224xf32>
    %64 = arith.addf %59, %63 : vector<14x224xf32>
    %c2_74 = arith.constant 2 : index
    %c0_75 = arith.constant 0 : index
    %65 = vector.load %arg26[%c2_74, %c0_75] : memref<16x128xf32, #tpu.memory_space<vmem>>, vector<14x128xf32>
    %c2_76 = arith.constant 2 : index
    %c0_77 = arith.constant 0 : index
    %c0_78 = arith.constant 0 : index
    %66 = vector.load %arg10[%c2_76, %c0_77, %c0_78] : memref<3x128x224xf32, #tpu.memory_space<vmem>>, vector<1x128x224xf32>
    %67 = vector.shape_cast %66 : vector<1x128x224xf32> to vector<128x224xf32>
    %cst_79 = arith.constant dense<0.000000e+00> : vector<14x224xf32>
    %68 = tpu.matmul %65, %67, %cst_79 {dimension_numbers = #tpu.dot_dimension_numbers<[1], [0], [0], [1], [0, 0, 1, 1], [], []>} : vector<14x128xf32>, vector<128x224xf32>, vector<14x224xf32> -> vector<14x224xf32>
    %69 = arith.addf %64, %68 : vector<14x224xf32>
    %c0_80 = arith.constant 0 : index
    %c0_81 = arith.constant 0 : index
    %70 = vector.load %arg11[%c0_80, %c0_81] : memref<1x224xf32, #tpu.memory_space<vmem>>, vector<1x224xf32>
    %71 = vector.broadcast %70 : vector<1x224xf32> to vector<14x224xf32>
    %72 = arith.addf %69, %71 : vector<14x224xf32>
    %cst_82 = arith.constant 0.000000e+00 : f32
    %73 = vector.broadcast %cst_82 : f32 to vector<14x224xf32>
    %74 = arith.maximumf %72, %73 : vector<14x224xf32>
    %c0_83 = arith.constant 0 : index
    %c0_84 = arith.constant 0 : index
    %75 = vector.load %arg27[%c0_83, %c0_84] : memref<14x224xf32, #tpu.memory_space<vmem>>, vector<14x224xf32>
    tpu.vector_store %arg27[%c0_83, %c0_84], %74 {strides = array<i32>} : memref<14x224xf32, #tpu.memory_space<vmem>>, vector<14x224xf32>,
    %c0_85 = arith.constant 0 : index
    %c0_86 = arith.constant 0 : index
    %76 = vector.load %arg27[%c0_85, %c0_86] : memref<14x224xf32, #tpu.memory_space<vmem>>, vector<12x224xf32>
    %c0_87 = arith.constant 0 : index
    %c0_88 = arith.constant 0 : index
    %c0_89 = arith.constant 0 : index
    %77 = vector.load %arg12[%c0_87, %c0_88, %c0_89] : memref<3x224x192xf32, #tpu.memory_space<vmem>>, vector<1x224x192xf32>
    %78 = vector.shape_cast %77 : vector<1x224x192xf32> to vector<224x192xf32>
    %cst_90 = arith.constant dense<0.000000e+00> : vector<12x192xf32>
    %79 = tpu.matmul %76, %78, %cst_90 {dimension_numbers = #tpu.dot_dimension_numbers<[1], [0], [0], [1], [0, 0, 1, 1], [], []>} : vector<12x224xf32>, vector<224x192xf32>, vector<12x192xf32> -> vector<12x192xf32>
    %c1_91 = arith.constant 1 : index
    %c0_92 = arith.constant 0 : index
    %80 = vector.load %arg27[%c1_91, %c0_92] : memref<14x224xf32, #tpu.memory_space<vmem>>, vector<12x224xf32>
    %c1_93 = arith.constant 1 : index
    %c0_94 = arith.constant 0 : index
    %c0_95 = arith.constant 0 : index
    %81 = vector.load %arg12[%c1_93, %c0_94, %c0_95] : memref<3x224x192xf32, #tpu.memory_space<vmem>>, vector<1x224x192xf32>
    %82 = vector.shape_cast %81 : vector<1x224x192xf32> to vector<224x192xf32>
    %cst_96 = arith.constant dense<0.000000e+00> : vector<12x192xf32>
    %83 = tpu.matmul %80, %82, %cst_96 {dimension_numbers = #tpu.dot_dimension_numbers<[1], [0], [0], [1], [0, 0, 1, 1], [], []>} : vector<12x224xf32>, vector<224x192xf32>, vector<12x192xf32> -> vector<12x192xf32>
    %84 = arith.addf %79, %83 : vector<12x192xf32>
    %c2_97 = arith.constant 2 : index
    %c0_98 = arith.constant 0 : index
    %85 = vector.load %arg27[%c2_97, %c0_98] : memref<14x224xf32, #tpu.memory_space<vmem>>, vector<12x224xf32>
    %c2_99 = arith.constant 2 : index
    %c0_100 = arith.constant 0 : index
    %c0_101 = arith.constant 0 : index
    %86 = vector.load %arg12[%c2_99, %c0_100, %c0_101] : memref<3x224x192xf32, #tpu.memory_space<vmem>>, vector<1x224x192xf32>
    %87 = vector.shape_cast %86 : vector<1x224x192xf32> to vector<224x192xf32>
    %cst_102 = arith.constant dense<0.000000e+00> : vector<12x192xf32>
    %88 = tpu.matmul %85, %87, %cst_102 {dimension_numbers = #tpu.dot_dimension_numbers<[1], [0], [0], [1], [0, 0, 1, 1], [], []>} : vector<12x224xf32>, vector<224x192xf32>, vector<12x192xf32> -> vector<12x192xf32>
    %89 = arith.addf %84, %88 : vector<12x192xf32>
    %c0_103 = arith.constant 0 : index
    %c0_104 = arith.constant 0 : index
    %90 = vector.load %arg13[%c0_103, %c0_104] : memref<1x192xf32, #tpu.memory_space<vmem>>, vector<1x192xf32>
    %91 = vector.broadcast %90 : vector<1x192xf32> to vector<12x192xf32>
    %92 = arith.addf %89, %91 : vector<12x192xf32>
    %c0_105 = arith.constant 0 : index
    %c0_106 = arith.constant 0 : index
    %c0_107 = arith.constant 0 : index
    %93 = vector.load %arg23[%c0_105, %c0_106, %c0_107] : memref<1x12x192xf32, #tpu.memory_space<vmem>>, vector<1x12x192xf32>
    %94 = vector.shape_cast %93 : vector<1x12x192xf32> to vector<12x192xf32>
    %95 = vector.shape_cast %92 : vector<12x192xf32> to vector<1x12x192xf32>
    tpu.vector_store %arg23[%c0_105, %c0_106, %c0_107], %95 {strides = array<i32>} : memref<1x12x192xf32, #tpu.memory_space<vmem>>, vector<1x12x192xf32>,
    %c0_108 = arith.constant 0 : index
    %c0_109 = arith.constant 0 : index
    %c0_110 = arith.constant 0 : index
    %96 = vector.load %arg23[%c0_108, %c0_109, %c0_110] : memref<1x12x192xf32, #tpu.memory_space<vmem>>, vector<1x12x192xf32>
    %97 = vector.shape_cast %96 : vector<1x12x192xf32> to vector<12x192xf32>
    %c0_111 = arith.constant 0 : index
    %c0_112 = arith.constant 0 : index
    %98 = vector.load %arg14[%c0_111, %c0_112] : memref<6x12xf32, #tpu.memory_space<vmem>>, vector<6x12xf32>
    %cst_113 = arith.constant dense<0.000000e+00> : vector<6x192xf32>
    %99 = tpu.matmul %98, %97, %cst_113 {dimension_numbers = #tpu.dot_dimension_numbers<[1], [0], [0], [1], [0, 0, 1, 1], [], []>} : vector<6x12xf32>, vector<12x192xf32>, vector<6x192xf32> -> vector<6x192xf32>
    %c0_114 = arith.constant 0 : index
    %c0_115 = arith.constant 0 : index
    %100 = vector.load %arg15[%c0_114, %c0_115] : memref<6x12xf32, #tpu.memory_space<vmem>>, vector<6x12xf32>
    %cst_116 = arith.constant dense<0.000000e+00> : vector<6x192xf32>
    %101 = tpu.matmul %100, %97, %cst_116 {dimension_numbers = #tpu.dot_dimension_numbers<[1], [0], [0], [1], [0, 0, 1, 1], [], []>} : vector<6x12xf32>, vector<12x192xf32>, vector<6x192xf32> -> vector<6x192xf32>
    %102 = arith.maximumf %99, %101 : vector<6x192xf32>
    %c0_117 = arith.constant 0 : index
    %c0_118 = arith.constant 0 : index
    %103 = vector.load %arg16[%c0_117, %c0_118] : memref<192x96xf32, #tpu.memory_space<vmem>>, vector<192x96xf32>
    %cst_119 = arith.constant dense<0.000000e+00> : vector<6x96xf32>
    %104 = tpu.matmul %102, %103, %cst_119 {dimension_numbers = #tpu.dot_dimension_numbers<[1], [0], [0], [1], [0, 0, 1, 1], [], []>} : vector<6x192xf32>, vector<192x96xf32>, vector<6x96xf32> -> vector<6x96xf32>
    %c0_120 = arith.constant 0 : index
    %c0_121 = arith.constant 0 : index
    %105 = vector.load %arg17[%c0_120, %c0_121] : memref<192x96xf32, #tpu.memory_space<vmem>>, vector<192x96xf32>
    %cst_122 = arith.constant dense<0.000000e+00> : vector<6x96xf32>
    %106 = tpu.matmul %102, %105, %cst_122 {dimension_numbers = #tpu.dot_dimension_numbers<[1], [0], [0], [1], [0, 0, 1, 1], [], []>} : vector<6x192xf32>, vector<192x96xf32>, vector<6x96xf32> -> vector<6x96xf32>
    %107 = arith.maximumf %104, %106 : vector<6x96xf32>
    %c0_123 = arith.constant 0 : index
    %c0_124 = arith.constant 0 : index
    %108 = vector.load %arg28[%c0_123, %c0_124] : memref<6x96xf32, #tpu.memory_space<vmem>>, vector<6x96xf32>
    tpu.vector_store %arg28[%c0_123, %c0_124], %107 {strides = array<i32>} : memref<6x96xf32, #tpu.memory_space<vmem>>, vector<6x96xf32>,
    %c0_125 = arith.constant 0 : index
    %c0_126 = arith.constant 0 : index
    %109 = vector.load %arg28[%c0_125, %c0_126] : memref<6x96xf32, #tpu.memory_space<vmem>>, vector<4x96xf32>
    %c0_127 = arith.constant 0 : index
    %c0_128 = arith.constant 0 : index
    %c0_129 = arith.constant 0 : index
    %110 = vector.load %arg18[%c0_127, %c0_128, %c0_129] : memref<3x96x128xf32, #tpu.memory_space<vmem>>, vector<1x96x128xf32>
    %111 = vector.shape_cast %110 : vector<1x96x128xf32> to vector<96x128xf32>
    %cst_130 = arith.constant dense<0.000000e+00> : vector<4x128xf32>
    %112 = tpu.matmul %109, %111, %cst_130 {dimension_numbers = #tpu.dot_dimension_numbers<[1], [0], [0], [1], [0, 0, 1, 1], [], []>} : vector<4x96xf32>, vector<96x128xf32>, vector<4x128xf32> -> vector<4x128xf32>
    %c1_131 = arith.constant 1 : index
    %c0_132 = arith.constant 0 : index
    %113 = vector.load %arg28[%c1_131, %c0_132] : memref<6x96xf32, #tpu.memory_space<vmem>>, vector<4x96xf32>
    %c1_133 = arith.constant 1 : index
    %c0_134 = arith.constant 0 : index
    %c0_135 = arith.constant 0 : index
    %114 = vector.load %arg18[%c1_133, %c0_134, %c0_135] : memref<3x96x128xf32, #tpu.memory_space<vmem>>, vector<1x96x128xf32>
    %115 = vector.shape_cast %114 : vector<1x96x128xf32> to vector<96x128xf32>
    %cst_136 = arith.constant dense<0.000000e+00> : vector<4x128xf32>
    %116 = tpu.matmul %113, %115, %cst_136 {dimension_numbers = #tpu.dot_dimension_numbers<[1], [0], [0], [1], [0, 0, 1, 1], [], []>} : vector<4x96xf32>, vector<96x128xf32>, vector<4x128xf32> -> vector<4x128xf32>
    %117 = arith.addf %112, %116 : vector<4x128xf32>
    %c2_137 = arith.constant 2 : index
    %c0_138 = arith.constant 0 : index
    %118 = vector.load %arg28[%c2_137, %c0_138] : memref<6x96xf32, #tpu.memory_space<vmem>>, vector<4x96xf32>
    %c2_139 = arith.constant 2 : index
    %c0_140 = arith.constant 0 : index
    %c0_141 = arith.constant 0 : index
    %119 = vector.load %arg18[%c2_139, %c0_140, %c0_141] : memref<3x96x128xf32, #tpu.memory_space<vmem>>, vector<1x96x128xf32>
    %120 = vector.shape_cast %119 : vector<1x96x128xf32> to vector<96x128xf32>
    %cst_142 = arith.constant dense<0.000000e+00> : vector<4x128xf32>
    %121 = tpu.matmul %118, %120, %cst_142 {dimension_numbers = #tpu.dot_dimension_numbers<[1], [0], [0], [1], [0, 0, 1, 1], [], []>} : vector<4x96xf32>, vector<96x128xf32>, vector<4x128xf32> -> vector<4x128xf32>
    %122 = arith.addf %117, %121 : vector<4x128xf32>
    %c0_143 = arith.constant 0 : index
    %c0_144 = arith.constant 0 : index
    %123 = vector.load %arg19[%c0_143, %c0_144] : memref<1x128xf32, #tpu.memory_space<vmem>>, vector<1x128xf32>
    %124 = vector.broadcast %123 : vector<1x128xf32> to vector<4x128xf32>
    %125 = arith.addf %122, %124 : vector<4x128xf32>
    %cst_145 = arith.constant 0.000000e+00 : f32
    %126 = vector.broadcast %cst_145 : f32 to vector<4x128xf32>
    %127 = arith.maximumf %125, %126 : vector<4x128xf32>
    %c0_146 = arith.constant 0 : index
    %c0_147 = arith.constant 0 : index
    %128 = vector.load %arg29[%c0_146, %c0_147] : memref<4x128xf32, #tpu.memory_space<vmem>>, vector<4x128xf32>
    tpu.vector_store %arg29[%c0_146, %c0_147], %127 {strides = array<i32>} : memref<4x128xf32, #tpu.memory_space<vmem>>, vector<4x128xf32>,
    %c0_148 = arith.constant 0 : index
    %c0_149 = arith.constant 0 : index
    %129 = vector.load %arg29[%c0_148, %c0_149] : memref<4x128xf32, #tpu.memory_space<vmem>>, vector<2x128xf32>
    %c0_150 = arith.constant 0 : index
    %c0_151 = arith.constant 0 : index
    %c0_152 = arith.constant 0 : index
    %130 = vector.load %arg20[%c0_150, %c0_151, %c0_152] : memref<3x128x64xf32, #tpu.memory_space<vmem>>, vector<1x128x64xf32>
    %131 = vector.shape_cast %130 : vector<1x128x64xf32> to vector<128x64xf32>
    %cst_153 = arith.constant dense<0.000000e+00> : vector<2x64xf32>
    %132 = tpu.matmul %129, %131, %cst_153 {dimension_numbers = #tpu.dot_dimension_numbers<[1], [0], [0], [1], [0, 0, 1, 1], [], []>} : vector<2x128xf32>, vector<128x64xf32>, vector<2x64xf32> -> vector<2x64xf32>
    %c1_154 = arith.constant 1 : index
    %c0_155 = arith.constant 0 : index
    %133 = vector.load %arg29[%c1_154, %c0_155] : memref<4x128xf32, #tpu.memory_space<vmem>>, vector<2x128xf32>
    %c1_156 = arith.constant 1 : index
    %c0_157 = arith.constant 0 : index
    %c0_158 = arith.constant 0 : index
    %134 = vector.load %arg20[%c1_156, %c0_157, %c0_158] : memref<3x128x64xf32, #tpu.memory_space<vmem>>, vector<1x128x64xf32>
    %135 = vector.shape_cast %134 : vector<1x128x64xf32> to vector<128x64xf32>
    %cst_159 = arith.constant dense<0.000000e+00> : vector<2x64xf32>
    %136 = tpu.matmul %133, %135, %cst_159 {dimension_numbers = #tpu.dot_dimension_numbers<[1], [0], [0], [1], [0, 0, 1, 1], [], []>} : vector<2x128xf32>, vector<128x64xf32>, vector<2x64xf32> -> vector<2x64xf32>
    %137 = arith.addf %132, %136 : vector<2x64xf32>
    %c2_160 = arith.constant 2 : index
    %c0_161 = arith.constant 0 : index
    %138 = vector.load %arg29[%c2_160, %c0_161] : memref<4x128xf32, #tpu.memory_space<vmem>>, vector<2x128xf32>
    %c2_162 = arith.constant 2 : index
    %c0_163 = arith.constant 0 : index
    %c0_164 = arith.constant 0 : index
    %139 = vector.load %arg20[%c2_162, %c0_163, %c0_164] : memref<3x128x64xf32, #tpu.memory_space<vmem>>, vector<1x128x64xf32>
    %140 = vector.shape_cast %139 : vector<1x128x64xf32> to vector<128x64xf32>
    %cst_165 = arith.constant dense<0.000000e+00> : vector<2x64xf32>
    %141 = tpu.matmul %138, %140, %cst_165 {dimension_numbers = #tpu.dot_dimension_numbers<[1], [0], [0], [1], [0, 0, 1, 1], [], []>} : vector<2x128xf32>, vector<128x64xf32>, vector<2x64xf32> -> vector<2x64xf32>
    %142 = arith.addf %137, %141 : vector<2x64xf32>
    %c0_166 = arith.constant 0 : index
    %c0_167 = arith.constant 0 : index
    %143 = vector.load %arg21[%c0_166, %c0_167] : memref<1x64xf32, #tpu.memory_space<vmem>>, vector<1x64xf32>
    %144 = vector.broadcast %143 : vector<1x64xf32> to vector<2x64xf32>
    %145 = arith.addf %142, %144 : vector<2x64xf32>
    %c0_168 = arith.constant 0 : index
    %c0_169 = arith.constant 0 : index
    %c0_170 = arith.constant 0 : index
    %146 = vector.load %arg24[%c0_168, %c0_169, %c0_170] : memref<1x2x64xf32, #tpu.memory_space<vmem>>, vector<1x2x64xf32>
    %147 = vector.shape_cast %146 : vector<1x2x64xf32> to vector<2x64xf32>
    %148 = vector.shape_cast %145 : vector<2x64xf32> to vector<1x2x64xf32>
    tpu.vector_store %arg24[%c0_168, %c0_169, %c0_170], %148 {strides = array<i32>} : memref<1x2x64xf32, #tpu.memory_space<vmem>>, vector<1x2x64xf32>,
    return
  }
  func.func @transform_0(%arg0: i32) -> (i32, i32, i32) {
    %c0_i32 = arith.constant 0 : i32
    %c0_i32_0 = arith.constant 0 : i32
    %c0_i32_1 = arith.constant 0 : i32
    return %arg0, %c0_i32, %c0_i32_0 : i32, i32, i32
  }
  func.func @transform_1(%arg0: i32) -> (i32, i32, i32) {
    %c0_i32 = arith.constant 0 : i32
    %c0_i32_0 = arith.constant 0 : i32
    %c0_i32_1 = arith.constant 0 : i32
    %c0_i32_2 = arith.constant 0 : i32
    return %c0_i32, %c0_i32_0, %c0_i32_1 : i32, i32, i32
  }
  func.func @transform_2(%arg0: i32) -> (i32, i32) {
    %c0_i32 = arith.constant 0 : i32
    %c0_i32_0 = arith.constant 0 : i32
    %c0_i32_1 = arith.constant 0 : i32
    return %c0_i32, %c0_i32_0 : i32, i32
  }
  func.func @transform_3(%arg0: i32) -> (i32, i32, i32) {
    %c0_i32 = arith.constant 0 : i32
    %c0_i32_0 = arith.constant 0 : i32
    %c0_i32_1 = arith.constant 0 : i32
    %c0_i32_2 = arith.constant 0 : i32
    return %c0_i32, %c0_i32_0, %c0_i32_1 : i32, i32, i32
  }
  func.func @transform_4(%arg0: i32) -> (i32, i32) {
    %c0_i32 = arith.constant 0 : i32
    %c0_i32_0 = arith.constant 0 : i32
    %c0_i32_1 = arith.constant 0 : i32
    return %c0_i32, %c0_i32_0 : i32, i32
  }
  func.func @transform_5(%arg0: i32) -> (i32, i32) {
    %c0_i32 = arith.constant 0 : i32
    %c0_i32_0 = arith.constant 0 : i32
    %c0_i32_1 = arith.constant 0 : i32
    return %c0_i32, %c0_i32_0 : i32, i32
  }
  func.func @transform_6(%arg0: i32) -> (i32, i32) {
    %c0_i32 = arith.constant 0 : i32
    %c0_i32_0 = arith.constant 0 : i32
    %c0_i32_1 = arith.constant 0 : i32
    return %c0_i32, %c0_i32_0 : i32, i32
  }
  func.func @transform_7(%arg0: i32) -> (i32, i32) {
    %c0_i32 = arith.constant 0 : i32
    %c0_i32_0 = arith.constant 0 : i32
    %c0_i32_1 = arith.constant 0 : i32
    return %c0_i32, %c0_i32_0 : i32, i32
  }
  func.func @transform_8(%arg0: i32) -> (i32, i32) {
    %c0_i32 = arith.constant 0 : i32
    %c0_i32_0 = arith.constant 0 : i32
    %c0_i32_1 = arith.constant 0 : i32
    return %c0_i32, %c0_i32_0 : i32, i32
  }
  func.func @transform_9(%arg0: i32) -> (i32, i32, i32) {
    %c0_i32 = arith.constant 0 : i32
    %c0_i32_0 = arith.constant 0 : i32
    %c0_i32_1 = arith.constant 0 : i32
    %c0_i32_2 = arith.constant 0 : i32
    return %c0_i32, %c0_i32_0, %c0_i32_1 : i32, i32, i32
  }
  func.func @transform_10(%arg0: i32) -> (i32, i32) {
    %c0_i32 = arith.constant 0 : i32
    %c0_i32_0 = arith.constant 0 : i32
    %c0_i32_1 = arith.constant 0 : i32
    return %c0_i32, %c0_i32_0 : i32, i32
  }
  func.func @transform_11(%arg0: i32) -> (i32, i32, i32) {
    %c0_i32 = arith.constant 0 : i32
    %c0_i32_0 = arith.constant 0 : i32
    %c0_i32_1 = arith.constant 0 : i32
    %c0_i32_2 = arith.constant 0 : i32
    return %c0_i32, %c0_i32_0, %c0_i32_1 : i32, i32, i32
  }
  func.func @transform_12(%arg0: i32) -> (i32, i32) {
    %c0_i32 = arith.constant 0 : i32
    %c0_i32_0 = arith.constant 0 : i32
    %c0_i32_1 = arith.constant 0 : i32
    return %c0_i32, %c0_i32_0 : i32, i32
  }
  func.func @transform_13(%arg0: i32) -> (i32, i32) {
    %c0_i32 = arith.constant 0 : i32
    %c0_i32_0 = arith.constant 0 : i32
    %c0_i32_1 = arith.constant 0 : i32
    return %c0_i32, %c0_i32_0 : i32, i32
  }
  func.func @transform_14(%arg0: i32) -> (i32, i32) {
    %c0_i32 = arith.constant 0 : i32
    %c0_i32_0 = arith.constant 0 : i32
    %c0_i32_1 = arith.constant 0 : i32
    return %c0_i32, %c0_i32_0 : i32, i32
  }
  func.func @transform_15(%arg0: i32) -> (i32, i32) {
    %c0_i32 = arith.constant 0 : i32
    %c0_i32_0 = arith.constant 0 : i32
    %c0_i32_1 = arith.constant 0 : i32
    return %c0_i32, %c0_i32_0 : i32, i32
  }
  func.func @transform_16(%arg0: i32) -> (i32, i32) {
    %c0_i32 = arith.constant 0 : i32
    %c0_i32_0 = arith.constant 0 : i32
    %c0_i32_1 = arith.constant 0 : i32
    return %c0_i32, %c0_i32_0 : i32, i32
  }
  func.func @transform_17(%arg0: i32) -> (i32, i32, i32) {
    %c0_i32 = arith.constant 0 : i32
    %c0_i32_0 = arith.constant 0 : i32
    %c0_i32_1 = arith.constant 0 : i32
    %c0_i32_2 = arith.constant 0 : i32
    return %c0_i32, %c0_i32_0, %c0_i32_1 : i32, i32, i32
  }
  func.func @transform_18(%arg0: i32) -> (i32, i32) {
    %c0_i32 = arith.constant 0 : i32
    %c0_i32_0 = arith.constant 0 : i32
    %c0_i32_1 = arith.constant 0 : i32
    return %c0_i32, %c0_i32_0 : i32, i32
  }
  func.func @transform_19(%arg0: i32) -> (i32, i32, i32) {
    %c0_i32 = arith.constant 0 : i32
    %c0_i32_0 = arith.constant 0 : i32
    %c0_i32_1 = arith.constant 0 : i32
    %c0_i32_2 = arith.constant 0 : i32
    return %c0_i32, %c0_i32_0, %c0_i32_1 : i32, i32, i32
  }
  func.func @transform_20(%arg0: i32) -> (i32, i32) {
    %c0_i32 = arith.constant 0 : i32
    %c0_i32_0 = arith.constant 0 : i32
    %c0_i32_1 = arith.constant 0 : i32
    return %c0_i32, %c0_i32_0 : i32, i32
  }
  func.func @transform_21(%arg0: i32) -> (i32, i32, i32) {
    %c0_i32 = arith.constant 0 : i32
    %c0_i32_0 = arith.constant 0 : i32
    %c0_i32_1 = arith.constant 0 : i32
    return %arg0, %c0_i32, %c0_i32_0 : i32, i32, i32
  }
  func.func @transform_22(%arg0: i32) -> (i32, i32, i32) {
    %c0_i32 = arith.constant 0 : i32
    %c0_i32_0 = arith.constant 0 : i32
    %c0_i32_1 = arith.constant 0 : i32
    return %arg0, %c0_i32, %c0_i32_0 : i32, i32, i32
  }
  func.func @transform_23(%arg0: i32) -> (i32, i32, i32) {
    %c0_i32 = arith.constant 0 : i32
    %c0_i32_0 = arith.constant 0 : i32
    %c0_i32_1 = arith.constant 0 : i32
    return %arg0, %c0_i32, %c0_i32_0 : i32, i32, i32
  }
}

</mosaic_0001>

<llo_original>
// kernel: tpu_custom_call.1
$region0: #{tpu_custom_call.1}
  #allocation0 [shape = 'u32[]', space=smem, size = 0x4, offset = 0x4, fixed_abs, tag = 'smem constant byte address 0x4 - core index']
  #allocation1 [shape = 'u32[144,128]{1,0:T(1,128)}', space=vmem, size = 0x12000, scoped, tag = 'internal scratch']
  #allocation2 [shape = 'f32[34,272]{1,0:T(8,128)}', space=vmem, size = 0xf000, scoped, tag = 'scratch operand']
  #allocation3 [shape = 'f32[16,128]{1,0:T(8,128)}', space=vmem, size = 0x2000, scoped, tag = 'scratch operand']
  #allocation4 [shape = 'f32[14,224]{1,0:T(8,128)}', space=vmem, size = 0x4000, scoped, tag = 'scratch operand']
  #allocation5 [shape = 'f32[6,96]{1,0:T(8,128)}', space=vmem, size = 0x1000, scoped, tag = 'scratch operand']
  #allocation6 [shape = 'f32[4,128]{1,0:T(4,128)}', space=vmem, size = 0x800, scoped, tag = 'scratch operand']
  %s0 = inlined_call_operand.vmem [shape: f32[2,36,108], index: 0, kind: input, shape index: {}]
  %s1 = inlined_call_operand.vmem [shape: f32[3,108,272], index: 1, kind: input, shape index: {}]
  %s2 = inlined_call_operand.vmem [shape: f32[1,272], index: 2, kind: input, shape index: {}]
  %s3 = inlined_call_operand.vmem [shape: f32[3,272,256], index: 3, kind: input, shape index: {}]
  %s4 = inlined_call_operand.vmem [shape: f32[1,256], index: 4, kind: input, shape index: {}]
  %s5 = inlined_call_operand.vmem [shape: f32[16,32], index: 5, kind: input, shape index: {}]
  %s6 = inlined_call_operand.vmem [shape: f32[16,32], index: 6, kind: input, shape index: {}]
  %s7 = inlined_call_operand.vmem [shape: f32[256,128], index: 7, kind: input, shape index: {}]
  %s8 = inlined_call_operand.vmem [shape: f32[256,128], index: 8, kind: input, shape index: {}]
  %s9 = inlined_call_operand.vmem [shape: f32[3,128,224], index: 9, kind: input, shape index: {}]
  %s10 = inlined_call_operand.vmem [shape: f32[1,224], index: 10, kind: input, shape index: {}]
  %s11 = inlined_call_operand.vmem [shape: f32[3,224,192], index: 11, kind: input, shape index: {}]
  %s12 = inlined_call_operand.vmem [shape: f32[1,192], index: 12, kind: input, shape index: {}]
  %s13 = inlined_call_operand.vmem [shape: f32[6,12], index: 13, kind: input, shape index: {}]
  %s14 = inlined_call_operand.vmem [shape: f32[6,12], index: 14, kind: input, shape index: {}]
  %s15 = inlined_call_operand.vmem [shape: f32[192,96], index: 15, kind: input, shape index: {}]
  %s16 = inlined_call_operand.vmem [shape: f32[192,96], index: 16, kind: input, shape index: {}]
  %s17 = inlined_call_operand.vmem [shape: f32[3,96,128], index: 17, kind: input, shape index: {}]
  %s18 = inlined_call_operand.vmem [shape: f32[1,128], index: 18, kind: input, shape index: {}]
  %s19 = inlined_call_operand.vmem [shape: f32[3,128,64], index: 19, kind: input, shape index: {}]
  %s20 = inlined_call_operand.vmem [shape: f32[1,64], index: 20, kind: input, shape index: {}]
  %s21 = inlined_call_operand.hbm [shape: f32[2,32,256], index: 21, kind: output, shape index: {0}]
  %s22 = inlined_call_operand.vmem [shape: f32[2,12,192], index: 22, kind: output, shape index: {1}]
  %s23 = inlined_call_operand.hbm [shape: f32[2,2,64], index: 23, kind: output, shape index: {2}]
  %24 = xla_tuple %s21, %s22, %s23
  %s25 = sld [smem:[#allocation0]]
  $region133: #{tpu_custom_call.1} parent=0
    _
  %s27 = ssub.s32 1, %s25
  %s28 = scalar_select 0, %s27, %s25
  $region1: #{tpu_custom_call.1} parent=0
    #allocation7 [shape = 'u8[65536]{0}', space=vmem, size = 0x10000, scoped, tag = 'output window, operand 0']
    #allocation8 [shape = 's32[2]{0}', space=sflag, size = 0x8, scoped, tag = 'scoped memory for tpu_custom_call.1']
    #allocation9 [shape = 'u8[2048]{0}', space=vmem, size = 0x800, scoped, tag = 'output window, operand 2']
    #allocation10 [shape = 's32[2]{0}', space=sflag, size = 0x8, scoped, tag = 'scoped memory for tpu_custom_call.1']
    %29 = vsyncpa [#allocation8], 0
    %s30 = scalar_lea.sflag [#allocation8], 1
    %31 = vsyncpa %s30, 0
    %32 = vsyncpa [#allocation10], 0
    %s33 = scalar_lea.sflag [#allocation10], 1
    %34 = vsyncpa %s33, 0
    loop: start=0, step=1, limit=4
    $region2: #{tpu_custom_call.1} parent=1 // loop_pre_header
      _
    $region3: #{tpu_custom_call.1} parent=1 // loop_header
      %s36 = sphi 0, %s40
      %p37 = scmp.ge.s32.totalorder %s36, 4
      %s46 = sphi 0, %s48
      %s49 = sphi 0, %s46
      %s50 = sphi 0, %s49
      %s66 = sphi 0, %s50
      %s70 = sphi 0, %s70
      %s72 = sphi 0, %s70
      %s73 = sphi 0, %s72
      %s87 = sphi 0, %s73
      %s91 = sphi 0, %s91
      %s93 = sphi 0, %s91
      %s94 = sphi 0, %s93
      %s108 = sphi 0, %s94
      %s112 = sphi 0, %s112
      %s114 = sphi 0, %s112
      %s115 = sphi 0, %s114
      %s129 = sphi 0, %s115
      %s133 = sphi 0, %s133
      %s135 = sphi 0, %s133
      %s136 = sphi 0, %s135
      %s150 = sphi 0, %s136
      %s154 = sphi 0, %s154
      %s156 = sphi 0, %s154
      %s157 = sphi 0, %s156
      %s171 = sphi 0, %s157
      %s175 = sphi 0, %s175
      %s177 = sphi 0, %s175
      %s178 = sphi 0, %s177
      %s192 = sphi 0, %s178
      %s196 = sphi 0, %s196
      %s198 = sphi 0, %s196
      %s199 = sphi 0, %s198
      %s213 = sphi 0, %s199
      %s217 = sphi 0, %s217
      %s219 = sphi 0, %s217
      %s220 = sphi 0, %s219
      %s234 = sphi 0, %s220
      %s238 = sphi 0, %s238
      %s240 = sphi 0, %s238
      %s241 = sphi 0, %s240
      %s255 = sphi 0, %s241
      %s259 = sphi 0, %s259
      %s261 = sphi 0, %s259
      %s262 = sphi 0, %s261
      %s276 = sphi 0, %s262
      %s280 = sphi 0, %s280
      %s282 = sphi 0, %s280
      %s283 = sphi 0, %s282
      %s297 = sphi 0, %s283
      %s301 = sphi 0, %s301
      %s303 = sphi 0, %s301
      %s304 = sphi 0, %s303
      %s318 = sphi 0, %s304
      %s322 = sphi 0, %s322
      %s324 = sphi 0, %s322
      %s325 = sphi 0, %s324
      %s339 = sphi 0, %s325
      %s343 = sphi 0, %s343
      %s345 = sphi 0, %s343
      %s346 = sphi 0, %s345
      %s360 = sphi 0, %s346
      %s364 = sphi 0, %s364
      %s366 = sphi 0, %s364
      %s367 = sphi 0, %s366
      %s381 = sphi 0, %s367
      %s385 = sphi 0, %s385
      %s387 = sphi 0, %s385
      %s388 = sphi 0, %s387
      %s402 = sphi 0, %s388
      %s406 = sphi 0, %s406
      %s408 = sphi 0, %s406
      %s409 = sphi 0, %s408
      %s423 = sphi 0, %s409
      %s427 = sphi 0, %s427
      %s429 = sphi 0, %s427
      %s430 = sphi 0, %s429
      %s444 = sphi 0, %s430
      %s448 = sphi 0, %s448
      %s450 = sphi 0, %s448
      %s451 = sphi 0, %s450
      %s465 = sphi 0, %s451
      %s469 = sphi 0, %s469
      %s471 = sphi 0, %s469
      %s472 = sphi 0, %s471
      %s486 = sphi 0, %s472
      %s492 = sphi 0, %s494
      %s495 = sphi 0, %s492
      %s496 = sphi 0, %s495
      %s512 = sphi 0, %s496
      %s518 = sphi 0, %s520
      %s521 = sphi 0, %s518
      %s522 = sphi 0, %s521
      %s538 = sphi 0, %s522
      %s544 = sphi 0, %s546
      %s547 = sphi 0, %s544
      %s548 = sphi 0, %s547
      %s564 = sphi 0, %s548
    $region4: #{tpu_custom_call.1} parent=1 // loop_header_branch
      %39 = sbr.rel (%p37) target = $region8
    $region5: #{tpu_custom_call.1} parent=1 // loop_body
      %s41 = ssub.s32 %s36, 1
      %s42 = ssub.s32 %s36, 2
      %s43 = sadd.s32 %s36, 1
      %s44 = ssub.s32 %s36, %s43
      %p45 = scmp.eq.s32.totalorder %s44, 0
      %s47 = sadd.s32 %s46, 1
      %s48 = scalar_select %p45, %s46, %s47
      %p51 = pneg %p45
      %p52 = scmp.eq.s32.totalorder %s36, 1
      %p53 = por %p51, %p52
      %p54 = scmp.ne.s32.totalorder %s46, %s49
      %p55 = scmp.eq.s32.totalorder %s36, 0
      %p56 = por %p54, %p55
      %p57 = scmp.ne.s32.totalorder %s46, %s49
      %p58 = scmp.eq.s32.totalorder %s41, 1
      %p59 = por %p57, %p58
      %p60 = scmp.ne.s32.totalorder %s49, %s50
      %p61 = scmp.eq.s32.totalorder %s41, 0
      %p62 = por %p60, %p61
      %p63 = scmp.ne.s32.totalorder %s49, %s50
      %p64 = scmp.eq.s32.totalorder %s42, 1
      %p65 = por %p63, %p64
      %p67 = scmp.ne.s32.totalorder %s50, %s66
      %p68 = scmp.eq.s32.totalorder %s42, 0
      %p69 = por %p67, %p68
      %s71 = sadd.s32 %s70, 1
      %p74 = scmp.eq.s32.totalorder %s36, 1
      %p75 = scmp.ne.s32.totalorder %s70, %s72
      %p76 = scmp.eq.s32.totalorder %s36, 0
      %p77 = por %p75, %p76
      %p78 = scmp.ne.s32.totalorder %s70, %s72
      %p79 = scmp.eq.s32.totalorder %s41, 1
      %p80 = por %p78, %p79
      %p81 = scmp.ne.s32.totalorder %s72, %s73
      %p82 = scmp.eq.s32.totalorder %s41, 0
      %p83 = por %p81, %p82
      %p84 = scmp.ne.s32.totalorder %s72, %s73
      %p85 = scmp.eq.s32.totalorder %s42, 1
      %p86 = por %p84, %p85
      %p88 = scmp.ne.s32.totalorder %s73, %s87
      %p89 = scmp.eq.s32.totalorder %s42, 0
      %p90 = por %p88, %p89
      %s92 = sadd.s32 %s91, 1
      %p95 = scmp.eq.s32.totalorder %s36, 1
      %p96 = scmp.ne.s32.totalorder %s91, %s93
      %p97 = scmp.eq.s32.totalorder %s36, 0
      %p98 = por %p96, %p97
      %p99 = scmp.ne.s32.totalorder %s91, %s93
      %p100 = scmp.eq.s32.totalorder %s41, 1
      %p101 = por %p99, %p100
      %p102 = scmp.ne.s32.totalorder %s93, %s94
      %p103 = scmp.eq.s32.totalorder %s41, 0
      %p104 = por %p102, %p103
      %p105 = scmp.ne.s32.totalorder %s93, %s94
      %p106 = scmp.eq.s32.totalorder %s42, 1
      %p107 = por %p105, %p106
      %p109 = scmp.ne.s32.totalorder %s94, %s108
      %p110 = scmp.eq.s32.totalorder %s42, 0
      %p111 = por %p109, %p110
      %s113 = sadd.s32 %s112, 1
      %p116 = scmp.eq.s32.totalorder %s36, 1
      %p117 = scmp.ne.s32.totalorder %s112, %s114
      %p118 = scmp.eq.s32.totalorder %s36, 0
      %p119 = por %p117, %p118
      %p120 = scmp.ne.s32.totalorder %s112, %s114
      %p121 = scmp.eq.s32.totalorder %s41, 1
      %p122 = por %p120, %p121
      %p123 = scmp.ne.s32.totalorder %s114, %s115
      %p124 = scmp.eq.s32.totalorder %s41, 0
      %p125 = por %p123, %p124
      %p126 = scmp.ne.s32.totalorder %s114, %s115
      %p127 = scmp.eq.s32.totalorder %s42, 1
      %p128 = por %p126, %p127
      %p130 = scmp.ne.s32.totalorder %s115, %s129
      %p131 = scmp.eq.s32.totalorder %s42, 0
      %p132 = por %p130, %p131
      %s134 = sadd.s32 %s133, 1
      %p137 = scmp.eq.s32.totalorder %s36, 1
      %p138 = scmp.ne.s32.totalorder %s133, %s135
      %p139 = scmp.eq.s32.totalorder %s36, 0
      %p140 = por %p138, %p139
      %p141 = scmp.ne.s32.totalorder %s133, %s135
      %p142 = scmp.eq.s32.totalorder %s41, 1
      %p143 = por %p141, %p142
      %p144 = scmp.ne.s32.totalorder %s135, %s136
      %p145 = scmp.eq.s32.totalorder %s41, 0
      %p146 = por %p144, %p145
      %p147 = scmp.ne.s32.totalorder %s135, %s136
      %p148 = scmp.eq.s32.totalorder %s42, 1
      %p149 = por %p147, %p148
      %p151 = scmp.ne.s32.totalorder %s136, %s150
      %p152 = scmp.eq.s32.totalorder %s42, 0
      %p153 = por %p151, %p152
      %s155 = sadd.s32 %s154, 1
      %p158 = scmp.eq.s32.totalorder %s36, 1
      %p159 = scmp.ne.s32.totalorder %s154, %s156
      %p160 = scmp.eq.s32.totalorder %s36, 0
      %p161 = por %p159, %p160
      %p162 = scmp.ne.s32.totalorder %s154, %s156
      %p163 = scmp.eq.s32.totalorder %s41, 1
      %p164 = por %p162, %p163
      %p165 = scmp.ne.s32.totalorder %s156, %s157
      %p166 = scmp.eq.s32.totalorder %s41, 0
      %p167 = por %p165, %p166
      %p168 = scmp.ne.s32.totalorder %s156, %s157
      %p169 = scmp.eq.s32.totalorder %s42, 1
      %p170 = por %p168, %p169
      %p172 = scmp.ne.s32.totalorder %s157, %s171
      %p173 = scmp.eq.s32.totalorder %s42, 0
      %p174 = por %p172, %p173
      %s176 = sadd.s32 %s175, 1
      %p179 = scmp.eq.s32.totalorder %s36, 1
      %p180 = scmp.ne.s32.totalorder %s175, %s177
      %p181 = scmp.eq.s32.totalorder %s36, 0
      %p182 = por %p180, %p181
      %p183 = scmp.ne.s32.totalorder %s175, %s177
      %p184 = scmp.eq.s32.totalorder %s41, 1
      %p185 = por %p183, %p184
      %p186 = scmp.ne.s32.totalorder %s177, %s178
      %p187 = scmp.eq.s32.totalorder %s41, 0
      %p188 = por %p186, %p187
      %p189 = scmp.ne.s32.totalorder %s177, %s178
      %p190 = scmp.eq.s32.totalorder %s42, 1
      %p191 = por %p189, %p190
      %p193 = scmp.ne.s32.totalorder %s178, %s192
      %p194 = scmp.eq.s32.totalorder %s42, 0
      %p195 = por %p193, %p194
      %s197 = sadd.s32 %s196, 1
      %p200 = scmp.eq.s32.totalorder %s36, 1
      %p201 = scmp.ne.s32.totalorder %s196, %s198
      %p202 = scmp.eq.s32.totalorder %s36, 0
      %p203 = por %p201, %p202
      %p204 = scmp.ne.s32.totalorder %s196, %s198
      %p205 = scmp.eq.s32.totalorder %s41, 1
      %p206 = por %p204, %p205
      %p207 = scmp.ne.s32.totalorder %s198, %s199
      %p208 = scmp.eq.s32.totalorder %s41, 0
      %p209 = por %p207, %p208
      %p210 = scmp.ne.s32.totalorder %s198, %s199
      %p211 = scmp.eq.s32.totalorder %s42, 1
      %p212 = por %p210, %p211
      %p214 = scmp.ne.s32.totalorder %s199, %s213
      %p215 = scmp.eq.s32.totalorder %s42, 0
      %p216 = por %p214, %p215
      %s218 = sadd.s32 %s217, 1
      %p221 = scmp.eq.s32.totalorder %s36, 1
      %p222 = scmp.ne.s32.totalorder %s217, %s219
      %p223 = scmp.eq.s32.totalorder %s36, 0
      %p224 = por %p222, %p223
      %p225 = scmp.ne.s32.totalorder %s217, %s219
      %p226 = scmp.eq.s32.totalorder %s41, 1
      %p227 = por %p225, %p226
      %p228 = scmp.ne.s32.totalorder %s219, %s220
      %p229 = scmp.eq.s32.totalorder %s41, 0
      %p230 = por %p228, %p229
      %p231 = scmp.ne.s32.totalorder %s219, %s220
      %p232 = scmp.eq.s32.totalorder %s42, 1
      %p233 = por %p231, %p232
      %p235 = scmp.ne.s32.totalorder %s220, %s234
      %p236 = scmp.eq.s32.totalorder %s42, 0
      %p237 = por %p235, %p236
      %s239 = sadd.s32 %s238, 1
      %p242 = scmp.eq.s32.totalorder %s36, 1
      %p243 = scmp.ne.s32.totalorder %s238, %s240
      %p244 = scmp.eq.s32.totalorder %s36, 0
      %p245 = por %p243, %p244
      %p246 = scmp.ne.s32.totalorder %s238, %s240
      %p247 = scmp.eq.s32.totalorder %s41, 1
      %p248 = por %p246, %p247
      %p249 = scmp.ne.s32.totalorder %s240, %s241
      %p250 = scmp.eq.s32.totalorder %s41, 0
      %p251 = por %p249, %p250
      %p252 = scmp.ne.s32.totalorder %s240, %s241
      %p253 = scmp.eq.s32.totalorder %s42, 1
      %p254 = por %p252, %p253
      %p256 = scmp.ne.s32.totalorder %s241, %s255
      %p257 = scmp.eq.s32.totalorder %s42, 0
      %p258 = por %p256, %p257
      %s260 = sadd.s32 %s259, 1
      %p263 = scmp.eq.s32.totalorder %s36, 1
      %p264 = scmp.ne.s32.totalorder %s259, %s261
      %p265 = scmp.eq.s32.totalorder %s36, 0
      %p266 = por %p264, %p265
      %p267 = scmp.ne.s32.totalorder %s259, %s261
      %p268 = scmp.eq.s32.totalorder %s41, 1
      %p269 = por %p267, %p268
      %p270 = scmp.ne.s32.totalorder %s261, %s262
      %p271 = scmp.eq.s32.totalorder %s41, 0
      %p272 = por %p270, %p271
      %p273 = scmp.ne.s32.totalorder %s261, %s262
      %p274 = scmp.eq.s32.totalorder %s42, 1
      %p275 = por %p273, %p274
      %p277 = scmp.ne.s32.totalorder %s262, %s276
      %p278 = scmp.eq.s32.totalorder %s42, 0
      %p279 = por %p277, %p278
      %s281 = sadd.s32 %s280, 1
      %p284 = scmp.eq.s32.totalorder %s36, 1
      %p285 = scmp.ne.s32.totalorder %s280, %s282
      %p286 = scmp.eq.s32.totalorder %s36, 0
      %p287 = por %p285, %p286
      %p288 = scmp.ne.s32.totalorder %s280, %s282
      %p289 = scmp.eq.s32.totalorder %s41, 1
      %p290 = por %p288, %p289
      %p291 = scmp.ne.s32.totalorder %s282, %s283
      %p292 = scmp.eq.s32.totalorder %s41, 0
      %p293 = por %p291, %p292
      %p294 = scmp.ne.s32.totalorder %s282, %s283
      %p295 = scmp.eq.s32.totalorder %s42, 1
      %p296 = por %p294, %p295
      %p298 = scmp.ne.s32.totalorder %s283, %s297
      %p299 = scmp.eq.s32.totalorder %s42, 0
      %p300 = por %p298, %p299
      %s302 = sadd.s32 %s301, 1
      %p305 = scmp.eq.s32.totalorder %s36, 1
      %p306 = scmp.ne.s32.totalorder %s301, %s303
      %p307 = scmp.eq.s32.totalorder %s36, 0
      %p308 = por %p306, %p307
      %p309 = scmp.ne.s32.totalorder %s301, %s303
      %p310 = scmp.eq.s32.totalorder %s41, 1
      %p311 = por %p309, %p310
      %p312 = scmp.ne.s32.totalorder %s303, %s304
      %p313 = scmp.eq.s32.totalorder %s41, 0
      %p314 = por %p312, %p313
      %p315 = scmp.ne.s32.totalorder %s303, %s304
      %p316 = scmp.eq.s32.totalorder %s42, 1
      %p317 = por %p315, %p316
      %p319 = scmp.ne.s32.totalorder %s304, %s318
      %p320 = scmp.eq.s32.totalorder %s42, 0
      %p321 = por %p319, %p320
      %s323 = sadd.s32 %s322, 1
      %p326 = scmp.eq.s32.totalorder %s36, 1
      %p327 = scmp.ne.s32.totalorder %s322, %s324
      %p328 = scmp.eq.s32.totalorder %s36, 0
      %p329 = por %p327, %p328
      %p330 = scmp.ne.s32.totalorder %s322, %s324
      %p331 = scmp.eq.s32.totalorder %s41, 1
      %p332 = por %p330, %p331
      %p333 = scmp.ne.s32.totalorder %s324, %s325
      %p334 = scmp.eq.s32.totalorder %s41, 0
      %p335 = por %p333, %p334
      %p336 = scmp.ne.s32.totalorder %s324, %s325
      %p337 = scmp.eq.s32.totalorder %s42, 1
      %p338 = por %p336, %p337
      %p340 = scmp.ne.s32.totalorder %s325, %s339
      %p341 = scmp.eq.s32.totalorder %s42, 0
      %p342 = por %p340, %p341
      %s344 = sadd.s32 %s343, 1
      %p347 = scmp.eq.s32.totalorder %s36, 1
      %p348 = scmp.ne.s32.totalorder %s343, %s345
      %p349 = scmp.eq.s32.totalorder %s36, 0
      %p350 = por %p348, %p349
      %p351 = scmp.ne.s32.totalorder %s343, %s345
      %p352 = scmp.eq.s32.totalorder %s41, 1
      %p353 = por %p351, %p352
      %p354 = scmp.ne.s32.totalorder %s345, %s346
      %p355 = scmp.eq.s32.totalorder %s41, 0
      %p356 = por %p354, %p355
      %p357 = scmp.ne.s32.totalorder %s345, %s346
      %p358 = scmp.eq.s32.totalorder %s42, 1
      %p359 = por %p357, %p358
      %p361 = scmp.ne.s32.totalorder %s346, %s360
      %p362 = scmp.eq.s32.totalorder %s42, 0
      %p363 = por %p361, %p362
      %s365 = sadd.s32 %s364, 1
      %p368 = scmp.eq.s32.totalorder %s36, 1
      %p369 = scmp.ne.s32.totalorder %s364, %s366
      %p370 = scmp.eq.s32.totalorder %s36, 0
      %p371 = por %p369, %p370
      %p372 = scmp.ne.s32.totalorder %s364, %s366
      %p373 = scmp.eq.s32.totalorder %s41, 1
      %p374 = por %p372, %p373
      %p375 = scmp.ne.s32.totalorder %s366, %s367
      %p376 = scmp.eq.s32.totalorder %s41, 0
      %p377 = por %p375, %p376
      %p378 = scmp.ne.s32.totalorder %s366, %s367
      %p379 = scmp.eq.s32.totalorder %s42, 1
      %p380 = por %p378, %p379
      %p382 = scmp.ne.s32.totalorder %s367, %s381
      %p383 = scmp.eq.s32.totalorder %s42, 0
      %p384 = por %p382, %p383
      %s386 = sadd.s32 %s385, 1
      %p389 = scmp.eq.s32.totalorder %s36, 1
      %p390 = scmp.ne.s32.totalorder %s385, %s387
      %p391 = scmp.eq.s32.totalorder %s36, 0
      %p392 = por %p390, %p391
      %p393 = scmp.ne.s32.totalorder %s385, %s387
      %p394 = scmp.eq.s32.totalorder %s41, 1
      %p395 = por %p393, %p394
      %p396 = scmp.ne.s32.totalorder %s387, %s388
      %p397 = scmp.eq.s32.totalorder %s41, 0
      %p398 = por %p396, %p397
      %p399 = scmp.ne.s32.totalorder %s387, %s388
      %p400 = scmp.eq.s32.totalorder %s42, 1
      %p401 = por %p399, %p400
      %p403 = scmp.ne.s32.totalorder %s388, %s402
      %p404 = scmp.eq.s32.totalorder %s42, 0
      %p405 = por %p403, %p404
      %s407 = sadd.s32 %s406, 1
      %p410 = scmp.eq.s32.totalorder %s36, 1
      %p411 = scmp.ne.s32.totalorder %s406, %s408
      %p412 = scmp.eq.s32.totalorder %s36, 0
      %p413 = por %p411, %p412
      %p414 = scmp.ne.s32.totalorder %s406, %s408
      %p415 = scmp.eq.s32.totalorder %s41, 1
      %p416 = por %p414, %p415
      %p417 = scmp.ne.s32.totalorder %s408, %s409
      %p418 = scmp.eq.s32.totalorder %s41, 0
      %p419 = por %p417, %p418
      %p420 = scmp.ne.s32.totalorder %s408, %s409
      %p421 = scmp.eq.s32.totalorder %s42, 1
      %p422 = por %p420, %p421
      %p424 = scmp.ne.s32.totalorder %s409, %s423
      %p425 = scmp.eq.s32.totalorder %s42, 0
      %p426 = por %p424, %p425
      %s428 = sadd.s32 %s427, 1
      %p431 = scmp.eq.s32.totalorder %s36, 1
      %p432 = scmp.ne.s32.totalorder %s427, %s429
      %p433 = scmp.eq.s32.totalorder %s36, 0
      %p434 = por %p432, %p433
      %p435 = scmp.ne.s32.totalorder %s427, %s429
      %p436 = scmp.eq.s32.totalorder %s41, 1
      %p437 = por %p435, %p436
      %p438 = scmp.ne.s32.totalorder %s429, %s430
      %p439 = scmp.eq.s32.totalorder %s41, 0
      %p440 = por %p438, %p439
      %p441 = scmp.ne.s32.totalorder %s429, %s430
      %p442 = scmp.eq.s32.totalorder %s42, 1
      %p443 = por %p441, %p442
      %p445 = scmp.ne.s32.totalorder %s430, %s444
      %p446 = scmp.eq.s32.totalorder %s42, 0
      %p447 = por %p445, %p446
      %s449 = sadd.s32 %s448, 1
      %p452 = scmp.eq.s32.totalorder %s36, 1
      %p453 = scmp.ne.s32.totalorder %s448, %s450
      %p454 = scmp.eq.s32.totalorder %s36, 0
      %p455 = por %p453, %p454
      %p456 = scmp.ne.s32.totalorder %s448, %s450
      %p457 = scmp.eq.s32.totalorder %s41, 1
      %p458 = por %p456, %p457
      %p459 = scmp.ne.s32.totalorder %s450, %s451
      %p460 = scmp.eq.s32.totalorder %s41, 0
      %p461 = por %p459, %p460
      %p462 = scmp.ne.s32.totalorder %s450, %s451
      %p463 = scmp.eq.s32.totalorder %s42, 1
      %p464 = por %p462, %p463
      %p466 = scmp.ne.s32.totalorder %s451, %s465
      %p467 = scmp.eq.s32.totalorder %s42, 0
      %p468 = por %p466, %p467
      %s470 = sadd.s32 %s469, 1
      %p473 = scmp.eq.s32.totalorder %s36, 1
      %p474 = scmp.ne.s32.totalorder %s469, %s471
      %p475 = scmp.eq.s32.totalorder %s36, 0
      %p476 = por %p474, %p475
      %p477 = scmp.ne.s32.totalorder %s469, %s471
      %p478 = scmp.eq.s32.totalorder %s41, 1
      %p479 = por %p477, %p478
      %p480 = scmp.ne.s32.totalorder %s471, %s472
      %p481 = scmp.eq.s32.totalorder %s41, 0
      %p482 = por %p480, %p481
      %p483 = scmp.ne.s32.totalorder %s471, %s472
      %p484 = scmp.eq.s32.totalorder %s42, 1
      %p485 = por %p483, %p484
      %p487 = scmp.ne.s32.totalorder %s472, %s486
      %p488 = scmp.eq.s32.totalorder %s42, 0
      %p489 = por %p487, %p488
      %s490 = ssub.s32 %s36, %s43
      %p491 = scmp.eq.s32.totalorder %s490, 0
      %s493 = sadd.s32 %s492, 1
      %s494 = scalar_select %p491, %s492, %s493
      %p497 = pneg %p491
      %p498 = scmp.eq.s32.totalorder %s36, 1
      %p499 = por %p497, %p498
      %p500 = scmp.ne.s32.totalorder %s492, %s495
      %p501 = scmp.eq.s32.totalorder %s36, 0
      %p502 = por %p500, %p501
      %p503 = scmp.ne.s32.totalorder %s492, %s495
      %p504 = scmp.eq.s32.totalorder %s41, 1
      %p505 = por %p503, %p504
      %p506 = scmp.ne.s32.totalorder %s495, %s496
      %p507 = scmp.eq.s32.totalorder %s41, 0
      %p508 = por %p506, %p507
      %p509 = scmp.ne.s32.totalorder %s495, %s496
      %p510 = scmp.eq.s32.totalorder %s42, 1
      %p511 = por %p509, %p510
      %p513 = scmp.ne.s32.totalorder %s496, %s512
      %p514 = scmp.eq.s32.totalorder %s42, 0
      %p515 = por %p513, %p514
      %s516 = ssub.s32 %s36, %s43
      %p517 = scmp.eq.s32.totalorder %s516, 0
      %s519 = sadd.s32 %s518, 1
      %s520 = scalar_select %p517, %s518, %s519
      %p523 = pneg %p517
      %p524 = scmp.eq.s32.totalorder %s36, 1
      %p525 = por %p523, %p524
      %p526 = scmp.ne.s32.totalorder %s518, %s521
      %p527 = scmp.eq.s32.totalorder %s36, 0
      %p528 = por %p526, %p527
      %p529 = scmp.ne.s32.totalorder %s518, %s521
      %p530 = scmp.eq.s32.totalorder %s41, 1
      %p531 = por %p529, %p530
      %p532 = scmp.ne.s32.totalorder %s521, %s522
      %p533 = scmp.eq.s32.totalorder %s41, 0
      %p534 = por %p532, %p533
      %p535 = scmp.ne.s32.totalorder %s521, %s522
      %p536 = scmp.eq.s32.totalorder %s42, 1
      %p537 = por %p535, %p536
      %p539 = scmp.ne.s32.totalorder %s522, %s538
      %p540 = scmp.eq.s32.totalorder %s42, 0
      %p541 = por %p539, %p540
      %s542 = ssub.s32 %s36, %s43
      %p543 = scmp.eq.s32.totalorder %s542, 0
      %s545 = sadd.s32 %s544, 1
      %s546 = scalar_select %p543, %s544, %s545
      %p549 = pneg %p543
      %p550 = scmp.eq.s32.totalorder %s36, 1
      %p551 = por %p549, %p550
      %p552 = scmp.ne.s32.totalorder %s544, %s547
      %p553 = scmp.eq.s32.totalorder %s36, 0
      %p554 = por %p552, %p553
      %p555 = scmp.ne.s32.totalorder %s544, %s547
      %p556 = scmp.eq.s32.totalorder %s41, 1
      %p557 = por %p555, %p556
      %p558 = scmp.ne.s32.totalorder %s547, %s548
      %p559 = scmp.eq.s32.totalorder %s41, 0
      %p560 = por %p558, %p559
      %p561 = scmp.ne.s32.totalorder %s547, %s548
      %p562 = scmp.eq.s32.totalorder %s42, 1
      %p563 = por %p561, %p562
      %p565 = scmp.ne.s32.totalorder %s548, %s564
      %p566 = scmp.eq.s32.totalorder %s42, 0
      %p567 = por %p565, %p566
      %p568 = scmp.le.s32.totalorder 1, %s36
      %p569 = scmp.lt.s32.totalorder %s36, 3
      %p570 = pnand %p568, %p569
      %p571 = pneg %p570
      // Predicated region
      $region9: #{tpu_custom_call.1} parent=5 // pred_check
        _
      $region10: #{tpu_custom_call.1} parent=5 // pred_check_branch
        %573 = sbr.rel (%p570) target = $region12
      $region11: #{tpu_custom_call.1} parent=5 // pred_region
        %s574 = ssub.s32 %s36, 1
        // Predicated region
        $region13: #{tpu_custom_call.1} parent=11 // pred_check
          %p575 = pneg %p83
        $region14: #{tpu_custom_call.1} parent=11 // pred_check_branch
          %577 = sbr.rel (%p575) target = $region16
        $region15: #{tpu_custom_call.1} parent=11 // pred_region
          _
        $region16: #{tpu_custom_call.1} parent=11 // pred_fallthru
          _
        // Predicated region
        $region17: #{tpu_custom_call.1} parent=11 // pred_check
          %p578 = pneg %p104
        $region18: #{tpu_custom_call.1} parent=11 // pred_check_branch
          %580 = sbr.rel (%p578) target = $region20
        $region19: #{tpu_custom_call.1} parent=11 // pred_region
          _
        $region20: #{tpu_custom_call.1} parent=11 // pred_fallthru
          _
        // Predicated region
        $region21: #{tpu_custom_call.1} parent=11 // pred_check
          %p581 = pneg %p125
        $region22: #{tpu_custom_call.1} parent=11 // pred_check_branch
          %583 = sbr.rel (%p581) target = $region24
        $region23: #{tpu_custom_call.1} parent=11 // pred_region
          _
        $region24: #{tpu_custom_call.1} parent=11 // pred_fallthru
          _
        // Predicated region
        $region25: #{tpu_custom_call.1} parent=11 // pred_check
          %p584 = pneg %p146
        $region26: #{tpu_custom_call.1} parent=11 // pred_check_branch
          %586 = sbr.rel (%p584) target = $region28
        $region27: #{tpu_custom_call.1} parent=11 // pred_region
          _
        $region28: #{tpu_custom_call.1} parent=11 // pred_fallthru
          _
        // Predicated region
        $region29: #{tpu_custom_call.1} parent=11 // pred_check
          %p587 = pneg %p167
        $region30: #{tpu_custom_call.1} parent=11 // pred_check_branch
          %589 = sbr.rel (%p587) target = $region32
        $region31: #{tpu_custom_call.1} parent=11 // pred_region
          _
        $region32: #{tpu_custom_call.1} parent=11 // pred_fallthru
          _
        // Predicated region
        $region33: #{tpu_custom_call.1} parent=11 // pred_check
          %p590 = pneg %p188
        $region34: #{tpu_custom_call.1} parent=11 // pred_check_branch
          %592 = sbr.rel (%p590) target = $region36
        $region35: #{tpu_custom_call.1} parent=11 // pred_region
          _
        $region36: #{tpu_custom_call.1} parent=11 // pred_fallthru
          _
        // Predicated region
        $region37: #{tpu_custom_call.1} parent=11 // pred_check
          %p593 = pneg %p209
        $region38: #{tpu_custom_call.1} parent=11 // pred_check_branch
          %595 = sbr.rel (%p593) target = $region40
        $region39: #{tpu_custom_call.1} parent=11 // pred_region
          _
        $region40: #{tpu_custom_call.1} parent=11 // pred_fallthru
          _
        // Predicated region
        $region41: #{tpu_custom_call.1} parent=11 // pred_check
          %p596 = pneg %p230
        $region42: #{tpu_custom_call.1} parent=11 // pred_check_branch
          %598 = sbr.rel (%p596) target = $region44
        $region43: #{tpu_custom_call.1} parent=11 // pred_region
          _
        $region44: #{tpu_custom_call.1} parent=11 // pred_fallthru
          _
        // Predicated region
        $region45: #{tpu_custom_call.1} parent=11 // pred_check
          %p599 = pneg %p251
        $region46: #{tpu_custom_call.1} parent=11 // pred_check_branch
          %601 = sbr.rel (%p599) target = $region48
        $region47: #{tpu_custom_call.1} parent=11 // pred_region
          _
        $region48: #{tpu_custom_call.1} parent=11 // pred_fallthru
          _
        // Predicated region
        $region49: #{tpu_custom_call.1} parent=11 // pred_check
          %p602 = pneg %p272
        $region50: #{tpu_custom_call.1} parent=11 // pred_check_branch
          %604 = sbr.rel (%p602) target = $region52
        $region51: #{tpu_custom_call.1} parent=11 // pred_region
          _
        $region52: #{tpu_custom_call.1} parent=11 // pred_fallthru
          _
        // Predicated region
        $region53: #{tpu_custom_call.1} parent=11 // pred_check
          %p605 = pneg %p293
        $region54: #{tpu_custom_call.1} parent=11 // pred_check_branch
          %607 = sbr.rel (%p605) target = $region56
        $region55: #{tpu_custom_call.1} parent=11 // pred_region
          _
        $region56: #{tpu_custom_call.1} parent=11 // pred_fallthru
          _
        // Predicated region
        $region57: #{tpu_custom_call.1} parent=11 // pred_check
          %p608 = pneg %p314
        $region58: #{tpu_custom_call.1} parent=11 // pred_check_branch
          %610 = sbr.rel (%p608) target = $region60
        $region59: #{tpu_custom_call.1} parent=11 // pred_region
          _
        $region60: #{tpu_custom_call.1} parent=11 // pred_fallthru
          _
        // Predicated region
        $region61: #{tpu_custom_call.1} parent=11 // pred_check
          %p611 = pneg %p335
        $region62: #{tpu_custom_call.1} parent=11 // pred_check_branch
          %613 = sbr.rel (%p611) target = $region64
        $region63: #{tpu_custom_call.1} parent=11 // pred_region
          _
        $region64: #{tpu_custom_call.1} parent=11 // pred_fallthru
          _
        // Predicated region
        $region65: #{tpu_custom_call.1} parent=11 // pred_check
          %p614 = pneg %p356
        $region66: #{tpu_custom_call.1} parent=11 // pred_check_branch
          %616 = sbr.rel (%p614) target = $region68
        $region67: #{tpu_custom_call.1} parent=11 // pred_region
          _
        $region68: #{tpu_custom_call.1} parent=11 // pred_fallthru
          _
        // Predicated region
        $region69: #{tpu_custom_call.1} parent=11 // pred_check
          %p617 = pneg %p377
        $region70: #{tpu_custom_call.1} parent=11 // pred_check_branch
          %619 = sbr.rel (%p617) target = $region72
        $region71: #{tpu_custom_call.1} parent=11 // pred_region
          _
        $region72: #{tpu_custom_call.1} parent=11 // pred_fallthru
          _
        // Predicated region
        $region73: #{tpu_custom_call.1} parent=11 // pred_check
          %p620 = pneg %p398
        $region74: #{tpu_custom_call.1} parent=11 // pred_check_branch
          %622 = sbr.rel (%p620) target = $region76
        $region75: #{tpu_custom_call.1} parent=11 // pred_region
          _
        $region76: #{tpu_custom_call.1} parent=11 // pred_fallthru
          _
        // Predicated region
        $region77: #{tpu_custom_call.1} parent=11 // pred_check
          %p623 = pneg %p419
        $region78: #{tpu_custom_call.1} parent=11 // pred_check_branch
          %625 = sbr.rel (%p623) target = $region80
        $region79: #{tpu_custom_call.1} parent=11 // pred_region
          _
        $region80: #{tpu_custom_call.1} parent=11 // pred_fallthru
          _
        // Predicated region
        $region81: #{tpu_custom_call.1} parent=11 // pred_check
          %p626 = pneg %p440
        $region82: #{tpu_custom_call.1} parent=11 // pred_check_branch
          %628 = sbr.rel (%p626) target = $region84
        $region83: #{tpu_custom_call.1} parent=11 // pred_region
          _
        $region84: #{tpu_custom_call.1} parent=11 // pred_fallthru
          _
        // Predicated region
        $region85: #{tpu_custom_call.1} parent=11 // pred_check
          %p629 = pneg %p461
        $region86: #{tpu_custom_call.1} parent=11 // pred_check_branch
          %631 = sbr.rel (%p629) target = $region88
        $region87: #{tpu_custom_call.1} parent=11 // pred_region
          _
        $region88: #{tpu_custom_call.1} parent=11 // pred_fallthru
          _
        // Predicated region
        $region89: #{tpu_custom_call.1} parent=11 // pred_check
          %p632 = pneg %p482
        $region90: #{tpu_custom_call.1} parent=11 // pred_check_branch
          %634 = sbr.rel (%p632) target = $region92
        $region91: #{tpu_custom_call.1} parent=11 // pred_region
          _
        $region92: #{tpu_custom_call.1} parent=11 // pred_fallthru
          _
      $region12: #{tpu_custom_call.1} parent=5 // pred_fallthru
        _
      %p635 = scmp.lt.s32.totalorder %s36, 2
      // Predicated region
      $region93: #{tpu_custom_call.1} parent=5 // pred_check
        %p636 = pneg %p635
      $region94: #{tpu_custom_call.1} parent=5 // pred_check_branch
        %638 = sbr.rel (%p636) target = $region96
      $region95: #{tpu_custom_call.1} parent=5 // pred_region
        // Predicated region
        $region97: #{tpu_custom_call.1} parent=95 // pred_check
          %p639 = pneg %p56
        $region98: #{tpu_custom_call.1} parent=95 // pred_check_branch
          %641 = sbr.rel (%p639) target = $region100
        $region99: #{tpu_custom_call.1} parent=95 // pred_region
          %p642 = scmp.lt.s32.totalorder %s36, 1
          %s643 = scalar_select %p642, %s36, 1
          %s644 = smul.addr %s643, 5
          %s645 = smul.addr %s644, 8
          %s646 = scalar_lea.vmem %s0, %s645
        $region100: #{tpu_custom_call.1} parent=95 // pred_fallthru
          _
      $region96: #{tpu_custom_call.1} parent=5 // pred_fallthru
        _
      %p647 = scmp.le.s32.totalorder 1, %s36
      %p648 = scmp.lt.s32.totalorder %s36, 3
      %p649 = pnand %p647, %p648
      %p650 = pneg %p649
      // Predicated region
      $region101: #{tpu_custom_call.1} parent=5 // pred_check
        _
      $region102: #{tpu_custom_call.1} parent=5 // pred_check_branch
        %652 = sbr.rel (%p649) target = $region104
      $region103: #{tpu_custom_call.1} parent=5 // pred_region
        %s653 = ssub.s32 %s36, 1
        %p654 = scmp.lt.s32.totalorder %s41, 1
        %s655 = scalar_select %p654, %s41, 1
        %s656 = smul.addr %s655, 5
        %s657 = smul.addr %s656, 8
        %s658 = scalar_lea.vmem %s0, %s657
        %p659 = pneg %p62
        %p660 = pneg %p59
        %p661 = pneg %p83
        %p662 = pneg %p80
        %p663 = pneg %p104
        %p664 = pneg %p101
        %p665 = pneg %p125
        %p666 = pneg %p122
        %p667 = pneg %p146
        %p668 = pneg %p143
        %p669 = pneg %p167
        %p670 = pneg %p164
        %p671 = pneg %p188
        %p672 = pneg %p185
        %p673 = pneg %p209
        %p674 = pneg %p206
        %p675 = pneg %p230
        %p676 = pneg %p227
        %p677 = pneg %p251
        %p678 = pneg %p248
        %p679 = pneg %p272
        %p680 = pneg %p269
        %p681 = pneg %p293
        %p682 = pneg %p290
        %p683 = pneg %p314
        %p684 = pneg %p311
        %p685 = pneg %p335
        %p686 = pneg %p332
        %p687 = pneg %p356
        %p688 = pneg %p353
        %p689 = pneg %p377
        %p690 = pneg %p374
        %p691 = pneg %p398
        %p692 = pneg %p395
        %p693 = pneg %p419
        %p694 = pneg %p416
        %p695 = pneg %p440
        %p696 = pneg %p437
        %p697 = pneg %p461
        %p698 = pneg %p458
        %p699 = pneg %p482
        %p700 = pneg %p479
        %p701 = pneg %p508
        %p702 = pneg %p505
        %s703 = sand.u32 %s495, 1
        %s704 = scalar_lea.sflag [#allocation8], %s703
        %s705 = sand.u32 %s495, 1
        %s706 = smul.addr %s705, 64
        %s707 = scalar_lea.vmem [#allocation7], %s706
        %p708 = pneg %p534
        %p709 = pneg %p531
        %p710 = scmp.lt.s32.totalorder %s41, 1
        %s711 = scalar_select %p710, %s41, 1
        %s712 = smul.addr %s711, 4
        %s713 = smul.addr %s712, 8
        %s714 = scalar_lea.vmem %s22, %s713
        %p715 = pneg %p560
        %p716 = pneg %p557
        %s717 = sand.u32 %s547, 1
        %s718 = scalar_lea.sflag [#allocation10], %s717
        %s719 = sand.u32 %s547, 1
        %s720 = smul.addr %s719, 2
        %s721 = scalar_lea.vmem [#allocation9], %s720
        %p722 = scmp.lt.s32.totalorder %s41, 1
        %s723 = scalar_select %p722, %s41, 1
        %s724 = smul.addr %s723, 5
        %s725 = smul.addr %s724, 8
        %s726 = scalar_lea.vmem %s0, %s725
        %p727 = scmp.lt.s32.totalorder %s41, 1
        %s728 = scalar_select %p727, %s41, 1
        %s729 = smul.addr %s728, 4
        %s730 = smul.addr %s729, 8
        %s731 = scalar_lea.vmem %s22, %s730
        %v732 = vld [vmem:[%s726] sm:$0xff]
        %v733 = vld [vmem:[%s726 + $0x8] sm:$0xff]
        %v734 = vld [vmem:[%s726 + $0x10] sm:$0xff]
        %v735 = vld [vmem:[%s726 + $0x18] sm:$0xff]
        %v736 = vld [vmem:[%s726 + $0x20] sm:$0x3]
        %v737 = vld [vmem:[%s1] sm:$0xff]
        %v738 = vld [vmem:[%s1 + $0x8] sm:$0xff]
        %v739 = vld [vmem:[%s1 + $0x10] sm:$0xff]
        %v740 = vld [vmem:[%s1 + $0x18] sm:$0xff]
        %v741 = vld [vmem:[%s1 + $0x20] sm:$0xff]
        %v742 = vld [vmem:[%s1 + $0x28] sm:$0xff]
        %v743 = vld [vmem:[%s1 + $0x30] sm:$0xff]
        %v744 = vld [vmem:[%s1 + $0x38] sm:$0xff]
        %v745 = vld [vmem:[%s1 + $0x40] sm:$0xff]
        %v746 = vld [vmem:[%s1 + $0x48] sm:$0xff]
        %v747 = vld [vmem:[%s1 + $0x50] sm:$0xff]
        %v748 = vld [vmem:[%s1 + $0x58] sm:$0xff]
        %v749 = vld [vmem:[%s1 + $0x60] sm:$0xff]
        %v750 = vld [vmem:[%s1 + $0x68] sm:$0xff]
        %v751 = vld [vmem:[%s1 + $0x70] sm:$0xff]
        %v752 = vld [vmem:[%s1 + $0x78] sm:$0xff]
        %v753 = vld [vmem:[%s1 + $0x80] sm:$0xff]
        %v754 = vld [vmem:[%s1 + $0x88] sm:$0xff]
        %v755 = vld [vmem:[%s1 + $0x90] sm:$0xff]
        %v756 = vld [vmem:[%s1 + $0x98] sm:$0xff]
        %v757 = vld [vmem:[%s1 + $0xa0] sm:$0xff]
        %v758 = vld [vmem:[%s1 + $0xa8] sm:$0xff]
        %v759 = vld [vmem:[%s1 + $0xb0] sm:$0xff]
        %v760 = vld [vmem:[%s1 + $0xb8] sm:$0xff]
        %v761 = vld [vmem:[%s1 + $0xc0] sm:$0xff]
        %v762 = vld [vmem:[%s1 + $0xc8] sm:$0xff]
        %v763 = vld [vmem:[%s1 + $0xd0] sm:$0xff]
        %v764 = vld [vmem:[%s1 + $0xd8] sm:$0xff]
        %v765 = vld [vmem:[%s1 + $0xe0] sm:$0xff]
        %v766 = vld [vmem:[%s1 + $0xe8] sm:$0xff]
        %v767 = vld [vmem:[%s1 + $0xf0] sm:$0xff]
        %v768 = vld [vmem:[%s1 + $0xf8] sm:$0xff]
        %v769 = vld [vmem:[%s1 + $0x100] sm:$0xff]
        %v770 = vld [vmem:[%s1 + $0x108] sm:$0xff]
        %v771 = vld [vmem:[%s1 + $0x110] sm:$0xff]
        %v772 = vld [vmem:[%s1 + $0x118] sm:$0xff]
        %v773 = vld [vmem:[%s1 + $0x120] sm:$0xff]
        %v774 = vld [vmem:[%s1 + $0x128] sm:$0xff]
        %v775 = vld [vmem:[%s1 + $0x130] sm:$0xff]
        %v776 = vld [vmem:[%s1 + $0x138] sm:$0xf]
        %v777 = vld [vmem:[%s1 + $0x140] sm:$0xf]
        %v778 = vld [vmem:[%s1 + $0x148] sm:$0xf]
        %v779 = vld [vmem:[%s726 + $0x1] sm:$0xff]
        %v780 = vld [vmem:[%s726 + $0x9] sm:$0xff]
        %v781 = vld [vmem:[%s726 + $0x11] sm:$0xff]
        %v782 = vld [vmem:[%s726 + $0x19] sm:$0xff]
        %v783 = vld [vmem:[%s726 + $0x21] sm:$0x3]
        %s784 = scalar_lea.vmem %s1, 336
        %v785 = vld [vmem:[%s784] sm:$0xff]
        %v786 = vld [vmem:[%s784 + $0x8] sm:$0xff]
        %v787 = vld [vmem:[%s784 + $0x10] sm:$0xff]
        %v788 = vld [vmem:[%s784 + $0x18] sm:$0xff]
        %v789 = vld [vmem:[%s784 + $0x20] sm:$0xff]
        %v790 = vld [vmem:[%s784 + $0x28] sm:$0xff]
        %v791 = vld [vmem:[%s784 + $0x30] sm:$0xff]
        %v792 = vld [vmem:[%s784 + $0x38] sm:$0xff]
        %v793 = vld [vmem:[%s784 + $0x40] sm:$0xff]
        %v794 = vld [vmem:[%s784 + $0x48] sm:$0xff]
        %v795 = vld [vmem:[%s784 + $0x50] sm:$0xff]
        %v796 = vld [vmem:[%s784 + $0x58] sm:$0xff]
        %v797 = vld [vmem:[%s784 + $0x60] sm:$0xff]
        %v798 = vld [vmem:[%s784 + $0x68] sm:$0xff]
        %v799 = vld [vmem:[%s784 + $0x70] sm:$0xff]
        %v800 = vld [vmem:[%s784 + $0x78] sm:$0xff]
        %v801 = vld [vmem:[%s784 + $0x80] sm:$0xff]
        %v802 = vld [vmem:[%s784 + $0x88] sm:$0xff]
        %v803 = vld [vmem:[%s784 + $0x90] sm:$0xff]
        %v804 = vld [vmem:[%s784 + $0x98] sm:$0xff]
        %v805 = vld [vmem:[%s784 + $0xa0] sm:$0xff]
        %v806 = vld [vmem:[%s784 + $0xa8] sm:$0xff]
        %v807 = vld [vmem:[%s784 + $0xb0] sm:$0xff]
        %v808 = vld [vmem:[%s784 + $0xb8] sm:$0xff]
        %v809 = vld [vmem:[%s784 + $0xc0] sm:$0xff]
        %v810 = vld [vmem:[%s784 + $0xc8] sm:$0xff]
        %v811 = vld [vmem:[%s784 + $0xd0] sm:$0xff]
        %v812 = vld [vmem:[%s784 + $0xd8] sm:$0xff]
        %v813 = vld [vmem:[%s784 + $0xe0] sm:$0xff]
        %v814 = vld [vmem:[%s784 + $0xe8] sm:$0xff]
        %v815 = vld [vmem:[%s784 + $0xf0] sm:$0xff]
        %v816 = vld [vmem:[%s784 + $0xf8] sm:$0xff]
        %v817 = vld [vmem:[%s784 + $0x100] sm:$0xff]
        %v818 = vld [vmem:[%s784 + $0x108] sm:$0xff]
        %v819 = vld [vmem:[%s784 + $0x110] sm:$0xff]
        %v820 = vld [vmem:[%s784 + $0x118] sm:$0xff]
        %v821 = vld [vmem:[%s784 + $0x120] sm:$0xff]
        %v822 = vld [vmem:[%s784 + $0x128] sm:$0xff]
        %v823 = vld [vmem:[%s784 + $0x130] sm:$0xff]
        %v824 = vld [vmem:[%s784 + $0x138] sm:$0xf]
        %v825 = vld [vmem:[%s784 + $0x140] sm:$0xf]
        %v826 = vld [vmem:[%s784 + $0x148] sm:$0xf]
        %vm827 = vcmask 883712
        %v829 = vsel %vm827, %v779, 0
        %v832 = vsel %vm827, %v780, 0
        %v835 = vsel %vm827, %v781, 0
        %v838 = vsel %vm827, %v782, 0
        %v841 = vsel %vm827, %v783, 0
        %vm843 = vcmask 1043456
        %v845 = vsel %vm843, %v824, 0
        %v848 = vsel %vm843, %v825, 0
        %v851 = vsel %vm843, %v826, 0
        %853 = vmatprep.subr.mxu0 0.0
        %854 = vmatpush1.msra.mxu0 0.0
        %855 = vmatprep.subr.mxu0 0.0
        %856 = vmatpush1.msra.mxu0 0.0
        %857 = vmatprep.subr.mxu0 %v848
        %858 = vmatpush1.msra.mxu0 %v845
        %859 = vmatprep.subr.mxu0 %v822
        %860 = vmatpush1.msra.mxu0 %v821
        %861 = vmatprep.subr.mxu0 %v819
        %862 = vmatpush1.msra.mxu0 %v818
        %863 = vmatprep.subr.mxu0 %v816
        %864 = vmatpush1.msra.mxu0 %v815
        %865 = vmatprep.subr.mxu0 %v813
        %866 = vmatpush1.msra.mxu0 %v812
        %867 = vmatprep.subr.mxu0 %v810
        %868 = vmatpush1.msra.mxu0 %v809
        %869 = vmatprep.subr.mxu0 %v807
        %870 = vmatpush1.msra.mxu0 %v806
        %871 = vmatprep.subr.mxu0 %v804
        %872 = vmatpush1.msra.mxu0 %v803
        %873 = vmatprep.subr.mxu0 %v801
        %874 = vmatpush1.msra.mxu0 %v800
        %875 = vmatprep.subr.mxu0 %v798
        %876 = vmatpush1.msra.mxu0 %v797
        %877 = vmatprep.subr.mxu0 %v795
        %878 = vmatpush1.msra.mxu0 %v794
        %879 = vmatprep.subr.mxu0 %v792
        %880 = vmatpush1.msra.mxu0 %v791
        %881 = vmatprep.subr.mxu0 %v789
        %882 = vmatpush1.msra.mxu0 %v788
        %883 = vmatprep.subr.mxu0 %v786
        %884 = vmatpush1.msra.mxu0 %v785
        %885 = vmatprep.subr.mxu0 0.0
        %886 = vmatpush2.msra.mxu0 0.0
        %887 = vmatprep.subr.mxu0 0.0
        %888 = vmatpush2.msra.mxu0 0.0
        %889 = vmatprep.subr.mxu0 0.0
        %890 = vmatpush2.msra.mxu0 0.0
        %891 = vmatprep.subr.mxu0 0.0
        %892 = vmatpush2.msra.mxu0 0.0
        %893 = vmatprep.subr.mxu0 0.0
        %894 = vmatpush2.msra.mxu0 0.0
        %895 = vmatprep.subr.mxu0 0.0
        %896 = vmatpush2.msra.mxu0 0.0
        %897 = vmatprep.subr.mxu0 0.0
        %898 = vmatpush2.msra.mxu0 0.0
        %899 = vmatprep.subr.mxu0 0.0
        %900 = vmatpush2.msra.mxu0 0.0
        %901 = vmatprep.subr.mxu0 0.0
        %902 = vmatpush2.msra.mxu0 0.0
        %903 = vmatprep.subr.mxu0 0.0
        %904 = vmatpush2.msra.mxu0 0.0
        %905 = vmatprep.subr.mxu0 0.0
        %906 = vmatpush2.msra.mxu0 0.0
        %907 = vmatprep.subr.mxu0 0.0
        %908 = vmatpush2.msra.mxu0 0.0
        %909 = vmatprep.subr.mxu0 0.0
        %910 = vmatpush2.msra.mxu0 0.0
        %911 = vmatprep.subr.mxu0 0.0
        %912 = vmatpush2.msra.mxu0 0.0
        %913 = vmatprep.subr.mxu0 0.0
        %914 = vmatpush2.msra.mxu0 0.0
        %915 = vmatprep.subr.mxu0 0.0
        %916 = vmatpush2.msra.mxu0 0.0
        %917 = vmatprep.mubr.f32.mxu0 0.0
        %918 = vmatmul.mubr.f32.gmra.mxu0 %v829
        %v919 = vpop.f32.mrf.mxu0
        %v920 = vadd.f32 0.0, %v919
        %v921 = vpop.f32.mrf.mxu0
        %v922 = vadd.f32 0.0, %v921
        %923 = vmatprep.mubr.f32.mxu0 0.0
        %924 = vmatmul.mubr.f32.gmra.mxu0 %v832
        %v925 = vpop.f32.mrf.mxu0
        %v926 = vadd.f32 0.0, %v925
        %v927 = vpop.f32.mrf.mxu0
        %v928 = vadd.f32 0.0, %v927
        %929 = vmatprep.mubr.f32.mxu0 0.0
        %930 = vmatmul.mubr.f32.gmra.mxu0 %v835
        %v931 = vpop.f32.mrf.mxu0
        %v932 = vadd.f32 0.0, %v931
        %v933 = vpop.f32.mrf.mxu0
        %v934 = vadd.f32 0.0, %v933
        %935 = vmatprep.mubr.f32.mxu0 0.0
        %936 = vmatmul.mubr.f32.gmra.mxu0 %v838
        %v937 = vpop.f32.mrf.mxu0
        %v938 = vadd.f32 0.0, %v937
        %v939 = vpop.f32.mrf.mxu0
        %v940 = vadd.f32 0.0, %v939
        %941 = vmatprep.mubr.f32.mxu0 0.0
        %942 = vmatmul.mubr.f32.gmra.mxu0 %v841
        %v943 = vpop.f32.mrf.mxu0
        %v944 = vadd.f32 0.0, %v943
        %v945 = vpop.f32.mrf.mxu0
        %v946 = vadd.f32 0.0, %v945
        %947 = vdwg.mxu0
        %948 = vmatprep.subr.mxu0 0.0
        %949 = vmatpush1.msra.mxu0 0.0
        %950 = vmatprep.subr.mxu0 0.0
        %951 = vmatpush1.msra.mxu0 0.0
        %952 = vmatprep.subr.mxu0 0.0
        %953 = vmatpush1.msra.mxu0 %v851
        %954 = vmatprep.subr.mxu0 0.0
        %955 = vmatpush1.msra.mxu0 %v823
        %956 = vmatprep.subr.mxu0 0.0
        %957 = vmatpush1.msra.mxu0 %v820
        %958 = vmatprep.subr.mxu0 0.0
        %959 = vmatpush1.msra.mxu0 %v817
        %960 = vmatprep.subr.mxu0 0.0
        %961 = vmatpush1.msra.mxu0 %v814
        %962 = vmatprep.subr.mxu0 0.0
        %963 = vmatpush1.msra.mxu0 %v811
        %964 = vmatprep.subr.mxu0 0.0
        %965 = vmatpush1.msra.mxu0 %v808
        %966 = vmatprep.subr.mxu0 0.0
        %967 = vmatpush1.msra.mxu0 %v805
        %968 = vmatprep.subr.mxu0 0.0
        %969 = vmatpush1.msra.mxu0 %v802
        %970 = vmatprep.subr.mxu0 0.0
        %971 = vmatpush1.msra.mxu0 %v799
        %972 = vmatprep.subr.mxu0 0.0
        %973 = vmatpush1.msra.mxu0 %v796
        %974 = vmatprep.subr.mxu0 0.0
        %975 = vmatpush1.msra.mxu0 %v793
        %976 = vmatprep.subr.mxu0 0.0
        %977 = vmatpush1.msra.mxu0 %v790
        %978 = vmatprep.subr.mxu0 0.0
        %979 = vmatpush1.msra.mxu0 %v787
        %980 = vmatprep.subr.mxu0 0.0
        %981 = vmatpush2.msra.mxu0 0.0
        %982 = vmatprep.subr.mxu0 0.0
        %983 = vmatpush2.msra.mxu0 0.0
        %984 = vmatprep.subr.mxu0 0.0
        %985 = vmatpush2.msra.mxu0 0.0
        %986 = vmatprep.subr.mxu0 0.0
        %987 = vmatpush2.msra.mxu0 0.0
        %988 = vmatprep.subr.mxu0 0.0
        %989 = vmatpush2.msra.mxu0 0.0
        %990 = vmatprep.subr.mxu0 0.0
        %991 = vmatpush2.msra.mxu0 0.0
        %992 = vmatprep.subr.mxu0 0.0
        %993 = vmatpush2.msra.mxu0 0.0
        %994 = vmatprep.subr.mxu0 0.0
        %995 = vmatpush2.msra.mxu0 0.0
        %996 = vmatprep.subr.mxu0 0.0
        %997 = vmatpush2.msra.mxu0 0.0
        %998 = vmatprep.subr.mxu0 0.0
        %999 = vmatpush2.msra.mxu0 0.0
        %1000 = vmatprep.subr.mxu0 0.0
        %1001 = vmatpush2.msra.mxu0 0.0
        %1002 = vmatprep.subr.mxu0 0.0
        %1003 = vmatpush2.msra.mxu0 0.0
        %1004 = vmatprep.subr.mxu0 0.0
        %1005 = vmatpush2.msra.mxu0 0.0
        %1006 = vmatprep.subr.mxu0 0.0
        %1007 = vmatpush2.msra.mxu0 0.0
        %1008 = vmatprep.subr.mxu0 0.0
        %1009 = vmatpush2.msra.mxu0 0.0
        %1010 = vmatprep.subr.mxu0 0.0
        %1011 = vmatpush2.msra.mxu0 0.0
        %1012 = vmatprep.mubr.f32.mxu0 0.0
        %1013 = vmatmul.mubr.f32.gmra.mxu0 %v829
        %v1014 = vpop.f32.mrf.mxu0
        %v1015 = vadd.f32 0.0, %v1014
        %v1016 = vpop.f32.mrf.mxu0
        %1017 = vmatprep.mubr.f32.mxu0 0.0
        %1018 = vmatmul.mubr.f32.gmra.mxu0 %v832
        %v1019 = vpop.f32.mrf.mxu0
        %v1020 = vadd.f32 0.0, %v1019
        %v1021 = vpop.f32.mrf.mxu0
        %1022 = vmatprep.mubr.f32.mxu0 0.0
        %1023 = vmatmul.mubr.f32.gmra.mxu0 %v835
        %v1024 = vpop.f32.mrf.mxu0
        %v1025 = vadd.f32 0.0, %v1024
        %v1026 = vpop.f32.mrf.mxu0
        %1027 = vmatprep.mubr.f32.mxu0 0.0
        %1028 = vmatmul.mubr.f32.gmra.mxu0 %v838
        %v1029 = vpop.f32.mrf.mxu0
        %v1030 = vadd.f32 0.0, %v1029
        %v1031 = vpop.f32.mrf.mxu0
        %1032 = vmatprep.mubr.f32.mxu0 0.0
        %1033 = vmatmul.mubr.f32.gmra.mxu0 %v841
        %v1034 = vpop.f32.mrf.mxu0
        %v1035 = vadd.f32 0.0, %v1034
        %v1036 = vpop.f32.mrf.mxu0
        %1037 = vdwg.mxu0
        %v1039 = vsel %vm827, %v732, 0
        %v1042 = vsel %vm827, %v733, 0
        %v1045 = vsel %vm827, %v734, 0
        %v1048 = vsel %vm827, %v735, 0
        %v1051 = vsel %vm827, %v736, 0
        %v1054 = vsel %vm843, %v776, 0
        %v1057 = vsel %vm843, %v777, 0
        %v1060 = vsel %vm843, %v778, 0
        %1062 = vmatprep.subr.mxu0 0.0
        %1063 = vmatpush1.msra.mxu0 0.0
        %1064 = vmatprep.subr.mxu0 0.0
        %1065 = vmatpush1.msra.mxu0 0.0
        %1066 = vmatprep.subr.mxu0 %v1057
        %1067 = vmatpush1.msra.mxu0 %v1054
        %1068 = vmatprep.subr.mxu0 %v774
        %1069 = vmatpush1.msra.mxu0 %v773
        %1070 = vmatprep.subr.mxu0 %v771
        %1071 = vmatpush1.msra.mxu0 %v770
        %1072 = vmatprep.subr.mxu0 %v768
        %1073 = vmatpush1.msra.mxu0 %v767
        %1074 = vmatprep.subr.mxu0 %v765
        %1075 = vmatpush1.msra.mxu0 %v764
        %1076 = vmatprep.subr.mxu0 %v762
        %1077 = vmatpush1.msra.mxu0 %v761
        %1078 = vmatprep.subr.mxu0 %v759
        %1079 = vmatpush1.msra.mxu0 %v758
        %1080 = vmatprep.subr.mxu0 %v756
        %1081 = vmatpush1.msra.mxu0 %v755
        %1082 = vmatprep.subr.mxu0 %v753
        %1083 = vmatpush1.msra.mxu0 %v752
        %1084 = vmatprep.subr.mxu0 %v750
        %1085 = vmatpush1.msra.mxu0 %v749
        %1086 = vmatprep.subr.mxu0 %v747
        %1087 = vmatpush1.msra.mxu0 %v746
        %1088 = vmatprep.subr.mxu0 %v744
        %1089 = vmatpush1.msra.mxu0 %v743
        %1090 = vmatprep.subr.mxu0 %v741
        %1091 = vmatpush1.msra.mxu0 %v740
        %1092 = vmatprep.subr.mxu0 %v738
        %1093 = vmatpush1.msra.mxu0 %v737
        %1094 = vmatprep.subr.mxu0 0.0
        %1095 = vmatpush2.msra.mxu0 0.0
        %1096 = vmatprep.subr.mxu0 0.0
        %1097 = vmatpush2.msra.mxu0 0.0
        %1098 = vmatprep.subr.mxu0 0.0
        %1099 = vmatpush2.msra.mxu0 0.0
        %1100 = vmatprep.subr.mxu0 0.0
        %1101 = vmatpush2.msra.mxu0 0.0
        %1102 = vmatprep.subr.mxu0 0.0
        %1103 = vmatpush2.msra.mxu0 0.0
        %1104 = vmatprep.subr.mxu0 0.0
        %1105 = vmatpush2.msra.mxu0 0.0
        %1106 = vmatprep.subr.mxu0 0.0
        %1107 = vmatpush2.msra.mxu0 0.0
        %1108 = vmatprep.subr.mxu0 0.0
        %1109 = vmatpush2.msra.mxu0 0.0
        %1110 = vmatprep.subr.mxu0 0.0
        %1111 = vmatpush2.msra.mxu0 0.0
        %1112 = vmatprep.subr.mxu0 0.0
        %1113 = vmatpush2.msra.mxu0 0.0
        %1114 = vmatprep.subr.mxu0 0.0
        %1115 = vmatpush2.msra.mxu0 0.0
        %1116 = vmatprep.subr.mxu0 0.0
        %1117 = vmatpush2.msra.mxu0 0.0
        %1118 = vmatprep.subr.mxu0 0.0
        %1119 = vmatpush2.msra.mxu0 0.0
        %1120 = vmatprep.subr.mxu0 0.0
        %1121 = vmatpush2.msra.mxu0 0.0
        %1122 = vmatprep.subr.mxu0 0.0
        %1123 = vmatpush2.msra.mxu0 0.0
        %1124 = vmatprep.subr.mxu0 0.0
        %1125 = vmatpush2.msra.mxu0 0.0
        %1126 = vmatprep.mubr.f32.mxu0 0.0
        %1127 = vmatmul.mubr.f32.gmra.mxu0 %v1039
        %v1128 = vpop.f32.mrf.mxu0
        %v1129 = vadd.f32 %v920, %v1128
        %v1130 = vpop.f32.mrf.mxu0
        %v1131 = vadd.f32 %v922, %v1130
        %1132 = vmatprep.mubr.f32.mxu0 0.0
        %1133 = vmatmul.mubr.f32.gmra.mxu0 %v1042
        %v1134 = vpop.f32.mrf.mxu0
        %v1135 = vadd.f32 %v926, %v1134
        %v1136 = vpop.f32.mrf.mxu0
        %v1137 = vadd.f32 %v928, %v1136
        %1138 = vmatprep.mubr.f32.mxu0 0.0
        %1139 = vmatmul.mubr.f32.gmra.mxu0 %v1045
        %v1140 = vpop.f32.mrf.mxu0
        %v1141 = vadd.f32 %v932, %v1140
        %v1142 = vpop.f32.mrf.mxu0
        %v1143 = vadd.f32 %v934, %v1142
        %1144 = vmatprep.mubr.f32.mxu0 0.0
        %1145 = vmatmul.mubr.f32.gmra.mxu0 %v1048
        %v1146 = vpop.f32.mrf.mxu0
        %v1147 = vadd.f32 %v938, %v1146
        %v1148 = vpop.f32.mrf.mxu0
        %v1149 = vadd.f32 %v940, %v1148
        %1150 = vmatprep.mubr.f32.mxu0 0.0
        %1151 = vmatmul.mubr.f32.gmra.mxu0 %v1051
        %v1152 = vpop.f32.mrf.mxu0
        %v1153 = vadd.f32 %v944, %v1152
        %v1154 = vpop.f32.mrf.mxu0
        %v1155 = vadd.f32 %v946, %v1154
        %1156 = vdwg.mxu0
        %1157 = vmatprep.subr.mxu0 0.0
        %1158 = vmatpush1.msra.mxu0 0.0
        %1159 = vmatprep.subr.mxu0 0.0
        %1160 = vmatpush1.msra.mxu0 0.0
        %1161 = vmatprep.subr.mxu0 0.0
        %1162 = vmatpush1.msra.mxu0 %v1060
        %1163 = vmatprep.subr.mxu0 0.0
        %1164 = vmatpush1.msra.mxu0 %v775
        %1165 = vmatprep.subr.mxu0 0.0
        %1166 = vmatpush1.msra.mxu0 %v772
        %1167 = vmatprep.subr.mxu0 0.0
        %1168 = vmatpush1.msra.mxu0 %v769
        %1169 = vmatprep.subr.mxu0 0.0
        %1170 = vmatpush1.msra.mxu0 %v766
        %1171 = vmatprep.subr.mxu0 0.0
        %1172 = vmatpush1.msra.mxu0 %v763
        %1173 = vmatprep.subr.mxu0 0.0
        %1174 = vmatpush1.msra.mxu0 %v760
        %1175 = vmatprep.subr.mxu0 0.0
        %1176 = vmatpush1.msra.mxu0 %v757
        %1177 = vmatprep.subr.mxu0 0.0
        %1178 = vmatpush1.msra.mxu0 %v754
        %1179 = vmatprep.subr.mxu0 0.0
        %1180 = vmatpush1.msra.mxu0 %v751
        %1181 = vmatprep.subr.mxu0 0.0
        %1182 = vmatpush1.msra.mxu0 %v748
        %1183 = vmatprep.subr.mxu0 0.0
        %1184 = vmatpush1.msra.mxu0 %v745
        %1185 = vmatprep.subr.mxu0 0.0
        %1186 = vmatpush1.msra.mxu0 %v742
        %1187 = vmatprep.subr.mxu0 0.0
        %1188 = vmatpush1.msra.mxu0 %v739
        %1189 = vmatprep.subr.mxu0 0.0
        %1190 = vmatpush2.msra.mxu0 0.0
        %1191 = vmatprep.subr.mxu0 0.0
        %1192 = vmatpush2.msra.mxu0 0.0
        %1193 = vmatprep.subr.mxu0 0.0
        %1194 = vmatpush2.msra.mxu0 0.0
        %1195 = vmatprep.subr.mxu0 0.0
        %1196 = vmatpush2.msra.mxu0 0.0
        %1197 = vmatprep.subr.mxu0 0.0
        %1198 = vmatpush2.msra.mxu0 0.0
        %1199 = vmatprep.subr.mxu0 0.0
        %1200 = vmatpush2.msra.mxu0 0.0
        %1201 = vmatprep.subr.mxu0 0.0
        %1202 = vmatpush2.msra.mxu0 0.0
        %1203 = vmatprep.subr.mxu0 0.0
        %1204 = vmatpush2.msra.mxu0 0.0
        %1205 = vmatprep.subr.mxu0 0.0
        %1206 = vmatpush2.msra.mxu0 0.0
        %1207 = vmatprep.subr.mxu0 0.0
        %1208 = vmatpush2.msra.mxu0 0.0
        %1209 = vmatprep.subr.mxu0 0.0
        %1210 = vmatpush2.msra.mxu0 0.0
        %1211 = vmatprep.subr.mxu0 0.0
        %1212 = vmatpush2.msra.mxu0 0.0
        %1213 = vmatprep.subr.mxu0 0.0
        %1214 = vmatpush2.msra.mxu0 0.0
        %1215 = vmatprep.subr.mxu0 0.0
        %1216 = vmatpush2.msra.mxu0 0.0
        %1217 = vmatprep.subr.mxu0 0.0
        %1218 = vmatpush2.msra.mxu0 0.0
        %1219 = vmatprep.subr.mxu0 0.0
        %1220 = vmatpush2.msra.mxu0 0.0
        %1221 = vmatprep.mubr.f32.mxu0 0.0
        %1222 = vmatmul.mubr.f32.gmra.mxu0 %v1039
        %v1223 = vpop.f32.mrf.mxu0
        %v1224 = vadd.f32 %v1015, %v1223
        %v1225 = vpop.f32.mrf.mxu0
        %1226 = vmatprep.mubr.f32.mxu0 0.0
        %1227 = vmatmul.mubr.f32.gmra.mxu0 %v1042
        %v1228 = vpop.f32.mrf.mxu0
        %v1229 = vadd.f32 %v1020, %v1228
        %v1230 = vpop.f32.mrf.mxu0
        %1231 = vmatprep.mubr.f32.mxu0 0.0
        %1232 = vmatmul.mubr.f32.gmra.mxu0 %v1045
        %v1233 = vpop.f32.mrf.mxu0
        %v1234 = vadd.f32 %v1025, %v1233
        %v1235 = vpop.f32.mrf.mxu0
        %1236 = vmatprep.mubr.f32.mxu0 0.0
        %1237 = vmatmul.mubr.f32.gmra.mxu0 %v1048
        %v1238 = vpop.f32.mrf.mxu0
        %v1239 = vadd.f32 %v1030, %v1238
        %v1240 = vpop.f32.mrf.mxu0
        %1241 = vmatprep.mubr.f32.mxu0 0.0
        %1242 = vmatmul.mubr.f32.gmra.mxu0 %v1051
        %v1243 = vpop.f32.mrf.mxu0
        %v1244 = vadd.f32 %v1035, %v1243
        %v1245 = vpop.f32.mrf.mxu0
        %1246 = vdwg.mxu0
        %v1247 = vld [vmem:[%s726 + $0x2] sm:$0xff]
        %v1248 = vld [vmem:[%s726 + $0xa] sm:$0xff]
        %v1249 = vld [vmem:[%s726 + $0x12] sm:$0xff]
        %v1250 = vld [vmem:[%s726 + $0x1a] sm:$0xff]
        %v1251 = vld [vmem:[%s726 + $0x22] sm:$0x3]
        %s1252 = scalar_lea.vmem %s1, 672
        %v1253 = vld [vmem:[%s1252] sm:$0xff]
        %v1254 = vld [vmem:[%s1252 + $0x8] sm:$0xff]
        %v1255 = vld [vmem:[%s1252 + $0x10] sm:$0xff]
        %v1256 = vld [vmem:[%s1252 + $0x18] sm:$0xff]
        %v1257 = vld [vmem:[%s1252 + $0x20] sm:$0xff]
        %v1258 = vld [vmem:[%s1252 + $0x28] sm:$0xff]
        %v1259 = vld [vmem:[%s1252 + $0x30] sm:$0xff]
        %v1260 = vld [vmem:[%s1252 + $0x38] sm:$0xff]
        %v1261 = vld [vmem:[%s1252 + $0x40] sm:$0xff]
        %v1262 = vld [vmem:[%s1252 + $0x48] sm:$0xff]
        %v1263 = vld [vmem:[%s1252 + $0x50] sm:$0xff]
        %v1264 = vld [vmem:[%s1252 + $0x58] sm:$0xff]
        %v1265 = vld [vmem:[%s1252 + $0x60] sm:$0xff]
        %v1266 = vld [vmem:[%s1252 + $0x68] sm:$0xff]
        %v1267 = vld [vmem:[%s1252 + $0x70] sm:$0xff]
        %v1268 = vld [vmem:[%s1252 + $0x78] sm:$0xff]
        %v1269 = vld [vmem:[%s1252 + $0x80] sm:$0xff]
        %v1270 = vld [vmem:[%s1252 + $0x88] sm:$0xff]
        %v1271 = vld [vmem:[%s1252 + $0x90] sm:$0xff]
        %v1272 = vld [vmem:[%s1252 + $0x98] sm:$0xff]
        %v1273 = vld [vmem:[%s1252 + $0xa0] sm:$0xff]
        %v1274 = vld [vmem:[%s1252 + $0xa8] sm:$0xff]
        %v1275 = vld [vmem:[%s1252 + $0xb0] sm:$0xff]
        %v1276 = vld [vmem:[%s1252 + $0xb8] sm:$0xff]
        %v1277 = vld [vmem:[%s1252 + $0xc0] sm:$0xff]
        %v1278 = vld [vmem:[%s1252 + $0xc8] sm:$0xff]
        %v1279 = vld [vmem:[%s1252 + $0xd0] sm:$0xff]
        %v1280 = vld [vmem:[%s1252 + $0xd8] sm:$0xff]
        %v1281 = vld [vmem:[%s1252 + $0xe0] sm:$0xff]
        %v1282 = vld [vmem:[%s1252 + $0xe8] sm:$0xff]
        %v1283 = vld [vmem:[%s1252 + $0xf0] sm:$0xff]
        %v1284 = vld [vmem:[%s1252 + $0xf8] sm:$0xff]
        %v1285 = vld [vmem:[%s1252 + $0x100] sm:$0xff]
        %v1286 = vld [vmem:[%s1252 + $0x108] sm:$0xff]
        %v1287 = vld [vmem:[%s1252 + $0x110] sm:$0xff]
        %v1288 = vld [vmem:[%s1252 + $0x118] sm:$0xff]
        %v1289 = vld [vmem:[%s1252 + $0x120] sm:$0xff]
        %v1290 = vld [vmem:[%s1252 + $0x128] sm:$0xff]
        %v1291 = vld [vmem:[%s1252 + $0x130] sm:$0xff]
        %v1292 = vld [vmem:[%s1252 + $0x138] sm:$0xf]
        %v1293 = vld [vmem:[%s1252 + $0x140] sm:$0xf]
        %v1294 = vld [vmem:[%s1252 + $0x148] sm:$0xf]
        %v1296 = vsel %vm827, %v1247, 0
        %v1299 = vsel %vm827, %v1248, 0
        %v1302 = vsel %vm827, %v1249, 0
        %v1305 = vsel %vm827, %v1250, 0
        %v1308 = vsel %vm827, %v1251, 0
        %v1311 = vsel %vm843, %v1292, 0
        %v1314 = vsel %vm843, %v1293, 0
        %v1317 = vsel %vm843, %v1294, 0
        %1319 = vmatprep.subr.mxu0 0.0
        %1320 = vmatpush1.msra.mxu0 0.0
        %1321 = vmatprep.subr.mxu0 0.0
        %1322 = vmatpush1.msra.mxu0 0.0
        %1323 = vmatprep.subr.mxu0 %v1314
        %1324 = vmatpush1.msra.mxu0 %v1311
        %1325 = vmatprep.subr.mxu0 %v1290
        %1326 = vmatpush1.msra.mxu0 %v1289
        %1327 = vmatprep.subr.mxu0 %v1287
        %1328 = vmatpush1.msra.mxu0 %v1286
        %1329 = vmatprep.subr.mxu0 %v1284
        %1330 = vmatpush1.msra.mxu0 %v1283
        %1331 = vmatprep.subr.mxu0 %v1281
        %1332 = vmatpush1.msra.mxu0 %v1280
        %1333 = vmatprep.subr.mxu0 %v1278
        %1334 = vmatpush1.msra.mxu0 %v1277
        %1335 = vmatprep.subr.mxu0 %v1275
        %1336 = vmatpush1.msra.mxu0 %v1274
        %1337 = vmatprep.subr.mxu0 %v1272
        %1338 = vmatpush1.msra.mxu0 %v1271
        %1339 = vmatprep.subr.mxu0 %v1269
        %1340 = vmatpush1.msra.mxu0 %v1268
        %1341 = vmatprep.subr.mxu0 %v1266
        %1342 = vmatpush1.msra.mxu0 %v1265
        %1343 = vmatprep.subr.mxu0 %v1263
        %1344 = vmatpush1.msra.mxu0 %v1262
        %1345 = vmatprep.subr.mxu0 %v1260
        %1346 = vmatpush1.msra.mxu0 %v1259
        %1347 = vmatprep.subr.mxu0 %v1257
        %1348 = vmatpush1.msra.mxu0 %v1256
        %1349 = vmatprep.subr.mxu0 %v1254
        %1350 = vmatpush1.msra.mxu0 %v1253
        %1351 = vmatprep.subr.mxu0 0.0
        %1352 = vmatpush2.msra.mxu0 0.0
        %1353 = vmatprep.subr.mxu0 0.0
        %1354 = vmatpush2.msra.mxu0 0.0
        %1355 = vmatprep.subr.mxu0 0.0
        %1356 = vmatpush2.msra.mxu0 0.0
        %1357 = vmatprep.subr.mxu0 0.0
        %1358 = vmatpush2.msra.mxu0 0.0
        %1359 = vmatprep.subr.mxu0 0.0
        %1360 = vmatpush2.msra.mxu0 0.0
        %1361 = vmatprep.subr.mxu0 0.0
        %1362 = vmatpush2.msra.mxu0 0.0
        %1363 = vmatprep.subr.mxu0 0.0
        %1364 = vmatpush2.msra.mxu0 0.0
        %1365 = vmatprep.subr.mxu0 0.0
        %1366 = vmatpush2.msra.mxu0 0.0
        %1367 = vmatprep.subr.mxu0 0.0
        %1368 = vmatpush2.msra.mxu0 0.0
        %1369 = vmatprep.subr.mxu0 0.0
        %1370 = vmatpush2.msra.mxu0 0.0
        %1371 = vmatprep.subr.mxu0 0.0
        %1372 = vmatpush2.msra.mxu0 0.0
        %1373 = vmatprep.subr.mxu0 0.0
        %1374 = vmatpush2.msra.mxu0 0.0
        %1375 = vmatprep.subr.mxu0 0.0
        %1376 = vmatpush2.msra.mxu0 0.0
        %1377 = vmatprep.subr.mxu0 0.0
        %1378 = vmatpush2.msra.mxu0 0.0
        %1379 = vmatprep.subr.mxu0 0.0
        %1380 = vmatpush2.msra.mxu0 0.0
        %1381 = vmatprep.subr.mxu0 0.0
        %1382 = vmatpush2.msra.mxu0 0.0
        %1383 = vmatprep.mubr.f32.mxu0 0.0
        %1384 = vmatmul.mubr.f32.gmra.mxu0 %v1296
        %v1385 = vpop.f32.mrf.mxu0
        %v1386 = vadd.f32 0.0, %v1385
        %v1387 = vpop.f32.mrf.mxu0
        %v1388 = vadd.f32 0.0, %v1387
        %1389 = vmatprep.mubr.f32.mxu0 0.0
        %1390 = vmatmul.mubr.f32.gmra.mxu0 %v1299
        %v1391 = vpop.f32.mrf.mxu0
        %v1392 = vadd.f32 0.0, %v1391
        %v1393 = vpop.f32.mrf.mxu0
        %v1394 = vadd.f32 0.0, %v1393
        %1395 = vmatprep.mubr.f32.mxu0 0.0
        %1396 = vmatmul.mubr.f32.gmra.mxu0 %v1302
        %v1397 = vpop.f32.mrf.mxu0
        %v1398 = vadd.f32 0.0, %v1397
        %v1399 = vpop.f32.mrf.mxu0
        %v1400 = vadd.f32 0.0, %v1399
        %1401 = vmatprep.mubr.f32.mxu0 0.0
        %1402 = vmatmul.mubr.f32.gmra.mxu0 %v1305
        %v1403 = vpop.f32.mrf.mxu0
        %v1404 = vadd.f32 0.0, %v1403
        %v1405 = vpop.f32.mrf.mxu0
        %v1406 = vadd.f32 0.0, %v1405
        %1407 = vmatprep.mubr.f32.mxu0 0.0
        %1408 = vmatmul.mubr.f32.gmra.mxu0 %v1308
        %v1409 = vpop.f32.mrf.mxu0
        %v1410 = vadd.f32 0.0, %v1409
        %v1411 = vpop.f32.mrf.mxu0
        %v1412 = vadd.f32 0.0, %v1411
        %1413 = vdwg.mxu0
        %1414 = vmatprep.subr.mxu0 0.0
        %1415 = vmatpush1.msra.mxu0 0.0
        %1416 = vmatprep.subr.mxu0 0.0
        %1417 = vmatpush1.msra.mxu0 0.0
        %1418 = vmatprep.subr.mxu0 0.0
        %1419 = vmatpush1.msra.mxu0 %v1317
        %1420 = vmatprep.subr.mxu0 0.0
        %1421 = vmatpush1.msra.mxu0 %v1291
        %1422 = vmatprep.subr.mxu0 0.0
        %1423 = vmatpush1.msra.mxu0 %v1288
        %1424 = vmatprep.subr.mxu0 0.0
        %1425 = vmatpush1.msra.mxu0 %v1285
        %1426 = vmatprep.subr.mxu0 0.0
        %1427 = vmatpush1.msra.mxu0 %v1282
        %1428 = vmatprep.subr.mxu0 0.0
        %1429 = vmatpush1.msra.mxu0 %v1279
        %1430 = vmatprep.subr.mxu0 0.0
        %1431 = vmatpush1.msra.mxu0 %v1276
        %1432 = vmatprep.subr.mxu0 0.0
        %1433 = vmatpush1.msra.mxu0 %v1273
        %1434 = vmatprep.subr.mxu0 0.0
        %1435 = vmatpush1.msra.mxu0 %v1270
        %1436 = vmatprep.subr.mxu0 0.0
        %1437 = vmatpush1.msra.mxu0 %v1267
        %1438 = vmatprep.subr.mxu0 0.0
        %1439 = vmatpush1.msra.mxu0 %v1264
        %1440 = vmatprep.subr.mxu0 0.0
        %1441 = vmatpush1.msra.mxu0 %v1261
        %1442 = vmatprep.subr.mxu0 0.0
        %1443 = vmatpush1.msra.mxu0 %v1258
        %1444 = vmatprep.subr.mxu0 0.0
        %1445 = vmatpush1.msra.mxu0 %v1255
        %1446 = vmatprep.subr.mxu0 0.0
        %1447 = vmatpush2.msra.mxu0 0.0
        %1448 = vmatprep.subr.mxu0 0.0
        %1449 = vmatpush2.msra.mxu0 0.0
        %1450 = vmatprep.subr.mxu0 0.0
        %1451 = vmatpush2.msra.mxu0 0.0
        %1452 = vmatprep.subr.mxu0 0.0
        %1453 = vmatpush2.msra.mxu0 0.0
        %1454 = vmatprep.subr.mxu0 0.0
        %1455 = vmatpush2.msra.mxu0 0.0
        %1456 = vmatprep.subr.mxu0 0.0
        %1457 = vmatpush2.msra.mxu0 0.0
        %1458 = vmatprep.subr.mxu0 0.0
        %1459 = vmatpush2.msra.mxu0 0.0
        %1460 = vmatprep.subr.mxu0 0.0
        %1461 = vmatpush2.msra.mxu0 0.0
        %1462 = vmatprep.subr.mxu0 0.0
        %1463 = vmatpush2.msra.mxu0 0.0
        %1464 = vmatprep.subr.mxu0 0.0
        %1465 = vmatpush2.msra.mxu0 0.0
        %1466 = vmatprep.subr.mxu0 0.0
        %1467 = vmatpush2.msra.mxu0 0.0
        %1468 = vmatprep.subr.mxu0 0.0
        %1469 = vmatpush2.msra.mxu0 0.0
        %1470 = vmatprep.subr.mxu0 0.0
        %1471 = vmatpush2.msra.mxu0 0.0
        %1472 = vmatprep.subr.mxu0 0.0
        %1473 = vmatpush2.msra.mxu0 0.0
        %1474 = vmatprep.subr.mxu0 0.0
        %1475 = vmatpush2.msra.mxu0 0.0
        %1476 = vmatprep.subr.mxu0 0.0
        %1477 = vmatpush2.msra.mxu0 0.0
        %1478 = vmatprep.mubr.f32.mxu0 0.0
        %1479 = vmatmul.mubr.f32.gmra.mxu0 %v1296
        %v1480 = vpop.f32.mrf.mxu0
        %v1481 = vadd.f32 0.0, %v1480
        %v1482 = vpop.f32.mrf.mxu0
        %1483 = vmatprep.mubr.f32.mxu0 0.0
        %1484 = vmatmul.mubr.f32.gmra.mxu0 %v1299
        %v1485 = vpop.f32.mrf.mxu0
        %v1486 = vadd.f32 0.0, %v1485
        %v1487 = vpop.f32.mrf.mxu0
        %1488 = vmatprep.mubr.f32.mxu0 0.0
        %1489 = vmatmul.mubr.f32.gmra.mxu0 %v1302
        %v1490 = vpop.f32.mrf.mxu0
        %v1491 = vadd.f32 0.0, %v1490
        %v1492 = vpop.f32.mrf.mxu0
        %1493 = vmatprep.mubr.f32.mxu0 0.0
        %1494 = vmatmul.mubr.f32.gmra.mxu0 %v1305
        %v1495 = vpop.f32.mrf.mxu0
        %v1496 = vadd.f32 0.0, %v1495
        %v1497 = vpop.f32.mrf.mxu0
        %1498 = vmatprep.mubr.f32.mxu0 0.0
        %1499 = vmatmul.mubr.f32.gmra.mxu0 %v1308
        %v1500 = vpop.f32.mrf.mxu0
        %v1501 = vadd.f32 0.0, %v1500
        %v1502 = vpop.f32.mrf.mxu0
        %1503 = vdwg.mxu0
        %v1504 = vadd.f32 %v1129, %v1386
        %v1505 = vadd.f32 %v1131, %v1388
        %v1506 = vadd.f32 %v1224, %v1481
        %v1507 = vadd.f32 %v1135, %v1392
        %v1508 = vadd.f32 %v1137, %v1394
        %v1509 = vadd.f32 %v1229, %v1486
        %v1510 = vadd.f32 %v1141, %v1398
        %v1511 = vadd.f32 %v1143, %v1400
        %v1512 = vadd.f32 %v1234, %v1491
        %v1513 = vadd.f32 %v1147, %v1404
        %v1514 = vadd.f32 %v1149, %v1406
        %v1515 = vadd.f32 %v1239, %v1496
        %v1516 = vadd.f32 %v1153, %v1410
        %v1517 = vadd.f32 %v1155, %v1412
        %v1518 = vadd.f32 %v1244, %v1501
        %v1519 = vld [vmem:[%s2] sm:$0x7]
        %v1521 = vlaneseq
        %v1522 = vshrl.u32 %v1521, 7
        %v1523 = vsub.s32 0, %v1522
        %v1524 = vrot.slane %v1519, %v1523
        %v1525 = vlaneseq
        %v1526 = vshrl.u32 %v1525, 7
        %v1527 = vsub.s32 1, %v1526
        %v1528 = vrot.slane %v1519, %v1527
        %v1529 = vlaneseq
        %v1530 = vshrl.u32 %v1529, 7
        %v1531 = vsub.s32 2, %v1530
        %v1532 = vrot.slane %v1519, %v1531
        %v1536 = vadd.f32 %v1504, %v1524
        %v1537 = vadd.f32 %v1505, %v1528
        %v1538 = vadd.f32 %v1506, %v1532
        %v1539 = vadd.f32 %v1507, %v1524
        %v1540 = vadd.f32 %v1508, %v1528
        %v1541 = vadd.f32 %v1509, %v1532
        %v1542 = vadd.f32 %v1510, %v1524
        %v1543 = vadd.f32 %v1511, %v1528
        %v1544 = vadd.f32 %v1512, %v1532
        %v1545 = vadd.f32 %v1513, %v1524
        %v1546 = vadd.f32 %v1514, %v1528
        %v1547 = vadd.f32 %v1515, %v1532
        %v1548 = vadd.f32 %v1516, %v1524
        %v1549 = vadd.f32 %v1517, %v1528
        %v1550 = vadd.f32 %v1518, %v1532
        %v1551 = vmax.f32 %v1536, 0.0
        %v1552 = vmax.f32 %v1537, 0.0
        %v1553 = vmax.f32 %v1538, 0.0
        %v1554 = vmax.f32 %v1539, 0.0
        %v1555 = vmax.f32 %v1540, 0.0
        %v1556 = vmax.f32 %v1541, 0.0
        %v1557 = vmax.f32 %v1542, 0.0
        %v1558 = vmax.f32 %v1543, 0.0
        %v1559 = vmax.f32 %v1544, 0.0
        %v1560 = vmax.f32 %v1545, 0.0
        %v1561 = vmax.f32 %v1546, 0.0
        %v1562 = vmax.f32 %v1547, 0.0
        %v1563 = vmax.f32 %v1548, 0.0
        %v1564 = vmax.f32 %v1549, 0.0
        %v1565 = vmax.f32 %v1550, 0.0
        %1566 = vst [vmem:[#allocation2] sm:$0xff] %v1551
        %1567 = vst [vmem:[#allocation2 + $0x8] sm:$0xff] %v1552
        %vm1568 = vcmask 130048
        %1569 = vst.msk [vmem:[#allocation2 + $0x10] sm:$0xff] %vm1568, %v1553
        %1570 = vst [vmem:[#allocation2 + $0x18] sm:$0xff] %v1554
        %1571 = vst [vmem:[#allocation2 + $0x20] sm:$0xff] %v1555
        %1572 = vst.msk [vmem:[#allocation2 + $0x28] sm:$0xff] %vm1568, %v1556
        %1573 = vst [vmem:[#allocation2 + $0x30] sm:$0xff] %v1557
        %1574 = vst [vmem:[#allocation2 + $0x38] sm:$0xff] %v1558
        %1575 = vst.msk [vmem:[#allocation2 + $0x40] sm:$0xff] %vm1568, %v1559
        %1576 = vst [vmem:[#allocation2 + $0x48] sm:$0xff] %v1560
        %1577 = vst [vmem:[#allocation2 + $0x50] sm:$0xff] %v1561
        %1578 = vst.msk [vmem:[#allocation2 + $0x58] sm:$0xff] %vm1568, %v1562
        %1579 = vst [vmem:[#allocation2 + $0x60] sm:$0x3] %v1563
        %1580 = vst [vmem:[#allocation2 + $0x68] sm:$0x3] %v1564
        %vm1581 = vcmask 123904
        %1582 = vst.msk [vmem:[#allocation2 + $0x70] sm:$0x3] %vm1581, %v1565
        %v1583 = vld [vmem:[#allocation2] sm:$0xff]
        %v1584 = vld [vmem:[#allocation2 + $0x8] sm:$0xff]
        %v1585 = vld [vmem:[#allocation2 + $0x10] sm:$0xff]
        %v1586 = vld [vmem:[#allocation2 + $0x18] sm:$0xff]
        %v1587 = vld [vmem:[#allocation2 + $0x20] sm:$0xff]
        %v1588 = vld [vmem:[#allocation2 + $0x28] sm:$0xff]
        %v1589 = vld [vmem:[#allocation2 + $0x30] sm:$0xff]
        %v1590 = vld [vmem:[#allocation2 + $0x38] sm:$0xff]
        %v1591 = vld [vmem:[#allocation2 + $0x40] sm:$0xff]
        %v1592 = vld [vmem:[#allocation2 + $0x48] sm:$0xff]
        %v1593 = vld [vmem:[#allocation2 + $0x50] sm:$0xff]
        %v1594 = vld [vmem:[#allocation2 + $0x58] sm:$0xff]
        %v1595 = vld [vmem:[%s3] sm:$0xff]
        %v1596 = vld [vmem:[%s3 + $0x8] sm:$0xff]
        %v1597 = vld [vmem:[%s3 + $0x10] sm:$0xff]
        %v1598 = vld [vmem:[%s3 + $0x18] sm:$0xff]
        %v1599 = vld [vmem:[%s3 + $0x20] sm:$0xff]
        %v1600 = vld [vmem:[%s3 + $0x28] sm:$0xff]
        %v1601 = vld [vmem:[%s3 + $0x30] sm:$0xff]
        %v1602 = vld [vmem:[%s3 + $0x38] sm:$0xff]
        %v1603 = vld [vmem:[%s3 + $0x40] sm:$0xff]
        %v1604 = vld [vmem:[%s3 + $0x48] sm:$0xff]
        %v1605 = vld [vmem:[%s3 + $0x50] sm:$0xff]
        %v1606 = vld [vmem:[%s3 + $0x58] sm:$0xff]
        %v1607 = vld [vmem:[%s3 + $0x60] sm:$0xff]
        %v1608 = vld [vmem:[%s3 + $0x68] sm:$0xff]
        %v1609 = vld [vmem:[%s3 + $0x70] sm:$0xff]
        %v1610 = vld [vmem:[%s3 + $0x78] sm:$0xff]
        %v1611 = vld [vmem:[%s3 + $0x80] sm:$0xff]
        %v1612 = vld [vmem:[%s3 + $0x88] sm:$0xff]
        %v1613 = vld [vmem:[%s3 + $0x90] sm:$0xff]
        %v1614 = vld [vmem:[%s3 + $0x98] sm:$0xff]
        %v1615 = vld [vmem:[%s3 + $0xa0] sm:$0xff]
        %v1616 = vld [vmem:[%s3 + $0xa8] sm:$0xff]
        %v1617 = vld [vmem:[%s3 + $0xb0] sm:$0xff]
        %v1618 = vld [vmem:[%s3 + $0xb8] sm:$0xff]
        %v1619 = vld [vmem:[%s3 + $0xc0] sm:$0xff]
        %v1620 = vld [vmem:[%s3 + $0xc8] sm:$0xff]
        %v1621 = vld [vmem:[%s3 + $0xd0] sm:$0xff]
        %v1622 = vld [vmem:[%s3 + $0xd8] sm:$0xff]
        %v1623 = vld [vmem:[%s3 + $0xe0] sm:$0xff]
        %v1624 = vld [vmem:[%s3 + $0xe8] sm:$0xff]
        %v1625 = vld [vmem:[%s3 + $0xf0] sm:$0xff]
        %v1626 = vld [vmem:[%s3 + $0xf8] sm:$0xff]
        %v1627 = vld [vmem:[%s3 + $0x100] sm:$0xff]
        %v1628 = vld [vmem:[%s3 + $0x108] sm:$0xff]
        %v1629 = vld [vmem:[%s3 + $0x110] sm:$0xff]
        %v1630 = vld [vmem:[%s3 + $0x118] sm:$0xff]
        %v1631 = vld [vmem:[%s3 + $0x120] sm:$0xff]
        %v1632 = vld [vmem:[%s3 + $0x128] sm:$0xff]
        %v1633 = vld [vmem:[%s3 + $0x130] sm:$0xff]
        %v1634 = vld [vmem:[%s3 + $0x138] sm:$0xff]
        %v1635 = vld [vmem:[%s3 + $0x140] sm:$0xff]
        %v1636 = vld [vmem:[%s3 + $0x148] sm:$0xff]
        %v1637 = vld [vmem:[%s3 + $0x150] sm:$0xff]
        %v1638 = vld [vmem:[%s3 + $0x158] sm:$0xff]
        %v1639 = vld [vmem:[%s3 + $0x160] sm:$0xff]
        %v1640 = vld [vmem:[%s3 + $0x168] sm:$0xff]
        %v1641 = vld [vmem:[%s3 + $0x170] sm:$0xff]
        %v1642 = vld [vmem:[%s3 + $0x178] sm:$0xff]
        %v1643 = vld [vmem:[%s3 + $0x180] sm:$0xff]
        %v1644 = vld [vmem:[%s3 + $0x188] sm:$0xff]
        %v1645 = vld [vmem:[%s3 + $0x190] sm:$0xff]
        %v1646 = vld [vmem:[%s3 + $0x198] sm:$0xff]
        %v1647 = vld [vmem:[%s3 + $0x1a0] sm:$0xff]
        %v1648 = vld [vmem:[%s3 + $0x1a8] sm:$0xff]
        %v1649 = vld [vmem:[%s3 + $0x1b0] sm:$0xff]
        %v1650 = vld [vmem:[%s3 + $0x1b8] sm:$0xff]
        %v1651 = vld [vmem:[%s3 + $0x1c0] sm:$0xff]
        %v1652 = vld [vmem:[%s3 + $0x1c8] sm:$0xff]
        %v1653 = vld [vmem:[%s3 + $0x1d0] sm:$0xff]
        %v1654 = vld [vmem:[%s3 + $0x1d8] sm:$0xff]
        %v1655 = vld [vmem:[%s3 + $0x1e0] sm:$0xff]
        %v1656 = vld [vmem:[%s3 + $0x1e8] sm:$0xff]
        %v1657 = vld [vmem:[%s3 + $0x1f0] sm:$0xff]
        %v1658 = vld [vmem:[%s3 + $0x1f8] sm:$0xff]
        %v1659 = vld [vmem:[%s3 + $0x200] sm:$0xff]
        %v1660 = vld [vmem:[%s3 + $0x208] sm:$0xff]
        %v1661 = vld [vmem:[%s3 + $0x210] sm:$0xff]
        %v1662 = vld [vmem:[%s3 + $0x218] sm:$0xff]
        %v1663 = vld [vmem:[#allocation2] sm:$0xfe]
        %v1664 = vld [vmem:[#allocation2 + $0x8] sm:$0xfe]
        %v1665 = vld [vmem:[#allocation2 + $0x10] sm:$0xfe]
        %v1666 = vld [vmem:[#allocation2 + $0x60] sm:$0x1]
        %v1667 = vld [vmem:[#allocation2 + $0x68] sm:$0x1]
        %v1668 = vld [vmem:[#allocation2 + $0x70] sm:$0x1]
        %s1669 = scalar_lea.vmem %s3, 544
        %v1670 = vld [vmem:[%s1669] sm:$0xff]
        %v1671 = vld [vmem:[%s1669 + $0x8] sm:$0xff]
        %v1672 = vld [vmem:[%s1669 + $0x10] sm:$0xff]
        %v1673 = vld [vmem:[%s1669 + $0x18] sm:$0xff]
        %v1674 = vld [vmem:[%s1669 + $0x20] sm:$0xff]
        %v1675 = vld [vmem:[%s1669 + $0x28] sm:$0xff]
        %v1676 = vld [vmem:[%s1669 + $0x30] sm:$0xff]
        %v1677 = vld [vmem:[%s1669 + $0x38] sm:$0xff]
        %v1678 = vld [vmem:[%s1669 + $0x40] sm:$0xff]
        %v1679 = vld [vmem:[%s1669 + $0x48] sm:$0xff]
        %v1680 = vld [vmem:[%s1669 + $0x50] sm:$0xff]
        %v1681 = vld [vmem:[%s1669 + $0x58] sm:$0xff]
        %v1682 = vld [vmem:[%s1669 + $0x60] sm:$0xff]
        %v1683 = vld [vmem:[%s1669 + $0x68] sm:$0xff]
        %v1684 = vld [vmem:[%s1669 + $0x70] sm:$0xff]
        %v1685 = vld [vmem:[%s1669 + $0x78] sm:$0xff]
        %v1686 = vld [vmem:[%s1669 + $0x80] sm:$0xff]
        %v1687 = vld [vmem:[%s1669 + $0x88] sm:$0xff]
        %v1688 = vld [vmem:[%s1669 + $0x90] sm:$0xff]
        %v1689 = vld [vmem:[%s1669 + $0x98] sm:$0xff]
        %v1690 = vld [vmem:[%s1669 + $0xa0] sm:$0xff]
        %v1691 = vld [vmem:[%s1669 + $0xa8] sm:$0xff]
        %v1692 = vld [vmem:[%s1669 + $0xb0] sm:$0xff]
        %v1693 = vld [vmem:[%s1669 + $0xb8] sm:$0xff]
        %v1694 = vld [vmem:[%s1669 + $0xc0] sm:$0xff]
        %v1695 = vld [vmem:[%s1669 + $0xc8] sm:$0xff]
        %v1696 = vld [vmem:[%s1669 + $0xd0] sm:$0xff]
        %v1697 = vld [vmem:[%s1669 + $0xd8] sm:$0xff]
        %v1698 = vld [vmem:[%s1669 + $0xe0] sm:$0xff]
        %v1699 = vld [vmem:[%s1669 + $0xe8] sm:$0xff]
        %v1700 = vld [vmem:[%s1669 + $0xf0] sm:$0xff]
        %v1701 = vld [vmem:[%s1669 + $0xf8] sm:$0xff]
        %v1702 = vld [vmem:[%s1669 + $0x100] sm:$0xff]
        %v1703 = vld [vmem:[%s1669 + $0x108] sm:$0xff]
        %v1704 = vld [vmem:[%s1669 + $0x110] sm:$0xff]
        %v1705 = vld [vmem:[%s1669 + $0x118] sm:$0xff]
        %v1706 = vld [vmem:[%s1669 + $0x120] sm:$0xff]
        %v1707 = vld [vmem:[%s1669 + $0x128] sm:$0xff]
        %v1708 = vld [vmem:[%s1669 + $0x130] sm:$0xff]
        %v1709 = vld [vmem:[%s1669 + $0x138] sm:$0xff]
        %v1710 = vld [vmem:[%s1669 + $0x140] sm:$0xff]
        %v1711 = vld [vmem:[%s1669 + $0x148] sm:$0xff]
        %v1712 = vld [vmem:[%s1669 + $0x150] sm:$0xff]
        %v1713 = vld [vmem:[%s1669 + $0x158] sm:$0xff]
        %v1714 = vld [vmem:[%s1669 + $0x160] sm:$0xff]
        %v1715 = vld [vmem:[%s1669 + $0x168] sm:$0xff]
        %v1716 = vld [vmem:[%s1669 + $0x170] sm:$0xff]
        %v1717 = vld [vmem:[%s1669 + $0x178] sm:$0xff]
        %v1718 = vld [vmem:[%s1669 + $0x180] sm:$0xff]
        %v1719 = vld [vmem:[%s1669 + $0x188] sm:$0xff]
        %v1720 = vld [vmem:[%s1669 + $0x190] sm:$0xff]
        %v1721 = vld [vmem:[%s1669 + $0x198] sm:$0xff]
        %v1722 = vld [vmem:[%s1669 + $0x1a0] sm:$0xff]
        %v1723 = vld [vmem:[%s1669 + $0x1a8] sm:$0xff]
        %v1724 = vld [vmem:[%s1669 + $0x1b0] sm:$0xff]
        %v1725 = vld [vmem:[%s1669 + $0x1b8] sm:$0xff]
        %v1726 = vld [vmem:[%s1669 + $0x1c0] sm:$0xff]
        %v1727 = vld [vmem:[%s1669 + $0x1c8] sm:$0xff]
        %v1728 = vld [vmem:[%s1669 + $0x1d0] sm:$0xff]
        %v1729 = vld [vmem:[%s1669 + $0x1d8] sm:$0xff]
        %v1730 = vld [vmem:[%s1669 + $0x1e0] sm:$0xff]
        %v1731 = vld [vmem:[%s1669 + $0x1e8] sm:$0xff]
        %v1732 = vld [vmem:[%s1669 + $0x1f0] sm:$0xff]
        %v1733 = vld [vmem:[%s1669 + $0x1f8] sm:$0xff]
        %v1734 = vld [vmem:[%s1669 + $0x200] sm:$0xff]
        %v1735 = vld [vmem:[%s1669 + $0x208] sm:$0xff]
        %v1736 = vld [vmem:[%s1669 + $0x210] sm:$0xff]
        %v1737 = vld [vmem:[%s1669 + $0x218] sm:$0xff]
        %vm1753 = vcmask 1046528
        %v1754 = vrot.slane %v1663, 1
        %v1755 = vrot.slane %v1586, 1
        %v1756 = vsel %vm1753, %v1754, %v1755
        %v1757 = vrot.slane %v1664, 1
        %v1758 = vrot.slane %v1587, 1
        %v1759 = vsel %vm1753, %v1757, %v1758
        %v1760 = vrot.slane %v1665, 1
        %v1761 = vrot.slane %v1588, 1
        %v1762 = vsel %vm1753, %v1760, %v1761
        %v1763 = vrot.slane %v1589, 1
        %v1764 = vsel %vm1753, %v1755, %v1763
        %v1765 = vrot.slane %v1590, 1
        %v1766 = vsel %vm1753, %v1758, %v1765
        %v1767 = vrot.slane %v1591, 1
        %v1768 = vsel %vm1753, %v1761, %v1767
        %v1769 = vrot.slane %v1592, 1
        %v1770 = vsel %vm1753, %v1763, %v1769
        %v1771 = vrot.slane %v1593, 1
        %v1772 = vsel %vm1753, %v1765, %v1771
        %v1773 = vrot.slane %v1594, 1
        %v1774 = vsel %vm1753, %v1767, %v1773
        %v1775 = vrot.slane %v1666, 1
        %v1776 = vsel %vm1753, %v1769, %v1775
        %v1777 = vrot.slane %v1667, 1
        %v1778 = vsel %vm1753, %v1771, %v1777
        %v1779 = vrot.slane %v1668, 1
        %v1780 = vsel %vm1753, %v1773, %v1779
        %v1789 = vsel %vm1568, %v1762, 0
        %v1791 = vsel %vm1568, %v1768, 0
        %v1793 = vsel %vm1568, %v1774, 0
        %v1795 = vsel %vm1568, %v1780, 0
        %1797 = vmatprep.subr.mxu0 %v1701
        %1798 = vmatpush1.msra.mxu0 %v1700
        %1799 = vmatprep.subr.mxu0 %v1699
        %1800 = vmatpush1.msra.mxu0 %v1698
        %1801 = vmatprep.subr.mxu0 %v1697
        %1802 = vmatpush1.msra.mxu0 %v1696
        %1803 = vmatprep.subr.mxu0 %v1695
        %1804 = vmatpush1.msra.mxu0 %v1694
        %1805 = vmatprep.subr.mxu0 %v1693
        %1806 = vmatpush1.msra.mxu0 %v1692
        %1807 = vmatprep.subr.mxu0 %v1691
        %1808 = vmatpush1.msra.mxu0 %v1690
        %1809 = vmatprep.subr.mxu0 %v1689
        %1810 = vmatpush1.msra.mxu0 %v1688
        %1811 = vmatprep.subr.mxu0 %v1687
        %1812 = vmatpush1.msra.mxu0 %v1686
        %1813 = vmatprep.subr.mxu0 %v1685
        %1814 = vmatpush1.msra.mxu0 %v1684
        %1815 = vmatprep.subr.mxu0 %v1683
        %1816 = vmatpush1.msra.mxu0 %v1682
        %1817 = vmatprep.subr.mxu0 %v1681
        %1818 = vmatpush1.msra.mxu0 %v1680
        %1819 = vmatprep.subr.mxu0 %v1679
        %1820 = vmatpush1.msra.mxu0 %v1678
        %1821 = vmatprep.subr.mxu0 %v1677
        %1822 = vmatpush1.msra.mxu0 %v1676
        %1823 = vmatprep.subr.mxu0 %v1675
        %1824 = vmatpush1.msra.mxu0 %v1674
        %1825 = vmatprep.subr.mxu0 %v1673
        %1826 = vmatpush1.msra.mxu0 %v1672
        %1827 = vmatprep.subr.mxu0 %v1671
        %1828 = vmatpush1.msra.mxu0 %v1670
        %1829 = vmatprep.subr.mxu0 %v1733
        %1830 = vmatpush2.msra.mxu0 %v1732
        %1831 = vmatprep.subr.mxu0 %v1731
        %1832 = vmatpush2.msra.mxu0 %v1730
        %1833 = vmatprep.subr.mxu0 %v1729
        %1834 = vmatpush2.msra.mxu0 %v1728
        %1835 = vmatprep.subr.mxu0 %v1727
        %1836 = vmatpush2.msra.mxu0 %v1726
        %1837 = vmatprep.subr.mxu0 %v1725
        %1838 = vmatpush2.msra.mxu0 %v1724
        %1839 = vmatprep.subr.mxu0 %v1723
        %1840 = vmatpush2.msra.mxu0 %v1722
        %1841 = vmatprep.subr.mxu0 %v1721
        %1842 = vmatpush2.msra.mxu0 %v1720
        %1843 = vmatprep.subr.mxu0 %v1719
        %1844 = vmatpush2.msra.mxu0 %v1718
        %1845 = vmatprep.subr.mxu0 %v1717
        %1846 = vmatpush2.msra.mxu0 %v1716
        %1847 = vmatprep.subr.mxu0 %v1715
        %1848 = vmatpush2.msra.mxu0 %v1714
        %1849 = vmatprep.subr.mxu0 %v1713
        %1850 = vmatpush2.msra.mxu0 %v1712
        %1851 = vmatprep.subr.mxu0 %v1711
        %1852 = vmatpush2.msra.mxu0 %v1710
        %1853 = vmatprep.subr.mxu0 %v1709
        %1854 = vmatpush2.msra.mxu0 %v1708
        %1855 = vmatprep.subr.mxu0 %v1707
        %1856 = vmatpush2.msra.mxu0 %v1706
        %1857 = vmatprep.subr.mxu0 %v1705
        %1858 = vmatpush2.msra.mxu0 %v1704
        %1859 = vmatprep.subr.mxu0 %v1703
        %1860 = vmatpush2.msra.mxu0 %v1702
        %1861 = vmatprep.mubr.f32.mxu0 %v1759
        %1862 = vmatmul.mubr.f32.gmra.mxu0 %v1756
        %v1863 = vpop.f32.mrf.mxu0
        %v1864 = vadd.f32 0.0, %v1863
        %v1865 = vpop.f32.mrf.mxu0
        %v1866 = vadd.f32 0.0, %v1865
        %1867 = vmatprep.mubr.f32.mxu0 %v1766
        %1868 = vmatmul.mubr.f32.gmra.mxu0 %v1764
        %v1869 = vpop.f32.mrf.mxu0
        %v1870 = vadd.f32 0.0, %v1869
        %v1871 = vpop.f32.mrf.mxu0
        %v1872 = vadd.f32 0.0, %v1871
        %1873 = vmatprep.mubr.f32.mxu0 %v1772
        %1874 = vmatmul.mubr.f32.gmra.mxu0 %v1770
        %v1875 = vpop.f32.mrf.mxu0
        %v1876 = vadd.f32 0.0, %v1875
        %v1877 = vpop.f32.mrf.mxu0
        %v1878 = vadd.f32 0.0, %v1877
        %1879 = vmatprep.mubr.f32.mxu0 %v1778
        %1880 = vmatmul.mubr.f32.gmra.mxu0 %v1776
        %v1881 = vpop.f32.mrf.mxu0
        %v1882 = vadd.f32 0.0, %v1881
        %v1883 = vpop.f32.mrf.mxu0
        %v1884 = vadd.f32 0.0, %v1883
        %1885 = vdwg.mxu0
        %1886 = vmatprep.subr.mxu0 0.0
        %1887 = vmatpush1.msra.mxu0 0.0
        %1888 = vmatprep.subr.mxu0 0.0
        %1889 = vmatpush1.msra.mxu0 0.0
        %1890 = vmatprep.subr.mxu0 0.0
        %1891 = vmatpush1.msra.mxu0 0.0
        %1892 = vmatprep.subr.mxu0 0.0
        %1893 = vmatpush1.msra.mxu0 0.0
        %1894 = vmatprep.subr.mxu0 0.0
        %1895 = vmatpush1.msra.mxu0 0.0
        %1896 = vmatprep.subr.mxu0 0.0
        %1897 = vmatpush1.msra.mxu0 0.0
        %1898 = vmatprep.subr.mxu0 0.0
        %1899 = vmatpush1.msra.mxu0 0.0
        %1900 = vmatprep.subr.mxu0 0.0
        %1901 = vmatpush1.msra.mxu0 0.0
        %1902 = vmatprep.subr.mxu0 0.0
        %1903 = vmatpush1.msra.mxu0 0.0
        %1904 = vmatprep.subr.mxu0 0.0
        %1905 = vmatpush1.msra.mxu0 0.0
        %1906 = vmatprep.subr.mxu0 0.0
        %1907 = vmatpush1.msra.mxu0 0.0
        %1908 = vmatprep.subr.mxu0 0.0
        %1909 = vmatpush1.msra.mxu0 0.0
        %1910 = vmatprep.subr.mxu0 0.0
        %1911 = vmatpush1.msra.mxu0 0.0
        %1912 = vmatprep.subr.mxu0 0.0
        %1913 = vmatpush1.msra.mxu0 0.0
        %1914 = vmatprep.subr.mxu0 %v1737
        %1915 = vmatpush1.msra.mxu0 %v1736
        %1916 = vmatprep.subr.mxu0 %v1735
        %1917 = vmatpush1.msra.mxu0 %v1734
        %1918 = vmatprep.subr.mxu0 0.0
        %1919 = vmatpush2.msra.mxu0 0.0
        %1920 = vmatprep.subr.mxu0 0.0
        %1921 = vmatpush2.msra.mxu0 0.0
        %1922 = vmatprep.subr.mxu0 0.0
        %1923 = vmatpush2.msra.mxu0 0.0
        %1924 = vmatprep.subr.mxu0 0.0
        %1925 = vmatpush2.msra.mxu0 0.0
        %1926 = vmatprep.subr.mxu0 0.0
        %1927 = vmatpush2.msra.mxu0 0.0
        %1928 = vmatprep.subr.mxu0 0.0
        %1929 = vmatpush2.msra.mxu0 0.0
        %1930 = vmatprep.subr.mxu0 0.0
        %1931 = vmatpush2.msra.mxu0 0.0
        %1932 = vmatprep.subr.mxu0 0.0
        %1933 = vmatpush2.msra.mxu0 0.0
        %1934 = vmatprep.subr.mxu0 0.0
        %1935 = vmatpush2.msra.mxu0 0.0
        %1936 = vmatprep.subr.mxu0 0.0
        %1937 = vmatpush2.msra.mxu0 0.0
        %1938 = vmatprep.subr.mxu0 0.0
        %1939 = vmatpush2.msra.mxu0 0.0
        %1940 = vmatprep.subr.mxu0 0.0
        %1941 = vmatpush2.msra.mxu0 0.0
        %1942 = vmatprep.subr.mxu0 0.0
        %1943 = vmatpush2.msra.mxu0 0.0
        %1944 = vmatprep.subr.mxu0 0.0
        %1945 = vmatpush2.msra.mxu0 0.0
        %1946 = vmatprep.subr.mxu0 0.0
        %1947 = vmatpush2.msra.mxu0 0.0
        %1948 = vmatprep.subr.mxu0 0.0
        %1949 = vmatpush2.msra.mxu0 0.0
        %1950 = vmatprep.mubr.f32.mxu0 0.0
        %1951 = vmatmul.mubr.f32.gmra.mxu0 %v1789
        %v1952 = vpop.f32.mrf.mxu0
        %v1953 = vadd.f32 %v1864, %v1952
        %v1954 = vpop.f32.mrf.mxu0
        %v1955 = vadd.f32 %v1866, %v1954
        %1956 = vmatprep.mubr.f32.mxu0 0.0
        %1957 = vmatmul.mubr.f32.gmra.mxu0 %v1791
        %v1958 = vpop.f32.mrf.mxu0
        %v1959 = vadd.f32 %v1870, %v1958
        %v1960 = vpop.f32.mrf.mxu0
        %v1961 = vadd.f32 %v1872, %v1960
        %1962 = vmatprep.mubr.f32.mxu0 0.0
        %1963 = vmatmul.mubr.f32.gmra.mxu0 %v1793
        %v1964 = vpop.f32.mrf.mxu0
        %v1965 = vadd.f32 %v1876, %v1964
        %v1966 = vpop.f32.mrf.mxu0
        %v1967 = vadd.f32 %v1878, %v1966
        %1968 = vmatprep.mubr.f32.mxu0 0.0
        %1969 = vmatmul.mubr.f32.gmra.mxu0 %v1795
        %v1970 = vpop.f32.mrf.mxu0
        %v1971 = vadd.f32 %v1882, %v1970
        %v1972 = vpop.f32.mrf.mxu0
        %v1973 = vadd.f32 %v1884, %v1972
        %1974 = vdwg.mxu0
        %v1976 = vsel %vm1568, %v1585, 0
        %v1978 = vsel %vm1568, %v1588, 0
        %v1980 = vsel %vm1568, %v1591, 0
        %v1982 = vsel %vm1568, %v1594, 0
        %1984 = vmatprep.subr.mxu0 %v1626
        %1985 = vmatpush1.msra.mxu0 %v1625
        %1986 = vmatprep.subr.mxu0 %v1624
        %1987 = vmatpush1.msra.mxu0 %v1623
        %1988 = vmatprep.subr.mxu0 %v1622
        %1989 = vmatpush1.msra.mxu0 %v1621
        %1990 = vmatprep.subr.mxu0 %v1620
        %1991 = vmatpush1.msra.mxu0 %v1619
        %1992 = vmatprep.subr.mxu0 %v1618
        %1993 = vmatpush1.msra.mxu0 %v1617
        %1994 = vmatprep.subr.mxu0 %v1616
        %1995 = vmatpush1.msra.mxu0 %v1615
        %1996 = vmatprep.subr.mxu0 %v1614
        %1997 = vmatpush1.msra.mxu0 %v1613
        %1998 = vmatprep.subr.mxu0 %v1612
        %1999 = vmatpush1.msra.mxu0 %v1611
        %2000 = vmatprep.subr.mxu0 %v1610
        %2001 = vmatpush1.msra.mxu0 %v1609
        %2002 = vmatprep.subr.mxu0 %v1608
        %2003 = vmatpush1.msra.mxu0 %v1607
        %2004 = vmatprep.subr.mxu0 %v1606
        %2005 = vmatpush1.msra.mxu0 %v1605
        %2006 = vmatprep.subr.mxu0 %v1604
        %2007 = vmatpush1.msra.mxu0 %v1603
        %2008 = vmatprep.subr.mxu0 %v1602
        %2009 = vmatpush1.msra.mxu0 %v1601
        %2010 = vmatprep.subr.mxu0 %v1600
        %2011 = vmatpush1.msra.mxu0 %v1599
        %2012 = vmatprep.subr.mxu0 %v1598
        %2013 = vmatpush1.msra.mxu0 %v1597
        %2014 = vmatprep.subr.mxu0 %v1596
        %2015 = vmatpush1.msra.mxu0 %v1595
        %2016 = vmatprep.subr.mxu0 %v1658
        %2017 = vmatpush2.msra.mxu0 %v1657
        %2018 = vmatprep.subr.mxu0 %v1656
        %2019 = vmatpush2.msra.mxu0 %v1655
        %2020 = vmatprep.subr.mxu0 %v1654
        %2021 = vmatpush2.msra.mxu0 %v1653
        %2022 = vmatprep.subr.mxu0 %v1652
        %2023 = vmatpush2.msra.mxu0 %v1651
        %2024 = vmatprep.subr.mxu0 %v1650
        %2025 = vmatpush2.msra.mxu0 %v1649
        %2026 = vmatprep.subr.mxu0 %v1648
        %2027 = vmatpush2.msra.mxu0 %v1647
        %2028 = vmatprep.subr.mxu0 %v1646
        %2029 = vmatpush2.msra.mxu0 %v1645
        %2030 = vmatprep.subr.mxu0 %v1644
        %2031 = vmatpush2.msra.mxu0 %v1643
        %2032 = vmatprep.subr.mxu0 %v1642
        %2033 = vmatpush2.msra.mxu0 %v1641
        %2034 = vmatprep.subr.mxu0 %v1640
        %2035 = vmatpush2.msra.mxu0 %v1639
        %2036 = vmatprep.subr.mxu0 %v1638
        %2037 = vmatpush2.msra.mxu0 %v1637
        %2038 = vmatprep.subr.mxu0 %v1636
        %2039 = vmatpush2.msra.mxu0 %v1635
        %2040 = vmatprep.subr.mxu0 %v1634
        %2041 = vmatpush2.msra.mxu0 %v1633
        %2042 = vmatprep.subr.mxu0 %v1632
        %2043 = vmatpush2.msra.mxu0 %v1631
        %2044 = vmatprep.subr.mxu0 %v1630
        %2045 = vmatpush2.msra.mxu0 %v1629
        %2046 = vmatprep.subr.mxu0 %v1628
        %2047 = vmatpush2.msra.mxu0 %v1627
        %2048 = vmatprep.mubr.f32.mxu0 %v1584
        %2049 = vmatmul.mubr.f32.gmra.mxu0 %v1583
        %v2050 = vpop.f32.mrf.mxu0
        %v2051 = vadd.f32 %v1953, %v2050
        %v2052 = vpop.f32.mrf.mxu0
        %v2053 = vadd.f32 %v1955, %v2052
        %2054 = vmatprep.mubr.f32.mxu0 %v1587
        %2055 = vmatmul.mubr.f32.gmra.mxu0 %v1586
        %v2056 = vpop.f32.mrf.mxu0
        %v2057 = vadd.f32 %v1959, %v2056
        %v2058 = vpop.f32.mrf.mxu0
        %v2059 = vadd.f32 %v1961, %v2058
        %2060 = vmatprep.mubr.f32.mxu0 %v1590
        %2061 = vmatmul.mubr.f32.gmra.mxu0 %v1589
        %v2062 = vpop.f32.mrf.mxu0
        %v2063 = vadd.f32 %v1965, %v2062
        %v2064 = vpop.f32.mrf.mxu0
        %v2065 = vadd.f32 %v1967, %v2064
        %2066 = vmatprep.mubr.f32.mxu0 %v1593
        %2067 = vmatmul.mubr.f32.gmra.mxu0 %v1592
        %v2068 = vpop.f32.mrf.mxu0
        %v2069 = vadd.f32 %v1971, %v2068
        %v2070 = vpop.f32.mrf.mxu0
        %v2071 = vadd.f32 %v1973, %v2070
        %2072 = vdwg.mxu0
        %2073 = vmatprep.subr.mxu0 0.0
        %2074 = vmatpush1.msra.mxu0 0.0
        %2075 = vmatprep.subr.mxu0 0.0
        %2076 = vmatpush1.msra.mxu0 0.0
        %2077 = vmatprep.subr.mxu0 0.0
        %2078 = vmatpush1.msra.mxu0 0.0
        %2079 = vmatprep.subr.mxu0 0.0
        %2080 = vmatpush1.msra.mxu0 0.0
        %2081 = vmatprep.subr.mxu0 0.0
        %2082 = vmatpush1.msra.mxu0 0.0
        %2083 = vmatprep.subr.mxu0 0.0
        %2084 = vmatpush1.msra.mxu0 0.0
        %2085 = vmatprep.subr.mxu0 0.0
        %2086 = vmatpush1.msra.mxu0 0.0
        %2087 = vmatprep.subr.mxu0 0.0
        %2088 = vmatpush1.msra.mxu0 0.0
        %2089 = vmatprep.subr.mxu0 0.0
        %2090 = vmatpush1.msra.mxu0 0.0
        %2091 = vmatprep.subr.mxu0 0.0
        %2092 = vmatpush1.msra.mxu0 0.0
        %2093 = vmatprep.subr.mxu0 0.0
        %2094 = vmatpush1.msra.mxu0 0.0
        %2095 = vmatprep.subr.mxu0 0.0
        %2096 = vmatpush1.msra.mxu0 0.0
        %2097 = vmatprep.subr.mxu0 0.0
        %2098 = vmatpush1.msra.mxu0 0.0
        %2099 = vmatprep.subr.mxu0 0.0
        %2100 = vmatpush1.msra.mxu0 0.0
        %2101 = vmatprep.subr.mxu0 %v1662
        %2102 = vmatpush1.msra.mxu0 %v1661
        %2103 = vmatprep.subr.mxu0 %v1660
        %2104 = vmatpush1.msra.mxu0 %v1659
        %2105 = vmatprep.subr.mxu0 0.0
        %2106 = vmatpush2.msra.mxu0 0.0
        %2107 = vmatprep.subr.mxu0 0.0
        %2108 = vmatpush2.msra.mxu0 0.0
        %2109 = vmatprep.subr.mxu0 0.0
        %2110 = vmatpush2.msra.mxu0 0.0
        %2111 = vmatprep.subr.mxu0 0.0
        %2112 = vmatpush2.msra.mxu0 0.0
        %2113 = vmatprep.subr.mxu0 0.0
        %2114 = vmatpush2.msra.mxu0 0.0
        %2115 = vmatprep.subr.mxu0 0.0
        %2116 = vmatpush2.msra.mxu0 0.0
        %2117 = vmatprep.subr.mxu0 0.0
        %2118 = vmatpush2.msra.mxu0 0.0
        %2119 = vmatprep.subr.mxu0 0.0
        %2120 = vmatpush2.msra.mxu0 0.0
        %2121 = vmatprep.subr.mxu0 0.0
        %2122 = vmatpush2.msra.mxu0 0.0
        %2123 = vmatprep.subr.mxu0 0.0
        %2124 = vmatpush2.msra.mxu0 0.0
        %2125 = vmatprep.subr.mxu0 0.0
        %2126 = vmatpush2.msra.mxu0 0.0
        %2127 = vmatprep.subr.mxu0 0.0
        %2128 = vmatpush2.msra.mxu0 0.0
        %2129 = vmatprep.subr.mxu0 0.0
        %2130 = vmatpush2.msra.mxu0 0.0
        %2131 = vmatprep.subr.mxu0 0.0
        %2132 = vmatpush2.msra.mxu0 0.0
        %2133 = vmatprep.subr.mxu0 0.0
        %2134 = vmatpush2.msra.mxu0 0.0
        %2135 = vmatprep.subr.mxu0 0.0
        %2136 = vmatpush2.msra.mxu0 0.0
        %2137 = vmatprep.mubr.f32.mxu0 0.0
        %2138 = vmatmul.mubr.f32.gmra.mxu0 %v1976
        %v2139 = vpop.f32.mrf.mxu0
        %v2140 = vadd.f32 %v2051, %v2139
        %v2141 = vpop.f32.mrf.mxu0
        %v2142 = vadd.f32 %v2053, %v2141
        %2143 = vmatprep.mubr.f32.mxu0 0.0
        %2144 = vmatmul.mubr.f32.gmra.mxu0 %v1978
        %v2145 = vpop.f32.mrf.mxu0
        %v2146 = vadd.f32 %v2057, %v2145
        %v2147 = vpop.f32.mrf.mxu0
        %v2148 = vadd.f32 %v2059, %v2147
        %2149 = vmatprep.mubr.f32.mxu0 0.0
        %2150 = vmatmul.mubr.f32.gmra.mxu0 %v1980
        %v2151 = vpop.f32.mrf.mxu0
        %v2152 = vadd.f32 %v2063, %v2151
        %v2153 = vpop.f32.mrf.mxu0
        %v2154 = vadd.f32 %v2065, %v2153
        %2155 = vmatprep.mubr.f32.mxu0 0.0
        %2156 = vmatmul.mubr.f32.gmra.mxu0 %v1982
        %v2157 = vpop.f32.mrf.mxu0
        %v2158 = vadd.f32 %v2069, %v2157
        %v2159 = vpop.f32.mrf.mxu0
        %v2160 = vadd.f32 %v2071, %v2159
        %2161 = vdwg.mxu0
        %v2162 = vld [vmem:[#allocation2] sm:$0xfc]
        %v2163 = vld [vmem:[#allocation2 + $0x8] sm:$0xfc]
        %v2164 = vld [vmem:[#allocation2 + $0x10] sm:$0xfc]
        %v2165 = vld [vmem:[#allocation2 + $0x60] sm:$0x3]
        %v2166 = vld [vmem:[#allocation2 + $0x68] sm:$0x3]
        %v2167 = vld [vmem:[#allocation2 + $0x70] sm:$0x3]
        %s2168 = scalar_lea.vmem %s3, 1088
        %v2169 = vld [vmem:[%s2168] sm:$0xff]
        %v2170 = vld [vmem:[%s2168 + $0x8] sm:$0xff]
        %v2171 = vld [vmem:[%s2168 + $0x10] sm:$0xff]
        %v2172 = vld [vmem:[%s2168 + $0x18] sm:$0xff]
        %v2173 = vld [vmem:[%s2168 + $0x20] sm:$0xff]
        %v2174 = vld [vmem:[%s2168 + $0x28] sm:$0xff]
        %v2175 = vld [vmem:[%s2168 + $0x30] sm:$0xff]
        %v2176 = vld [vmem:[%s2168 + $0x38] sm:$0xff]
        %v2177 = vld [vmem:[%s2168 + $0x40] sm:$0xff]
        %v2178 = vld [vmem:[%s2168 + $0x48] sm:$0xff]
        %v2179 = vld [vmem:[%s2168 + $0x50] sm:$0xff]
        %v2180 = vld [vmem:[%s2168 + $0x58] sm:$0xff]
        %v2181 = vld [vmem:[%s2168 + $0x60] sm:$0xff]
        %v2182 = vld [vmem:[%s2168 + $0x68] sm:$0xff]
        %v2183 = vld [vmem:[%s2168 + $0x70] sm:$0xff]
        %v2184 = vld [vmem:[%s2168 + $0x78] sm:$0xff]
        %v2185 = vld [vmem:[%s2168 + $0x80] sm:$0xff]
        %v2186 = vld [vmem:[%s2168 + $0x88] sm:$0xff]
        %v2187 = vld [vmem:[%s2168 + $0x90] sm:$0xff]
        %v2188 = vld [vmem:[%s2168 + $0x98] sm:$0xff]
        %v2189 = vld [vmem:[%s2168 + $0xa0] sm:$0xff]
        %v2190 = vld [vmem:[%s2168 + $0xa8] sm:$0xff]
        %v2191 = vld [vmem:[%s2168 + $0xb0] sm:$0xff]
        %v2192 = vld [vmem:[%s2168 + $0xb8] sm:$0xff]
        %v2193 = vld [vmem:[%s2168 + $0xc0] sm:$0xff]
        %v2194 = vld [vmem:[%s2168 + $0xc8] sm:$0xff]
        %v2195 = vld [vmem:[%s2168 + $0xd0] sm:$0xff]
        %v2196 = vld [vmem:[%s2168 + $0xd8] sm:$0xff]
        %v2197 = vld [vmem:[%s2168 + $0xe0] sm:$0xff]
        %v2198 = vld [vmem:[%s2168 + $0xe8] sm:$0xff]
        %v2199 = vld [vmem:[%s2168 + $0xf0] sm:$0xff]
        %v2200 = vld [vmem:[%s2168 + $0xf8] sm:$0xff]
        %v2201 = vld [vmem:[%s2168 + $0x100] sm:$0xff]
        %v2202 = vld [vmem:[%s2168 + $0x108] sm:$0xff]
        %v2203 = vld [vmem:[%s2168 + $0x110] sm:$0xff]
        %v2204 = vld [vmem:[%s2168 + $0x118] sm:$0xff]
        %v2205 = vld [vmem:[%s2168 + $0x120] sm:$0xff]
        %v2206 = vld [vmem:[%s2168 + $0x128] sm:$0xff]
        %v2207 = vld [vmem:[%s2168 + $0x130] sm:$0xff]
        %v2208 = vld [vmem:[%s2168 + $0x138] sm:$0xff]
        %v2209 = vld [vmem:[%s2168 + $0x140] sm:$0xff]
        %v2210 = vld [vmem:[%s2168 + $0x148] sm:$0xff]
        %v2211 = vld [vmem:[%s2168 + $0x150] sm:$0xff]
        %v2212 = vld [vmem:[%s2168 + $0x158] sm:$0xff]
        %v2213 = vld [vmem:[%s2168 + $0x160] sm:$0xff]
        %v2214 = vld [vmem:[%s2168 + $0x168] sm:$0xff]
        %v2215 = vld [vmem:[%s2168 + $0x170] sm:$0xff]
        %v2216 = vld [vmem:[%s2168 + $0x178] sm:$0xff]
        %v2217 = vld [vmem:[%s2168 + $0x180] sm:$0xff]
        %v2218 = vld [vmem:[%s2168 + $0x188] sm:$0xff]
        %v2219 = vld [vmem:[%s2168 + $0x190] sm:$0xff]
        %v2220 = vld [vmem:[%s2168 + $0x198] sm:$0xff]
        %v2221 = vld [vmem:[%s2168 + $0x1a0] sm:$0xff]
        %v2222 = vld [vmem:[%s2168 + $0x1a8] sm:$0xff]
        %v2223 = vld [vmem:[%s2168 + $0x1b0] sm:$0xff]
        %v2224 = vld [vmem:[%s2168 + $0x1b8] sm:$0xff]
        %v2225 = vld [vmem:[%s2168 + $0x1c0] sm:$0xff]
        %v2226 = vld [vmem:[%s2168 + $0x1c8] sm:$0xff]
        %v2227 = vld [vmem:[%s2168 + $0x1d0] sm:$0xff]
        %v2228 = vld [vmem:[%s2168 + $0x1d8] sm:$0xff]
        %v2229 = vld [vmem:[%s2168 + $0x1e0] sm:$0xff]
        %v2230 = vld [vmem:[%s2168 + $0x1e8] sm:$0xff]
        %v2231 = vld [vmem:[%s2168 + $0x1f0] sm:$0xff]
        %v2232 = vld [vmem:[%s2168 + $0x1f8] sm:$0xff]
        %v2233 = vld [vmem:[%s2168 + $0x200] sm:$0xff]
        %v2234 = vld [vmem:[%s2168 + $0x208] sm:$0xff]
        %v2235 = vld [vmem:[%s2168 + $0x210] sm:$0xff]
        %v2236 = vld [vmem:[%s2168 + $0x218] sm:$0xff]
        %vm2243 = vcmask 1045504
        %v2244 = vrot.slane %v2162, 2
        %v2245 = vrot.slane %v1586, 2
        %v2246 = vsel %vm2243, %v2244, %v2245
        %v2247 = vrot.slane %v2163, 2
        %v2248 = vrot.slane %v1587, 2
        %v2249 = vsel %vm2243, %v2247, %v2248
        %v2250 = vrot.slane %v2164, 2
        %v2251 = vrot.slane %v1588, 2
        %v2252 = vsel %vm2243, %v2250, %v2251
        %v2253 = vrot.slane %v1589, 2
        %v2254 = vsel %vm2243, %v2245, %v2253
        %v2255 = vrot.slane %v1590, 2
        %v2256 = vsel %vm2243, %v2248, %v2255
        %v2257 = vrot.slane %v1591, 2
        %v2258 = vsel %vm2243, %v2251, %v2257
        %v2259 = vrot.slane %v1592, 2
        %v2260 = vsel %vm2243, %v2253, %v2259
        %v2261 = vrot.slane %v1593, 2
        %v2262 = vsel %vm2243, %v2255, %v2261
        %v2263 = vrot.slane %v1594, 2
        %v2264 = vsel %vm2243, %v2257, %v2263
        %v2265 = vrot.slane %v2165, 2
        %v2266 = vsel %vm2243, %v2259, %v2265
        %v2267 = vrot.slane %v2166, 2
        %v2268 = vsel %vm2243, %v2261, %v2267
        %v2269 = vrot.slane %v2167, 2
        %v2270 = vsel %vm2243, %v2263, %v2269
        %v2279 = vsel %vm1568, %v2252, 0
        %v2281 = vsel %vm1568, %v2258, 0
        %v2283 = vsel %vm1568, %v2264, 0
        %v2285 = vsel %vm1568, %v2270, 0
        %2287 = vmatprep.subr.mxu0 %v2200
        %2288 = vmatpush1.msra.mxu0 %v2199
        %2289 = vmatprep.subr.mxu0 %v2198
        %2290 = vmatpush1.msra.mxu0 %v2197
        %2291 = vmatprep.subr.mxu0 %v2196
        %2292 = vmatpush1.msra.mxu0 %v2195
        %2293 = vmatprep.subr.mxu0 %v2194
        %2294 = vmatpush1.msra.mxu0 %v2193
        %2295 = vmatprep.subr.mxu0 %v2192
        %2296 = vmatpush1.msra.mxu0 %v2191
        %2297 = vmatprep.subr.mxu0 %v2190
        %2298 = vmatpush1.msra.mxu0 %v2189
        %2299 = vmatprep.subr.mxu0 %v2188
        %2300 = vmatpush1.msra.mxu0 %v2187
        %2301 = vmatprep.subr.mxu0 %v2186
        %2302 = vmatpush1.msra.mxu0 %v2185
        %2303 = vmatprep.subr.mxu0 %v2184
        %2304 = vmatpush1.msra.mxu0 %v2183
        %2305 = vmatprep.subr.mxu0 %v2182
        %2306 = vmatpush1.msra.mxu0 %v2181
        %2307 = vmatprep.subr.mxu0 %v2180
        %2308 = vmatpush1.msra.mxu0 %v2179
        %2309 = vmatprep.subr.mxu0 %v2178
        %2310 = vmatpush1.msra.mxu0 %v2177
        %2311 = vmatprep.subr.mxu0 %v2176
        %2312 = vmatpush1.msra.mxu0 %v2175
        %2313 = vmatprep.subr.mxu0 %v2174
        %2314 = vmatpush1.msra.mxu0 %v2173
        %2315 = vmatprep.subr.mxu0 %v2172
        %2316 = vmatpush1.msra.mxu0 %v2171
        %2317 = vmatprep.subr.mxu0 %v2170
        %2318 = vmatpush1.msra.mxu0 %v2169
        %2319 = vmatprep.subr.mxu0 %v2232
        %2320 = vmatpush2.msra.mxu0 %v2231
        %2321 = vmatprep.subr.mxu0 %v2230
        %2322 = vmatpush2.msra.mxu0 %v2229
        %2323 = vmatprep.subr.mxu0 %v2228
        %2324 = vmatpush2.msra.mxu0 %v2227
        %2325 = vmatprep.subr.mxu0 %v2226
        %2326 = vmatpush2.msra.mxu0 %v2225
        %2327 = vmatprep.subr.mxu0 %v2224
        %2328 = vmatpush2.msra.mxu0 %v2223
        %2329 = vmatprep.subr.mxu0 %v2222
        %2330 = vmatpush2.msra.mxu0 %v2221
        %2331 = vmatprep.subr.mxu0 %v2220
        %2332 = vmatpush2.msra.mxu0 %v2219
        %2333 = vmatprep.subr.mxu0 %v2218
        %2334 = vmatpush2.msra.mxu0 %v2217
        %2335 = vmatprep.subr.mxu0 %v2216
        %2336 = vmatpush2.msra.mxu0 %v2215
        %2337 = vmatprep.subr.mxu0 %v2214
        %2338 = vmatpush2.msra.mxu0 %v2213
        %2339 = vmatprep.subr.mxu0 %v2212
        %2340 = vmatpush2.msra.mxu0 %v2211
        %2341 = vmatprep.subr.mxu0 %v2210
        %2342 = vmatpush2.msra.mxu0 %v2209
        %2343 = vmatprep.subr.mxu0 %v2208
        %2344 = vmatpush2.msra.mxu0 %v2207
        %2345 = vmatprep.subr.mxu0 %v2206
        %2346 = vmatpush2.msra.mxu0 %v2205
        %2347 = vmatprep.subr.mxu0 %v2204
        %2348 = vmatpush2.msra.mxu0 %v2203
        %2349 = vmatprep.subr.mxu0 %v2202
        %2350 = vmatpush2.msra.mxu0 %v2201
        %2351 = vmatprep.mubr.f32.mxu0 %v2249
        %2352 = vmatmul.mubr.f32.gmra.mxu0 %v2246
        %v2353 = vpop.f32.mrf.mxu0
        %v2354 = vadd.f32 0.0, %v2353
        %v2355 = vpop.f32.mrf.mxu0
        %v2356 = vadd.f32 0.0, %v2355
        %2357 = vmatprep.mubr.f32.mxu0 %v2256
        %2358 = vmatmul.mubr.f32.gmra.mxu0 %v2254
        %v2359 = vpop.f32.mrf.mxu0
        %v2360 = vadd.f32 0.0, %v2359
        %v2361 = vpop.f32.mrf.mxu0
        %v2362 = vadd.f32 0.0, %v2361
        %2363 = vmatprep.mubr.f32.mxu0 %v2262
        %2364 = vmatmul.mubr.f32.gmra.mxu0 %v2260
        %v2365 = vpop.f32.mrf.mxu0
        %v2366 = vadd.f32 0.0, %v2365
        %v2367 = vpop.f32.mrf.mxu0
        %v2368 = vadd.f32 0.0, %v2367
        %2369 = vmatprep.mubr.f32.mxu0 %v2268
        %2370 = vmatmul.mubr.f32.gmra.mxu0 %v2266
        %v2371 = vpop.f32.mrf.mxu0
        %v2372 = vadd.f32 0.0, %v2371
        %v2373 = vpop.f32.mrf.mxu0
        %v2374 = vadd.f32 0.0, %v2373
        %2375 = vdwg.mxu0
        %2376 = vmatprep.subr.mxu0 0.0
        %2377 = vmatpush1.msra.mxu0 0.0
        %2378 = vmatprep.subr.mxu0 0.0
        %2379 = vmatpush1.msra.mxu0 0.0
        %2380 = vmatprep.subr.mxu0 0.0
        %2381 = vmatpush1.msra.mxu0 0.0
        %2382 = vmatprep.subr.mxu0 0.0
        %2383 = vmatpush1.msra.mxu0 0.0
        %2384 = vmatprep.subr.mxu0 0.0
        %2385 = vmatpush1.msra.mxu0 0.0
        %2386 = vmatprep.subr.mxu0 0.0
        %2387 = vmatpush1.msra.mxu0 0.0
        %2388 = vmatprep.subr.mxu0 0.0
        %2389 = vmatpush1.msra.mxu0 0.0
        %2390 = vmatprep.subr.mxu0 0.0
        %2391 = vmatpush1.msra.mxu0 0.0
        %2392 = vmatprep.subr.mxu0 0.0
        %2393 = vmatpush1.msra.mxu0 0.0
        %2394 = vmatprep.subr.mxu0 0.0
        %2395 = vmatpush1.msra.mxu0 0.0
        %2396 = vmatprep.subr.mxu0 0.0
        %2397 = vmatpush1.msra.mxu0 0.0
        %2398 = vmatprep.subr.mxu0 0.0
        %2399 = vmatpush1.msra.mxu0 0.0
        %2400 = vmatprep.subr.mxu0 0.0
        %2401 = vmatpush1.msra.mxu0 0.0
        %2402 = vmatprep.subr.mxu0 0.0
        %2403 = vmatpush1.msra.mxu0 0.0
        %2404 = vmatprep.subr.mxu0 %v2236
        %2405 = vmatpush1.msra.mxu0 %v2235
        %2406 = vmatprep.subr.mxu0 %v2234
        %2407 = vmatpush1.msra.mxu0 %v2233
        %2408 = vmatprep.subr.mxu0 0.0
        %2409 = vmatpush2.msra.mxu0 0.0
        %2410 = vmatprep.subr.mxu0 0.0
        %2411 = vmatpush2.msra.mxu0 0.0
        %2412 = vmatprep.subr.mxu0 0.0
        %2413 = vmatpush2.msra.mxu0 0.0
        %2414 = vmatprep.subr.mxu0 0.0
        %2415 = vmatpush2.msra.mxu0 0.0
        %2416 = vmatprep.subr.mxu0 0.0
        %2417 = vmatpush2.msra.mxu0 0.0
        %2418 = vmatprep.subr.mxu0 0.0
        %2419 = vmatpush2.msra.mxu0 0.0
        %2420 = vmatprep.subr.mxu0 0.0
        %2421 = vmatpush2.msra.mxu0 0.0
        %2422 = vmatprep.subr.mxu0 0.0
        %2423 = vmatpush2.msra.mxu0 0.0
        %2424 = vmatprep.subr.mxu0 0.0
        %2425 = vmatpush2.msra.mxu0 0.0
        %2426 = vmatprep.subr.mxu0 0.0
        %2427 = vmatpush2.msra.mxu0 0.0
        %2428 = vmatprep.subr.mxu0 0.0
        %2429 = vmatpush2.msra.mxu0 0.0
        %2430 = vmatprep.subr.mxu0 0.0
        %2431 = vmatpush2.msra.mxu0 0.0
        %2432 = vmatprep.subr.mxu0 0.0
        %2433 = vmatpush2.msra.mxu0 0.0
        %2434 = vmatprep.subr.mxu0 0.0
        %2435 = vmatpush2.msra.mxu0 0.0
        %2436 = vmatprep.subr.mxu0 0.0
        %2437 = vmatpush2.msra.mxu0 0.0
        %2438 = vmatprep.subr.mxu0 0.0
        %2439 = vmatpush2.msra.mxu0 0.0
        %2440 = vmatprep.mubr.f32.mxu0 0.0
        %2441 = vmatmul.mubr.f32.gmra.mxu0 %v2279
        %v2442 = vpop.f32.mrf.mxu0
        %v2443 = vadd.f32 %v2354, %v2442
        %v2444 = vpop.f32.mrf.mxu0
        %v2445 = vadd.f32 %v2356, %v2444
        %2446 = vmatprep.mubr.f32.mxu0 0.0
        %2447 = vmatmul.mubr.f32.gmra.mxu0 %v2281
        %v2448 = vpop.f32.mrf.mxu0
        %v2449 = vadd.f32 %v2360, %v2448
        %v2450 = vpop.f32.mrf.mxu0
        %v2451 = vadd.f32 %v2362, %v2450
        %2452 = vmatprep.mubr.f32.mxu0 0.0
        %2453 = vmatmul.mubr.f32.gmra.mxu0 %v2283
        %v2454 = vpop.f32.mrf.mxu0
        %v2455 = vadd.f32 %v2366, %v2454
        %v2456 = vpop.f32.mrf.mxu0
        %v2457 = vadd.f32 %v2368, %v2456
        %2458 = vmatprep.mubr.f32.mxu0 0.0
        %2459 = vmatmul.mubr.f32.gmra.mxu0 %v2285
        %v2460 = vpop.f32.mrf.mxu0
        %v2461 = vadd.f32 %v2372, %v2460
        %v2462 = vpop.f32.mrf.mxu0
        %v2463 = vadd.f32 %v2374, %v2462
        %2464 = vdwg.mxu0
        %v2465 = vadd.f32 %v2140, %v2443
        %v2466 = vadd.f32 %v2142, %v2445
        %v2467 = vadd.f32 %v2146, %v2449
        %v2468 = vadd.f32 %v2148, %v2451
        %v2469 = vadd.f32 %v2152, %v2455
        %v2470 = vadd.f32 %v2154, %v2457
        %v2471 = vadd.f32 %v2158, %v2461
        %v2472 = vadd.f32 %v2160, %v2463
        %v2473 = vld [vmem:[%s4] sm:$0x3]
        %v2475 = vlaneseq
        %v2476 = vshrl.u32 %v2475, 7
        %v2477 = vsub.s32 0, %v2476
        %v2478 = vrot.slane %v2473, %v2477
        %v2479 = vlaneseq
        %v2480 = vshrl.u32 %v2479, 7
        %v2481 = vsub.s32 1, %v2480
        %v2482 = vrot.slane %v2473, %v2481
        %v2485 = vadd.f32 %v2465, %v2478
        %v2486 = vadd.f32 %v2466, %v2482
        %v2487 = vadd.f32 %v2467, %v2478
        %v2488 = vadd.f32 %v2468, %v2482
        %v2489 = vadd.f32 %v2469, %v2478
        %v2490 = vadd.f32 %v2470, %v2482
        %v2491 = vadd.f32 %v2471, %v2478
        %v2492 = vadd.f32 %v2472, %v2482
        %2493 = vst [vmem:[%s707] sm:$0xff] %v2485
        %2494 = vst [vmem:[%s707 + $0x8] sm:$0xff] %v2486
        %2495 = vst [vmem:[%s707 + $0x10] sm:$0xff] %v2487
        %2496 = vst [vmem:[%s707 + $0x18] sm:$0xff] %v2488
        %2497 = vst [vmem:[%s707 + $0x20] sm:$0xff] %v2489
        %2498 = vst [vmem:[%s707 + $0x28] sm:$0xff] %v2490
        %2499 = vst [vmem:[%s707 + $0x30] sm:$0xff] %v2491
        %2500 = vst [vmem:[%s707 + $0x38] sm:$0xff] %v2492
        %v2501 = vld [vmem:[%s707] sm:$0xff]
        %v2502 = vld [vmem:[%s707 + $0x8] sm:$0xff]
        %v2503 = vld [vmem:[%s707 + $0x10] sm:$0xff]
        %v2504 = vld [vmem:[%s707 + $0x18] sm:$0xff]
        %v2505 = vld [vmem:[%s707 + $0x20] sm:$0xff]
        %v2506 = vld [vmem:[%s707 + $0x28] sm:$0xff]
        %v2507 = vld [vmem:[%s707 + $0x30] sm:$0xff]
        %v2508 = vld [vmem:[%s707 + $0x38] sm:$0xff]
        %v2509 = vld [vmem:[%s5] sm:$0xff]
        %v2510 = vld [vmem:[%s5 + $0x8] sm:$0xff]
        %vm2511 = vcmask 261120
        %v2513 = vsel %vm2511, %v2509, 0
        %v2516 = vsel %vm2511, %v2510, 0
        %2518 = vmatprep.subr.mxu0 0.0
        %2519 = vmatpush1.msra.mxu0 0.0
        %2520 = vmatprep.subr.mxu0 0.0
        %2521 = vmatpush1.msra.mxu0 0.0
        %2522 = vmatprep.subr.mxu0 0.0
        %2523 = vmatpush1.msra.mxu0 0.0
        %2524 = vmatprep.subr.mxu0 0.0
        %2525 = vmatpush1.msra.mxu0 0.0
        %2526 = vmatprep.subr.mxu0 0.0
        %2527 = vmatpush1.msra.mxu0 0.0
        %2528 = vmatprep.subr.mxu0 0.0
        %2529 = vmatpush1.msra.mxu0 0.0
        %2530 = vmatprep.subr.mxu0 0.0
        %2531 = vmatpush1.msra.mxu0 0.0
        %2532 = vmatprep.subr.mxu0 0.0
        %2533 = vmatpush1.msra.mxu0 0.0
        %2534 = vmatprep.subr.mxu0 0.0
        %2535 = vmatpush1.msra.mxu0 0.0
        %2536 = vmatprep.subr.mxu0 0.0
        %2537 = vmatpush1.msra.mxu0 0.0
        %2538 = vmatprep.subr.mxu0 0.0
        %2539 = vmatpush1.msra.mxu0 0.0
        %2540 = vmatprep.subr.mxu0 0.0
        %2541 = vmatpush1.msra.mxu0 0.0
        %2542 = vmatprep.subr.mxu0 %v2508
        %2543 = vmatpush1.msra.mxu0 %v2507
        %2544 = vmatprep.subr.mxu0 %v2506
        %2545 = vmatpush1.msra.mxu0 %v2505
        %2546 = vmatprep.subr.mxu0 %v2504
        %2547 = vmatpush1.msra.mxu0 %v2503
        %2548 = vmatprep.subr.mxu0 %v2502
        %2549 = vmatpush1.msra.mxu0 %v2501
        %2550 = vmatprep.subr.mxu0 0.0
        %2551 = vmatpush2.msra.mxu0 0.0
        %2552 = vmatprep.subr.mxu0 0.0
        %2553 = vmatpush2.msra.mxu0 0.0
        %2554 = vmatprep.subr.mxu0 0.0
        %2555 = vmatpush2.msra.mxu0 0.0
        %2556 = vmatprep.subr.mxu0 0.0
        %2557 = vmatpush2.msra.mxu0 0.0
        %2558 = vmatprep.subr.mxu0 0.0
        %2559 = vmatpush2.msra.mxu0 0.0
        %2560 = vmatprep.subr.mxu0 0.0
        %2561 = vmatpush2.msra.mxu0 0.0
        %2562 = vmatprep.subr.mxu0 0.0
        %2563 = vmatpush2.msra.mxu0 0.0
        %2564 = vmatprep.subr.mxu0 0.0
        %2565 = vmatpush2.msra.mxu0 0.0
        %2566 = vmatprep.subr.mxu0 0.0
        %2567 = vmatpush2.msra.mxu0 0.0
        %2568 = vmatprep.subr.mxu0 0.0
        %2569 = vmatpush2.msra.mxu0 0.0
        %2570 = vmatprep.subr.mxu0 0.0
        %2571 = vmatpush2.msra.mxu0 0.0
        %2572 = vmatprep.subr.mxu0 0.0
        %2573 = vmatpush2.msra.mxu0 0.0
        %2574 = vmatprep.subr.mxu0 0.0
        %2575 = vmatpush2.msra.mxu0 0.0
        %2576 = vmatprep.subr.mxu0 0.0
        %2577 = vmatpush2.msra.mxu0 0.0
        %2578 = vmatprep.subr.mxu0 0.0
        %2579 = vmatpush2.msra.mxu0 0.0
        %2580 = vmatprep.subr.mxu0 0.0
        %2581 = vmatpush2.msra.mxu0 0.0
        %2582 = vmatprep.mubr.f32.mxu0 0.0
        %2583 = vmatmul.mubr.f32.gmra.mxu0 %v2513
        %v2584 = vpop.f32.mrf.mxu0
        %v2585 = vadd.f32 0.0, %v2584
        %v2586 = vpop.f32.mrf.mxu0
        %v2587 = vadd.f32 0.0, %v2586
        %2588 = vmatprep.mubr.f32.mxu0 0.0
        %2589 = vmatmul.mubr.f32.gmra.mxu0 %v2516
        %v2590 = vpop.f32.mrf.mxu0
        %v2591 = vadd.f32 0.0, %v2590
        %v2592 = vpop.f32.mrf.mxu0
        %v2593 = vadd.f32 0.0, %v2592
        %2594 = vdwg.mxu0
        %v2595 = vld [vmem:[%s6] sm:$0xff]
        %v2596 = vld [vmem:[%s6 + $0x8] sm:$0xff]
        %v2598 = vsel %vm2511, %v2595, 0
        %v2601 = vsel %vm2511, %v2596, 0
        %2603 = vmatprep.subr.mxu0 0.0
        %2604 = vmatpush1.msra.mxu0 0.0
        %2605 = vmatprep.subr.mxu0 0.0
        %2606 = vmatpush1.msra.mxu0 0.0
        %2607 = vmatprep.subr.mxu0 0.0
        %2608 = vmatpush1.msra.mxu0 0.0
        %2609 = vmatprep.subr.mxu0 0.0
        %2610 = vmatpush1.msra.mxu0 0.0
        %2611 = vmatprep.subr.mxu0 0.0
        %2612 = vmatpush1.msra.mxu0 0.0
        %2613 = vmatprep.subr.mxu0 0.0
        %2614 = vmatpush1.msra.mxu0 0.0
        %2615 = vmatprep.subr.mxu0 0.0
        %2616 = vmatpush1.msra.mxu0 0.0
        %2617 = vmatprep.subr.mxu0 0.0
        %2618 = vmatpush1.msra.mxu0 0.0
        %2619 = vmatprep.subr.mxu0 0.0
        %2620 = vmatpush1.msra.mxu0 0.0
        %2621 = vmatprep.subr.mxu0 0.0
        %2622 = vmatpush1.msra.mxu0 0.0
        %2623 = vmatprep.subr.mxu0 0.0
        %2624 = vmatpush1.msra.mxu0 0.0
        %2625 = vmatprep.subr.mxu0 0.0
        %2626 = vmatpush1.msra.mxu0 0.0
        %2627 = vmatprep.subr.mxu0 %v2508
        %2628 = vmatpush1.msra.mxu0 %v2507
        %2629 = vmatprep.subr.mxu0 %v2506
        %2630 = vmatpush1.msra.mxu0 %v2505
        %2631 = vmatprep.subr.mxu0 %v2504
        %2632 = vmatpush1.msra.mxu0 %v2503
        %2633 = vmatprep.subr.mxu0 %v2502
        %2634 = vmatpush1.msra.mxu0 %v2501
        %2635 = vmatprep.subr.mxu0 0.0
        %2636 = vmatpush2.msra.mxu0 0.0
        %2637 = vmatprep.subr.mxu0 0.0
        %2638 = vmatpush2.msra.mxu0 0.0
        %2639 = vmatprep.subr.mxu0 0.0
        %2640 = vmatpush2.msra.mxu0 0.0
        %2641 = vmatprep.subr.mxu0 0.0
        %2642 = vmatpush2.msra.mxu0 0.0
        %2643 = vmatprep.subr.mxu0 0.0
        %2644 = vmatpush2.msra.mxu0 0.0
        %2645 = vmatprep.subr.mxu0 0.0
        %2646 = vmatpush2.msra.mxu0 0.0
        %2647 = vmatprep.subr.mxu0 0.0
        %2648 = vmatpush2.msra.mxu0 0.0
        %2649 = vmatprep.subr.mxu0 0.0
        %2650 = vmatpush2.msra.mxu0 0.0
        %2651 = vmatprep.subr.mxu0 0.0
        %2652 = vmatpush2.msra.mxu0 0.0
        %2653 = vmatprep.subr.mxu0 0.0
        %2654 = vmatpush2.msra.mxu0 0.0
        %2655 = vmatprep.subr.mxu0 0.0
        %2656 = vmatpush2.msra.mxu0 0.0
        %2657 = vmatprep.subr.mxu0 0.0
        %2658 = vmatpush2.msra.mxu0 0.0
        %2659 = vmatprep.subr.mxu0 0.0
        %2660 = vmatpush2.msra.mxu0 0.0
        %2661 = vmatprep.subr.mxu0 0.0
        %2662 = vmatpush2.msra.mxu0 0.0
        %2663 = vmatprep.subr.mxu0 0.0
        %2664 = vmatpush2.msra.mxu0 0.0
        %2665 = vmatprep.subr.mxu0 0.0
        %2666 = vmatpush2.msra.mxu0 0.0
        %2667 = vmatprep.mubr.f32.mxu0 0.0
        %2668 = vmatmul.mubr.f32.gmra.mxu0 %v2598
        %v2669 = vpop.f32.mrf.mxu0
        %v2670 = vadd.f32 0.0, %v2669
        %v2671 = vpop.f32.mrf.mxu0
        %v2672 = vadd.f32 0.0, %v2671
        %2673 = vmatprep.mubr.f32.mxu0 0.0
        %2674 = vmatmul.mubr.f32.gmra.mxu0 %v2601
        %v2675 = vpop.f32.mrf.mxu0
        %v2676 = vadd.f32 0.0, %v2675
        %v2677 = vpop.f32.mrf.mxu0
        %v2678 = vadd.f32 0.0, %v2677
        %2679 = vdwg.mxu0
        %v2680 = vmax.f32 %v2585, %v2670
        %v2681 = vmax.f32 %v2587, %v2672
        %v2682 = vmax.f32 %v2591, %v2676
        %v2683 = vmax.f32 %v2593, %v2678
        %v2684 = vld [vmem:[%s7] sm:$0xff]
        %v2685 = vld [vmem:[%s7 + $0x8] sm:$0xff]
        %v2686 = vld [vmem:[%s7 + $0x10] sm:$0xff]
        %v2687 = vld [vmem:[%s7 + $0x18] sm:$0xff]
        %v2688 = vld [vmem:[%s7 + $0x20] sm:$0xff]
        %v2689 = vld [vmem:[%s7 + $0x28] sm:$0xff]
        %v2690 = vld [vmem:[%s7 + $0x30] sm:$0xff]
        %v2691 = vld [vmem:[%s7 + $0x38] sm:$0xff]
        %v2692 = vld [vmem:[%s7 + $0x40] sm:$0xff]
        %v2693 = vld [vmem:[%s7 + $0x48] sm:$0xff]
        %v2694 = vld [vmem:[%s7 + $0x50] sm:$0xff]
        %v2695 = vld [vmem:[%s7 + $0x58] sm:$0xff]
        %v2696 = vld [vmem:[%s7 + $0x60] sm:$0xff]
        %v2697 = vld [vmem:[%s7 + $0x68] sm:$0xff]
        %v2698 = vld [vmem:[%s7 + $0x70] sm:$0xff]
        %v2699 = vld [vmem:[%s7 + $0x78] sm:$0xff]
        %v2700 = vld [vmem:[%s7 + $0x80] sm:$0xff]
        %v2701 = vld [vmem:[%s7 + $0x88] sm:$0xff]
        %v2702 = vld [vmem:[%s7 + $0x90] sm:$0xff]
        %v2703 = vld [vmem:[%s7 + $0x98] sm:$0xff]
        %v2704 = vld [vmem:[%s7 + $0xa0] sm:$0xff]
        %v2705 = vld [vmem:[%s7 + $0xa8] sm:$0xff]
        %v2706 = vld [vmem:[%s7 + $0xb0] sm:$0xff]
        %v2707 = vld [vmem:[%s7 + $0xb8] sm:$0xff]
        %v2708 = vld [vmem:[%s7 + $0xc0] sm:$0xff]
        %v2709 = vld [vmem:[%s7 + $0xc8] sm:$0xff]
        %v2710 = vld [vmem:[%s7 + $0xd0] sm:$0xff]
        %v2711 = vld [vmem:[%s7 + $0xd8] sm:$0xff]
        %v2712 = vld [vmem:[%s7 + $0xe0] sm:$0xff]
        %v2713 = vld [vmem:[%s7 + $0xe8] sm:$0xff]
        %v2714 = vld [vmem:[%s7 + $0xf0] sm:$0xff]
        %v2715 = vld [vmem:[%s7 + $0xf8] sm:$0xff]
        %2716 = vmatprep.subr.mxu0 0.0
        %2717 = vmatpush1.msra.mxu0 %v2699
        %2718 = vmatprep.subr.mxu0 0.0
        %2719 = vmatpush1.msra.mxu0 %v2698
        %2720 = vmatprep.subr.mxu0 0.0
        %2721 = vmatpush1.msra.mxu0 %v2697
        %2722 = vmatprep.subr.mxu0 0.0
        %2723 = vmatpush1.msra.mxu0 %v2696
        %2724 = vmatprep.subr.mxu0 0.0
        %2725 = vmatpush1.msra.mxu0 %v2695
        %2726 = vmatprep.subr.mxu0 0.0
        %2727 = vmatpush1.msra.mxu0 %v2694
        %2728 = vmatprep.subr.mxu0 0.0
        %2729 = vmatpush1.msra.mxu0 %v2693
        %2730 = vmatprep.subr.mxu0 0.0
        %2731 = vmatpush1.msra.mxu0 %v2692
        %2732 = vmatprep.subr.mxu0 0.0
        %2733 = vmatpush1.msra.mxu0 %v2691
        %2734 = vmatprep.subr.mxu0 0.0
        %2735 = vmatpush1.msra.mxu0 %v2690
        %2736 = vmatprep.subr.mxu0 0.0
        %2737 = vmatpush1.msra.mxu0 %v2689
        %2738 = vmatprep.subr.mxu0 0.0
        %2739 = vmatpush1.msra.mxu0 %v2688
        %2740 = vmatprep.subr.mxu0 0.0
        %2741 = vmatpush1.msra.mxu0 %v2687
        %2742 = vmatprep.subr.mxu0 0.0
        %2743 = vmatpush1.msra.mxu0 %v2686
        %2744 = vmatprep.subr.mxu0 0.0
        %2745 = vmatpush1.msra.mxu0 %v2685
        %2746 = vmatprep.subr.mxu0 0.0
        %2747 = vmatpush1.msra.mxu0 %v2684
        %2748 = vmatprep.subr.mxu0 0.0
        %2749 = vmatpush2.msra.mxu0 %v2715
        %2750 = vmatprep.subr.mxu0 0.0
        %2751 = vmatpush2.msra.mxu0 %v2714
        %2752 = vmatprep.subr.mxu0 0.0
        %2753 = vmatpush2.msra.mxu0 %v2713
        %2754 = vmatprep.subr.mxu0 0.0
        %2755 = vmatpush2.msra.mxu0 %v2712
        %2756 = vmatprep.subr.mxu0 0.0
        %2757 = vmatpush2.msra.mxu0 %v2711
        %2758 = vmatprep.subr.mxu0 0.0
        %2759 = vmatpush2.msra.mxu0 %v2710
        %2760 = vmatprep.subr.mxu0 0.0
        %2761 = vmatpush2.msra.mxu0 %v2709
        %2762 = vmatprep.subr.mxu0 0.0
        %2763 = vmatpush2.msra.mxu0 %v2708
        %2764 = vmatprep.subr.mxu0 0.0
        %2765 = vmatpush2.msra.mxu0 %v2707
        %2766 = vmatprep.subr.mxu0 0.0
        %2767 = vmatpush2.msra.mxu0 %v2706
        %2768 = vmatprep.subr.mxu0 0.0
        %2769 = vmatpush2.msra.mxu0 %v2705
        %2770 = vmatprep.subr.mxu0 0.0
        %2771 = vmatpush2.msra.mxu0 %v2704
        %2772 = vmatprep.subr.mxu0 0.0
        %2773 = vmatpush2.msra.mxu0 %v2703
        %2774 = vmatprep.subr.mxu0 0.0
        %2775 = vmatpush2.msra.mxu0 %v2702
        %2776 = vmatprep.subr.mxu0 0.0
        %2777 = vmatpush2.msra.mxu0 %v2701
        %2778 = vmatprep.subr.mxu0 0.0
        %2779 = vmatpush2.msra.mxu0 %v2700
        %2780 = vmatprep.mubr.f32.mxu0 %v2681
        %2781 = vmatmul.mubr.f32.gmra.mxu0 %v2680
        %v2782 = vpop.f32.mrf.mxu0
        %v2783 = vadd.f32 0.0, %v2782
        %v2784 = vpop.f32.mrf.mxu0
        %2785 = vmatprep.mubr.f32.mxu0 %v2683
        %2786 = vmatmul.mubr.f32.gmra.mxu0 %v2682
        %v2787 = vpop.f32.mrf.mxu0
        %v2788 = vadd.f32 0.0, %v2787
        %v2789 = vpop.f32.mrf.mxu0
        %2790 = vdwg.mxu0
        %v2791 = vld [vmem:[%s8] sm:$0xff]
        %v2792 = vld [vmem:[%s8 + $0x8] sm:$0xff]
        %v2793 = vld [vmem:[%s8 + $0x10] sm:$0xff]
        %v2794 = vld [vmem:[%s8 + $0x18] sm:$0xff]
        %v2795 = vld [vmem:[%s8 + $0x20] sm:$0xff]
        %v2796 = vld [vmem:[%s8 + $0x28] sm:$0xff]
        %v2797 = vld [vmem:[%s8 + $0x30] sm:$0xff]
        %v2798 = vld [vmem:[%s8 + $0x38] sm:$0xff]
        %v2799 = vld [vmem:[%s8 + $0x40] sm:$0xff]
        %v2800 = vld [vmem:[%s8 + $0x48] sm:$0xff]
        %v2801 = vld [vmem:[%s8 + $0x50] sm:$0xff]
        %v2802 = vld [vmem:[%s8 + $0x58] sm:$0xff]
        %v2803 = vld [vmem:[%s8 + $0x60] sm:$0xff]
        %v2804 = vld [vmem:[%s8 + $0x68] sm:$0xff]
        %v2805 = vld [vmem:[%s8 + $0x70] sm:$0xff]
        %v2806 = vld [vmem:[%s8 + $0x78] sm:$0xff]
        %v2807 = vld [vmem:[%s8 + $0x80] sm:$0xff]
        %v2808 = vld [vmem:[%s8 + $0x88] sm:$0xff]
        %v2809 = vld [vmem:[%s8 + $0x90] sm:$0xff]
        %v2810 = vld [vmem:[%s8 + $0x98] sm:$0xff]
        %v2811 = vld [vmem:[%s8 + $0xa0] sm:$0xff]
        %v2812 = vld [vmem:[%s8 + $0xa8] sm:$0xff]
        %v2813 = vld [vmem:[%s8 + $0xb0] sm:$0xff]
        %v2814 = vld [vmem:[%s8 + $0xb8] sm:$0xff]
        %v2815 = vld [vmem:[%s8 + $0xc0] sm:$0xff]
        %v2816 = vld [vmem:[%s8 + $0xc8] sm:$0xff]
        %v2817 = vld [vmem:[%s8 + $0xd0] sm:$0xff]
        %v2818 = vld [vmem:[%s8 + $0xd8] sm:$0xff]
        %v2819 = vld [vmem:[%s8 + $0xe0] sm:$0xff]
        %v2820 = vld [vmem:[%s8 + $0xe8] sm:$0xff]
        %v2821 = vld [vmem:[%s8 + $0xf0] sm:$0xff]
        %v2822 = vld [vmem:[%s8 + $0xf8] sm:$0xff]
        %2823 = vmatprep.subr.mxu0 0.0
        %2824 = vmatpush1.msra.mxu0 %v2806
        %2825 = vmatprep.subr.mxu0 0.0
        %2826 = vmatpush1.msra.mxu0 %v2805
        %2827 = vmatprep.subr.mxu0 0.0
        %2828 = vmatpush1.msra.mxu0 %v2804
        %2829 = vmatprep.subr.mxu0 0.0
        %2830 = vmatpush1.msra.mxu0 %v2803
        %2831 = vmatprep.subr.mxu0 0.0
        %2832 = vmatpush1.msra.mxu0 %v2802
        %2833 = vmatprep.subr.mxu0 0.0
        %2834 = vmatpush1.msra.mxu0 %v2801
        %2835 = vmatprep.subr.mxu0 0.0
        %2836 = vmatpush1.msra.mxu0 %v2800
        %2837 = vmatprep.subr.mxu0 0.0
        %2838 = vmatpush1.msra.mxu0 %v2799
        %2839 = vmatprep.subr.mxu0 0.0
        %2840 = vmatpush1.msra.mxu0 %v2798
        %2841 = vmatprep.subr.mxu0 0.0
        %2842 = vmatpush1.msra.mxu0 %v2797
        %2843 = vmatprep.subr.mxu0 0.0
        %2844 = vmatpush1.msra.mxu0 %v2796
        %2845 = vmatprep.subr.mxu0 0.0
        %2846 = vmatpush1.msra.mxu0 %v2795
        %2847 = vmatprep.subr.mxu0 0.0
        %2848 = vmatpush1.msra.mxu0 %v2794
        %2849 = vmatprep.subr.mxu0 0.0
        %2850 = vmatpush1.msra.mxu0 %v2793
        %2851 = vmatprep.subr.mxu0 0.0
        %2852 = vmatpush1.msra.mxu0 %v2792
        %2853 = vmatprep.subr.mxu0 0.0
        %2854 = vmatpush1.msra.mxu0 %v2791
        %2855 = vmatprep.subr.mxu0 0.0
        %2856 = vmatpush2.msra.mxu0 %v2822
        %2857 = vmatprep.subr.mxu0 0.0
        %2858 = vmatpush2.msra.mxu0 %v2821
        %2859 = vmatprep.subr.mxu0 0.0
        %2860 = vmatpush2.msra.mxu0 %v2820
        %2861 = vmatprep.subr.mxu0 0.0
        %2862 = vmatpush2.msra.mxu0 %v2819
        %2863 = vmatprep.subr.mxu0 0.0
        %2864 = vmatpush2.msra.mxu0 %v2818
        %2865 = vmatprep.subr.mxu0 0.0
        %2866 = vmatpush2.msra.mxu0 %v2817
        %2867 = vmatprep.subr.mxu0 0.0
        %2868 = vmatpush2.msra.mxu0 %v2816
        %2869 = vmatprep.subr.mxu0 0.0
        %2870 = vmatpush2.msra.mxu0 %v2815
        %2871 = vmatprep.subr.mxu0 0.0
        %2872 = vmatpush2.msra.mxu0 %v2814
        %2873 = vmatprep.subr.mxu0 0.0
        %2874 = vmatpush2.msra.mxu0 %v2813
        %2875 = vmatprep.subr.mxu0 0.0
        %2876 = vmatpush2.msra.mxu0 %v2812
        %2877 = vmatprep.subr.mxu0 0.0
        %2878 = vmatpush2.msra.mxu0 %v2811
        %2879 = vmatprep.subr.mxu0 0.0
        %2880 = vmatpush2.msra.mxu0 %v2810
        %2881 = vmatprep.subr.mxu0 0.0
        %2882 = vmatpush2.msra.mxu0 %v2809
        %2883 = vmatprep.subr.mxu0 0.0
        %2884 = vmatpush2.msra.mxu0 %v2808
        %2885 = vmatprep.subr.mxu0 0.0
        %2886 = vmatpush2.msra.mxu0 %v2807
        %2887 = vmatprep.mubr.f32.mxu0 %v2681
        %2888 = vmatmul.mubr.f32.gmra.mxu0 %v2680
        %v2889 = vpop.f32.mrf.mxu0
        %v2890 = vadd.f32 0.0, %v2889
        %v2891 = vpop.f32.mrf.mxu0
        %2892 = vmatprep.mubr.f32.mxu0 %v2683
        %2893 = vmatmul.mubr.f32.gmra.mxu0 %v2682
        %v2894 = vpop.f32.mrf.mxu0
        %v2895 = vadd.f32 0.0, %v2894
        %v2896 = vpop.f32.mrf.mxu0
        %2897 = vdwg.mxu0
        %v2898 = vmax.f32 %v2783, %v2890
        %v2899 = vmax.f32 %v2788, %v2895
        %2900 = vst [vmem:[#allocation3] sm:$0xff] %v2898
        %2901 = vst [vmem:[#allocation3 + $0x8] sm:$0xff] %v2899
        %v2902 = vld [vmem:[#allocation3] sm:$0xff]
        %v2903 = vld [vmem:[#allocation3 + $0x8] sm:$0x3f]
        %v2904 = vld [vmem:[%s9] sm:$0xff]
        %v2905 = vld [vmem:[%s9 + $0x8] sm:$0xff]
        %v2906 = vld [vmem:[%s9 + $0x10] sm:$0xff]
        %v2907 = vld [vmem:[%s9 + $0x18] sm:$0xff]
        %v2908 = vld [vmem:[%s9 + $0x20] sm:$0xff]
        %v2909 = vld [vmem:[%s9 + $0x28] sm:$0xff]
        %v2910 = vld [vmem:[%s9 + $0x30] sm:$0xff]
        %v2911 = vld [vmem:[%s9 + $0x38] sm:$0xff]
        %v2912 = vld [vmem:[%s9 + $0x40] sm:$0xff]
        %v2913 = vld [vmem:[%s9 + $0x48] sm:$0xff]
        %v2914 = vld [vmem:[%s9 + $0x50] sm:$0xff]
        %v2915 = vld [vmem:[%s9 + $0x58] sm:$0xff]
        %v2916 = vld [vmem:[%s9 + $0x60] sm:$0xff]
        %v2917 = vld [vmem:[%s9 + $0x68] sm:$0xff]
        %v2918 = vld [vmem:[%s9 + $0x70] sm:$0xff]
        %v2919 = vld [vmem:[%s9 + $0x78] sm:$0xff]
        %v2920 = vld [vmem:[%s9 + $0x80] sm:$0xff]
        %v2921 = vld [vmem:[%s9 + $0x88] sm:$0xff]
        %v2922 = vld [vmem:[%s9 + $0x90] sm:$0xff]
        %v2923 = vld [vmem:[%s9 + $0x98] sm:$0xff]
        %v2924 = vld [vmem:[%s9 + $0xa0] sm:$0xff]
        %v2925 = vld [vmem:[%s9 + $0xa8] sm:$0xff]
        %v2926 = vld [vmem:[%s9 + $0xb0] sm:$0xff]
        %v2927 = vld [vmem:[%s9 + $0xb8] sm:$0xff]
        %v2928 = vld [vmem:[%s9 + $0xc0] sm:$0xff]
        %v2929 = vld [vmem:[%s9 + $0xc8] sm:$0xff]
        %v2930 = vld [vmem:[%s9 + $0xd0] sm:$0xff]
        %v2931 = vld [vmem:[%s9 + $0xd8] sm:$0xff]
        %v2932 = vld [vmem:[%s9 + $0xe0] sm:$0xff]
        %v2933 = vld [vmem:[%s9 + $0xe8] sm:$0xff]
        %v2934 = vld [vmem:[%s9 + $0xf0] sm:$0xff]
        %v2935 = vld [vmem:[%s9 + $0xf8] sm:$0xff]
        %v2936 = vld [vmem:[#allocation3 + $0x1] sm:$0xff]
        %v2937 = vld [vmem:[#allocation3 + $0x9] sm:$0x3f]
        %s2938 = scalar_lea.vmem %s9, 256
        %v2939 = vld [vmem:[%s2938] sm:$0xff]
        %v2940 = vld [vmem:[%s2938 + $0x8] sm:$0xff]
        %v2941 = vld [vmem:[%s2938 + $0x10] sm:$0xff]
        %v2942 = vld [vmem:[%s2938 + $0x18] sm:$0xff]
        %v2943 = vld [vmem:[%s2938 + $0x20] sm:$0xff]
        %v2944 = vld [vmem:[%s2938 + $0x28] sm:$0xff]
        %v2945 = vld [vmem:[%s2938 + $0x30] sm:$0xff]
        %v2946 = vld [vmem:[%s2938 + $0x38] sm:$0xff]
        %v2947 = vld [vmem:[%s2938 + $0x40] sm:$0xff]
        %v2948 = vld [vmem:[%s2938 + $0x48] sm:$0xff]
        %v2949 = vld [vmem:[%s2938 + $0x50] sm:$0xff]
        %v2950 = vld [vmem:[%s2938 + $0x58] sm:$0xff]
        %v2951 = vld [vmem:[%s2938 + $0x60] sm:$0xff]
        %v2952 = vld [vmem:[%s2938 + $0x68] sm:$0xff]
        %v2953 = vld [vmem:[%s2938 + $0x70] sm:$0xff]
        %v2954 = vld [vmem:[%s2938 + $0x78] sm:$0xff]
        %v2955 = vld [vmem:[%s2938 + $0x80] sm:$0xff]
        %v2956 = vld [vmem:[%s2938 + $0x88] sm:$0xff]
        %v2957 = vld [vmem:[%s2938 + $0x90] sm:$0xff]
        %v2958 = vld [vmem:[%s2938 + $0x98] sm:$0xff]
        %v2959 = vld [vmem:[%s2938 + $0xa0] sm:$0xff]
        %v2960 = vld [vmem:[%s2938 + $0xa8] sm:$0xff]
        %v2961 = vld [vmem:[%s2938 + $0xb0] sm:$0xff]
        %v2962 = vld [vmem:[%s2938 + $0xb8] sm:$0xff]
        %v2963 = vld [vmem:[%s2938 + $0xc0] sm:$0xff]
        %v2964 = vld [vmem:[%s2938 + $0xc8] sm:$0xff]
        %v2965 = vld [vmem:[%s2938 + $0xd0] sm:$0xff]
        %v2966 = vld [vmem:[%s2938 + $0xd8] sm:$0xff]
        %v2967 = vld [vmem:[%s2938 + $0xe0] sm:$0xff]
        %v2968 = vld [vmem:[%s2938 + $0xe8] sm:$0xff]
        %v2969 = vld [vmem:[%s2938 + $0xf0] sm:$0xff]
        %v2970 = vld [vmem:[%s2938 + $0xf8] sm:$0xff]
        %2971 = vmatprep.subr.mxu0 %v2970
        %2972 = vmatpush1.msra.mxu0 %v2969
        %2973 = vmatprep.subr.mxu0 %v2968
        %2974 = vmatpush1.msra.mxu0 %v2967
        %2975 = vmatprep.subr.mxu0 %v2966
        %2976 = vmatpush1.msra.mxu0 %v2965
        %2977 = vmatprep.subr.mxu0 %v2964
        %2978 = vmatpush1.msra.mxu0 %v2963
        %2979 = vmatprep.subr.mxu0 %v2962
        %2980 = vmatpush1.msra.mxu0 %v2961
        %2981 = vmatprep.subr.mxu0 %v2960
        %2982 = vmatpush1.msra.mxu0 %v2959
        %2983 = vmatprep.subr.mxu0 %v2958
        %2984 = vmatpush1.msra.mxu0 %v2957
        %2985 = vmatprep.subr.mxu0 %v2956
        %2986 = vmatpush1.msra.mxu0 %v2955
        %2987 = vmatprep.subr.mxu0 %v2954
        %2988 = vmatpush1.msra.mxu0 %v2953
        %2989 = vmatprep.subr.mxu0 %v2952
        %2990 = vmatpush1.msra.mxu0 %v2951
        %2991 = vmatprep.subr.mxu0 %v2950
        %2992 = vmatpush1.msra.mxu0 %v2949
        %2993 = vmatprep.subr.mxu0 %v2948
        %2994 = vmatpush1.msra.mxu0 %v2947
        %2995 = vmatprep.subr.mxu0 %v2946
        %2996 = vmatpush1.msra.mxu0 %v2945
        %2997 = vmatprep.subr.mxu0 %v2944
        %2998 = vmatpush1.msra.mxu0 %v2943
        %2999 = vmatprep.subr.mxu0 %v2942
        %3000 = vmatpush1.msra.mxu0 %v2941
        %3001 = vmatprep.subr.mxu0 %v2940
        %3002 = vmatpush1.msra.mxu0 %v2939
        %3003 = vmatprep.subr.mxu0 0.0
        %3004 = vmatpush2.msra.mxu0 0.0
        %3005 = vmatprep.subr.mxu0 0.0
        %3006 = vmatpush2.msra.mxu0 0.0
        %3007 = vmatprep.subr.mxu0 0.0
        %3008 = vmatpush2.msra.mxu0 0.0
        %3009 = vmatprep.subr.mxu0 0.0
        %3010 = vmatpush2.msra.mxu0 0.0
        %3011 = vmatprep.subr.mxu0 0.0
        %3012 = vmatpush2.msra.mxu0 0.0
        %3013 = vmatprep.subr.mxu0 0.0
        %3014 = vmatpush2.msra.mxu0 0.0
        %3015 = vmatprep.subr.mxu0 0.0
        %3016 = vmatpush2.msra.mxu0 0.0
        %3017 = vmatprep.subr.mxu0 0.0
        %3018 = vmatpush2.msra.mxu0 0.0
        %3019 = vmatprep.subr.mxu0 0.0
        %3020 = vmatpush2.msra.mxu0 0.0
        %3021 = vmatprep.subr.mxu0 0.0
        %3022 = vmatpush2.msra.mxu0 0.0
        %3023 = vmatprep.subr.mxu0 0.0
        %3024 = vmatpush2.msra.mxu0 0.0
        %3025 = vmatprep.subr.mxu0 0.0
        %3026 = vmatpush2.msra.mxu0 0.0
        %3027 = vmatprep.subr.mxu0 0.0
        %3028 = vmatpush2.msra.mxu0 0.0
        %3029 = vmatprep.subr.mxu0 0.0
        %3030 = vmatpush2.msra.mxu0 0.0
        %3031 = vmatprep.subr.mxu0 0.0
        %3032 = vmatpush2.msra.mxu0 0.0
        %3033 = vmatprep.subr.mxu0 0.0
        %3034 = vmatpush2.msra.mxu0 0.0
        %3035 = vmatprep.mubr.f32.mxu0 0.0
        %3036 = vmatmul.mubr.f32.gmra.mxu0 %v2936
        %v3037 = vpop.f32.mrf.mxu0
        %v3038 = vadd.f32 0.0, %v3037
        %v3039 = vpop.f32.mrf.mxu0
        %v3040 = vadd.f32 0.0, %v3039
        %3041 = vmatprep.mubr.f32.mxu0 0.0
        %3042 = vmatmul.mubr.f32.gmra.mxu0 %v2937
        %v3043 = vpop.f32.mrf.mxu0
        %v3044 = vadd.f32 0.0, %v3043
        %v3045 = vpop.f32.mrf.mxu0
        %v3046 = vadd.f32 0.0, %v3045
        %3047 = vdwg.mxu0
        %3048 = vmatprep.subr.mxu0 %v2935
        %3049 = vmatpush1.msra.mxu0 %v2934
        %3050 = vmatprep.subr.mxu0 %v2933
        %3051 = vmatpush1.msra.mxu0 %v2932
        %3052 = vmatprep.subr.mxu0 %v2931
        %3053 = vmatpush1.msra.mxu0 %v2930
        %3054 = vmatprep.subr.mxu0 %v2929
        %3055 = vmatpush1.msra.mxu0 %v2928
        %3056 = vmatprep.subr.mxu0 %v2927
        %3057 = vmatpush1.msra.mxu0 %v2926
        %3058 = vmatprep.subr.mxu0 %v2925
        %3059 = vmatpush1.msra.mxu0 %v2924
        %3060 = vmatprep.subr.mxu0 %v2923
        %3061 = vmatpush1.msra.mxu0 %v2922
        %3062 = vmatprep.subr.mxu0 %v2921
        %3063 = vmatpush1.msra.mxu0 %v2920
        %3064 = vmatprep.subr.mxu0 %v2919
        %3065 = vmatpush1.msra.mxu0 %v2918
        %3066 = vmatprep.subr.mxu0 %v2917
        %3067 = vmatpush1.msra.mxu0 %v2916
        %3068 = vmatprep.subr.mxu0 %v2915
        %3069 = vmatpush1.msra.mxu0 %v2914
        %3070 = vmatprep.subr.mxu0 %v2913
        %3071 = vmatpush1.msra.mxu0 %v2912
        %3072 = vmatprep.subr.mxu0 %v2911
        %3073 = vmatpush1.msra.mxu0 %v2910
        %3074 = vmatprep.subr.mxu0 %v2909
        %3075 = vmatpush1.msra.mxu0 %v2908
        %3076 = vmatprep.subr.mxu0 %v2907
        %3077 = vmatpush1.msra.mxu0 %v2906
        %3078 = vmatprep.subr.mxu0 %v2905
        %3079 = vmatpush1.msra.mxu0 %v2904
        %3080 = vmatprep.subr.mxu0 0.0
        %3081 = vmatpush2.msra.mxu0 0.0
        %3082 = vmatprep.subr.mxu0 0.0
        %3083 = vmatpush2.msra.mxu0 0.0
        %3084 = vmatprep.subr.mxu0 0.0
        %3085 = vmatpush2.msra.mxu0 0.0
        %3086 = vmatprep.subr.mxu0 0.0
        %3087 = vmatpush2.msra.mxu0 0.0
        %3088 = vmatprep.subr.mxu0 0.0
        %3089 = vmatpush2.msra.mxu0 0.0
        %3090 = vmatprep.subr.mxu0 0.0
        %3091 = vmatpush2.msra.mxu0 0.0
        %3092 = vmatprep.subr.mxu0 0.0
        %3093 = vmatpush2.msra.mxu0 0.0
        %3094 = vmatprep.subr.mxu0 0.0
        %3095 = vmatpush2.msra.mxu0 0.0
        %3096 = vmatprep.subr.mxu0 0.0
        %3097 = vmatpush2.msra.mxu0 0.0
        %3098 = vmatprep.subr.mxu0 0.0
        %3099 = vmatpush2.msra.mxu0 0.0
        %3100 = vmatprep.subr.mxu0 0.0
        %3101 = vmatpush2.msra.mxu0 0.0
        %3102 = vmatprep.subr.mxu0 0.0
        %3103 = vmatpush2.msra.mxu0 0.0
        %3104 = vmatprep.subr.mxu0 0.0
        %3105 = vmatpush2.msra.mxu0 0.0
        %3106 = vmatprep.subr.mxu0 0.0
        %3107 = vmatpush2.msra.mxu0 0.0
        %3108 = vmatprep.subr.mxu0 0.0
        %3109 = vmatpush2.msra.mxu0 0.0
        %3110 = vmatprep.subr.mxu0 0.0
        %3111 = vmatpush2.msra.mxu0 0.0
        %3112 = vmatprep.mubr.f32.mxu0 0.0
        %3113 = vmatmul.mubr.f32.gmra.mxu0 %v2902
        %v3114 = vpop.f32.mrf.mxu0
        %v3115 = vadd.f32 %v3038, %v3114
        %v3116 = vpop.f32.mrf.mxu0
        %v3117 = vadd.f32 %v3040, %v3116
        %3118 = vmatprep.mubr.f32.mxu0 0.0
        %3119 = vmatmul.mubr.f32.gmra.mxu0 %v2903
        %v3120 = vpop.f32.mrf.mxu0
        %v3121 = vadd.f32 %v3044, %v3120
        %v3122 = vpop.f32.mrf.mxu0
        %v3123 = vadd.f32 %v3046, %v3122
        %3124 = vdwg.mxu0
        %v3125 = vld [vmem:[#allocation3 + $0x2] sm:$0xff]
        %v3126 = vld [vmem:[#allocation3 + $0xa] sm:$0x3f]
        %s3127 = scalar_lea.vmem %s9, 512
        %v3128 = vld [vmem:[%s3127] sm:$0xff]
        %v3129 = vld [vmem:[%s3127 + $0x8] sm:$0xff]
        %v3130 = vld [vmem:[%s3127 + $0x10] sm:$0xff]
        %v3131 = vld [vmem:[%s3127 + $0x18] sm:$0xff]
        %v3132 = vld [vmem:[%s3127 + $0x20] sm:$0xff]
        %v3133 = vld [vmem:[%s3127 + $0x28] sm:$0xff]
        %v3134 = vld [vmem:[%s3127 + $0x30] sm:$0xff]
        %v3135 = vld [vmem:[%s3127 + $0x38] sm:$0xff]
        %v3136 = vld [vmem:[%s3127 + $0x40] sm:$0xff]
        %v3137 = vld [vmem:[%s3127 + $0x48] sm:$0xff]
        %v3138 = vld [vmem:[%s3127 + $0x50] sm:$0xff]
        %v3139 = vld [vmem:[%s3127 + $0x58] sm:$0xff]
        %v3140 = vld [vmem:[%s3127 + $0x60] sm:$0xff]
        %v3141 = vld [vmem:[%s3127 + $0x68] sm:$0xff]
        %v3142 = vld [vmem:[%s3127 + $0x70] sm:$0xff]
        %v3143 = vld [vmem:[%s3127 + $0x78] sm:$0xff]
        %v3144 = vld [vmem:[%s3127 + $0x80] sm:$0xff]
        %v3145 = vld [vmem:[%s3127 + $0x88] sm:$0xff]
        %v3146 = vld [vmem:[%s3127 + $0x90] sm:$0xff]
        %v3147 = vld [vmem:[%s3127 + $0x98] sm:$0xff]
        %v3148 = vld [vmem:[%s3127 + $0xa0] sm:$0xff]
        %v3149 = vld [vmem:[%s3127 + $0xa8] sm:$0xff]
        %v3150 = vld [vmem:[%s3127 + $0xb0] sm:$0xff]
        %v3151 = vld [vmem:[%s3127 + $0xb8] sm:$0xff]
        %v3152 = vld [vmem:[%s3127 + $0xc0] sm:$0xff]
        %v3153 = vld [vmem:[%s3127 + $0xc8] sm:$0xff]
        %v3154 = vld [vmem:[%s3127 + $0xd0] sm:$0xff]
        %v3155 = vld [vmem:[%s3127 + $0xd8] sm:$0xff]
        %v3156 = vld [vmem:[%s3127 + $0xe0] sm:$0xff]
        %v3157 = vld [vmem:[%s3127 + $0xe8] sm:$0xff]
        %v3158 = vld [vmem:[%s3127 + $0xf0] sm:$0xff]
        %v3159 = vld [vmem:[%s3127 + $0xf8] sm:$0xff]
        %3160 = vmatprep.subr.mxu0 %v3159
        %3161 = vmatpush1.msra.mxu0 %v3158
        %3162 = vmatprep.subr.mxu0 %v3157
        %3163 = vmatpush1.msra.mxu0 %v3156
        %3164 = vmatprep.subr.mxu0 %v3155
        %3165 = vmatpush1.msra.mxu0 %v3154
        %3166 = vmatprep.subr.mxu0 %v3153
        %3167 = vmatpush1.msra.mxu0 %v3152
        %3168 = vmatprep.subr.mxu0 %v3151
        %3169 = vmatpush1.msra.mxu0 %v3150
        %3170 = vmatprep.subr.mxu0 %v3149
        %3171 = vmatpush1.msra.mxu0 %v3148
        %3172 = vmatprep.subr.mxu0 %v3147
        %3173 = vmatpush1.msra.mxu0 %v3146
        %3174 = vmatprep.subr.mxu0 %v3145
        %3175 = vmatpush1.msra.mxu0 %v3144
        %3176 = vmatprep.subr.mxu0 %v3143
        %3177 = vmatpush1.msra.mxu0 %v3142
        %3178 = vmatprep.subr.mxu0 %v3141
        %3179 = vmatpush1.msra.mxu0 %v3140
        %3180 = vmatprep.subr.mxu0 %v3139
        %3181 = vmatpush1.msra.mxu0 %v3138
        %3182 = vmatprep.subr.mxu0 %v3137
        %3183 = vmatpush1.msra.mxu0 %v3136
        %3184 = vmatprep.subr.mxu0 %v3135
        %3185 = vmatpush1.msra.mxu0 %v3134
        %3186 = vmatprep.subr.mxu0 %v3133
        %3187 = vmatpush1.msra.mxu0 %v3132
        %3188 = vmatprep.subr.mxu0 %v3131
        %3189 = vmatpush1.msra.mxu0 %v3130
        %3190 = vmatprep.subr.mxu0 %v3129
        %3191 = vmatpush1.msra.mxu0 %v3128
        %3192 = vmatprep.subr.mxu0 0.0
        %3193 = vmatpush2.msra.mxu0 0.0
        %3194 = vmatprep.subr.mxu0 0.0
        %3195 = vmatpush2.msra.mxu0 0.0
        %3196 = vmatprep.subr.mxu0 0.0
        %3197 = vmatpush2.msra.mxu0 0.0
        %3198 = vmatprep.subr.mxu0 0.0
        %3199 = vmatpush2.msra.mxu0 0.0
        %3200 = vmatprep.subr.mxu0 0.0
        %3201 = vmatpush2.msra.mxu0 0.0
        %3202 = vmatprep.subr.mxu0 0.0
        %3203 = vmatpush2.msra.mxu0 0.0
        %3204 = vmatprep.subr.mxu0 0.0
        %3205 = vmatpush2.msra.mxu0 0.0
        %3206 = vmatprep.subr.mxu0 0.0
        %3207 = vmatpush2.msra.mxu0 0.0
        %3208 = vmatprep.subr.mxu0 0.0
        %3209 = vmatpush2.msra.mxu0 0.0
        %3210 = vmatprep.subr.mxu0 0.0
        %3211 = vmatpush2.msra.mxu0 0.0
        %3212 = vmatprep.subr.mxu0 0.0
        %3213 = vmatpush2.msra.mxu0 0.0
        %3214 = vmatprep.subr.mxu0 0.0
        %3215 = vmatpush2.msra.mxu0 0.0
        %3216 = vmatprep.subr.mxu0 0.0
        %3217 = vmatpush2.msra.mxu0 0.0
        %3218 = vmatprep.subr.mxu0 0.0
        %3219 = vmatpush2.msra.mxu0 0.0
        %3220 = vmatprep.subr.mxu0 0.0
        %3221 = vmatpush2.msra.mxu0 0.0
        %3222 = vmatprep.subr.mxu0 0.0
        %3223 = vmatpush2.msra.mxu0 0.0
        %3224 = vmatprep.mubr.f32.mxu0 0.0
        %3225 = vmatmul.mubr.f32.gmra.mxu0 %v3125
        %v3226 = vpop.f32.mrf.mxu0
        %v3227 = vadd.f32 0.0, %v3226
        %v3228 = vpop.f32.mrf.mxu0
        %v3229 = vadd.f32 0.0, %v3228
        %3230 = vmatprep.mubr.f32.mxu0 0.0
        %3231 = vmatmul.mubr.f32.gmra.mxu0 %v3126
        %v3232 = vpop.f32.mrf.mxu0
        %v3233 = vadd.f32 0.0, %v3232
        %v3234 = vpop.f32.mrf.mxu0
        %v3235 = vadd.f32 0.0, %v3234
        %3236 = vdwg.mxu0
        %v3237 = vadd.f32 %v3115, %v3227
        %v3238 = vadd.f32 %v3117, %v3229
        %v3239 = vadd.f32 %v3121, %v3233
        %v3240 = vadd.f32 %v3123, %v3235
        %v3241 = vld [vmem:[%s10] sm:$0x3]
        %v3243 = vlaneseq
        %v3244 = vshrl.u32 %v3243, 7
        %v3245 = vsub.s32 0, %v3244
        %v3246 = vrot.slane %v3241, %v3245
        %v3247 = vlaneseq
        %v3248 = vshrl.u32 %v3247, 7
        %v3249 = vsub.s32 1, %v3248
        %v3250 = vrot.slane %v3241, %v3249
        %v3253 = vadd.f32 %v3237, %v3246
        %v3254 = vadd.f32 %v3238, %v3250
        %v3255 = vadd.f32 %v3239, %v3246
        %v3256 = vadd.f32 %v3240, %v3250
        %v3257 = vmax.f32 %v3253, 0.0
        %v3258 = vmax.f32 %v3254, 0.0
        %v3259 = vmax.f32 %v3255, 0.0
        %v3260 = vmax.f32 %v3256, 0.0
        %3261 = vst [vmem:[#allocation4] sm:$0xff] %v3257
        %vm3262 = vcmask 785408
        %3263 = vst.msk [vmem:[#allocation4 + $0x8] sm:$0xff] %vm3262, %v3258
        %3264 = vst [vmem:[#allocation4 + $0x10] sm:$0x3f] %v3259
        %vm3265 = vcmask 783360
        %3266 = vst.msk [vmem:[#allocation4 + $0x18] sm:$0x3f] %vm3265, %v3260
        %v3267 = vld [vmem:[#allocation4] sm:$0xff]
        %v3268 = vld [vmem:[#allocation4 + $0x8] sm:$0xff]
        %v3269 = vld [vmem:[#allocation4 + $0x10] sm:$0xf]
        %v3270 = vld [vmem:[#allocation4 + $0x18] sm:$0xf]
        %v3271 = vld [vmem:[%s11] sm:$0xff]
        %v3272 = vld [vmem:[%s11 + $0x8] sm:$0xff]
        %v3273 = vld [vmem:[%s11 + $0x10] sm:$0xff]
        %v3274 = vld [vmem:[%s11 + $0x18] sm:$0xff]
        %v3275 = vld [vmem:[%s11 + $0x20] sm:$0xff]
        %v3276 = vld [vmem:[%s11 + $0x28] sm:$0xff]
        %v3277 = vld [vmem:[%s11 + $0x30] sm:$0xff]
        %v3278 = vld [vmem:[%s11 + $0x38] sm:$0xff]
        %v3279 = vld [vmem:[%s11 + $0x40] sm:$0xff]
        %v3280 = vld [vmem:[%s11 + $0x48] sm:$0xff]
        %v3281 = vld [vmem:[%s11 + $0x50] sm:$0xff]
        %v3282 = vld [vmem:[%s11 + $0x58] sm:$0xff]
        %v3283 = vld [vmem:[%s11 + $0x60] sm:$0xff]
        %v3284 = vld [vmem:[%s11 + $0x68] sm:$0xff]
        %v3285 = vld [vmem:[%s11 + $0x70] sm:$0xff]
        %v3286 = vld [vmem:[%s11 + $0x78] sm:$0xff]
        %v3287 = vld [vmem:[%s11 + $0x80] sm:$0xff]
        %v3288 = vld [vmem:[%s11 + $0x88] sm:$0xff]
        %v3289 = vld [vmem:[%s11 + $0x90] sm:$0xff]
        %v3290 = vld [vmem:[%s11 + $0x98] sm:$0xff]
        %v3291 = vld [vmem:[%s11 + $0xa0] sm:$0xff]
        %v3292 = vld [vmem:[%s11 + $0xa8] sm:$0xff]
        %v3293 = vld [vmem:[%s11 + $0xb0] sm:$0xff]
        %v3294 = vld [vmem:[%s11 + $0xb8] sm:$0xff]
        %v3295 = vld [vmem:[%s11 + $0xc0] sm:$0xff]
        %v3296 = vld [vmem:[%s11 + $0xc8] sm:$0xff]
        %v3297 = vld [vmem:[%s11 + $0xd0] sm:$0xff]
        %v3298 = vld [vmem:[%s11 + $0xd8] sm:$0xff]
        %v3299 = vld [vmem:[%s11 + $0xe0] sm:$0xff]
        %v3300 = vld [vmem:[%s11 + $0xe8] sm:$0xff]
        %v3301 = vld [vmem:[%s11 + $0xf0] sm:$0xff]
        %v3302 = vld [vmem:[%s11 + $0xf8] sm:$0xff]
        %v3303 = vld [vmem:[%s11 + $0x100] sm:$0xff]
        %v3304 = vld [vmem:[%s11 + $0x108] sm:$0xff]
        %v3305 = vld [vmem:[%s11 + $0x110] sm:$0xff]
        %v3306 = vld [vmem:[%s11 + $0x118] sm:$0xff]
        %v3307 = vld [vmem:[%s11 + $0x120] sm:$0xff]
        %v3308 = vld [vmem:[%s11 + $0x128] sm:$0xff]
        %v3309 = vld [vmem:[%s11 + $0x130] sm:$0xff]
        %v3310 = vld [vmem:[%s11 + $0x138] sm:$0xff]
        %v3311 = vld [vmem:[%s11 + $0x140] sm:$0xff]
        %v3312 = vld [vmem:[%s11 + $0x148] sm:$0xff]
        %v3313 = vld [vmem:[%s11 + $0x150] sm:$0xff]
        %v3314 = vld [vmem:[%s11 + $0x158] sm:$0xff]
        %v3315 = vld [vmem:[%s11 + $0x160] sm:$0xff]
        %v3316 = vld [vmem:[%s11 + $0x168] sm:$0xff]
        %v3317 = vld [vmem:[%s11 + $0x170] sm:$0xff]
        %v3318 = vld [vmem:[%s11 + $0x178] sm:$0xff]
        %v3319 = vld [vmem:[%s11 + $0x180] sm:$0xff]
        %v3320 = vld [vmem:[%s11 + $0x188] sm:$0xff]
        %v3321 = vld [vmem:[%s11 + $0x190] sm:$0xff]
        %v3322 = vld [vmem:[%s11 + $0x198] sm:$0xff]
        %v3323 = vld [vmem:[%s11 + $0x1a0] sm:$0xff]
        %v3324 = vld [vmem:[%s11 + $0x1a8] sm:$0xff]
        %v3325 = vld [vmem:[%s11 + $0x1b0] sm:$0xff]
        %v3326 = vld [vmem:[%s11 + $0x1b8] sm:$0xff]
        %v3327 = vld [vmem:[#allocation4] sm:$0xfe]
        %v3328 = vld [vmem:[#allocation4 + $0x8] sm:$0xfe]
        %v3329 = vld [vmem:[#allocation4 + $0x10] sm:$0x1f]
        %v3330 = vld [vmem:[#allocation4 + $0x18] sm:$0x1f]
        %s3331 = scalar_lea.vmem %s11, 448
        %v3332 = vld [vmem:[%s3331] sm:$0xff]
        %v3333 = vld [vmem:[%s3331 + $0x8] sm:$0xff]
        %v3334 = vld [vmem:[%s3331 + $0x10] sm:$0xff]
        %v3335 = vld [vmem:[%s3331 + $0x18] sm:$0xff]
        %v3336 = vld [vmem:[%s3331 + $0x20] sm:$0xff]
        %v3337 = vld [vmem:[%s3331 + $0x28] sm:$0xff]
        %v3338 = vld [vmem:[%s3331 + $0x30] sm:$0xff]
        %v3339 = vld [vmem:[%s3331 + $0x38] sm:$0xff]
        %v3340 = vld [vmem:[%s3331 + $0x40] sm:$0xff]
        %v3341 = vld [vmem:[%s3331 + $0x48] sm:$0xff]
        %v3342 = vld [vmem:[%s3331 + $0x50] sm:$0xff]
        %v3343 = vld [vmem:[%s3331 + $0x58] sm:$0xff]
        %v3344 = vld [vmem:[%s3331 + $0x60] sm:$0xff]
        %v3345 = vld [vmem:[%s3331 + $0x68] sm:$0xff]
        %v3346 = vld [vmem:[%s3331 + $0x70] sm:$0xff]
        %v3347 = vld [vmem:[%s3331 + $0x78] sm:$0xff]
        %v3348 = vld [vmem:[%s3331 + $0x80] sm:$0xff]
        %v3349 = vld [vmem:[%s3331 + $0x88] sm:$0xff]
        %v3350 = vld [vmem:[%s3331 + $0x90] sm:$0xff]
        %v3351 = vld [vmem:[%s3331 + $0x98] sm:$0xff]
        %v3352 = vld [vmem:[%s3331 + $0xa0] sm:$0xff]
        %v3353 = vld [vmem:[%s3331 + $0xa8] sm:$0xff]
        %v3354 = vld [vmem:[%s3331 + $0xb0] sm:$0xff]
        %v3355 = vld [vmem:[%s3331 + $0xb8] sm:$0xff]
        %v3356 = vld [vmem:[%s3331 + $0xc0] sm:$0xff]
        %v3357 = vld [vmem:[%s3331 + $0xc8] sm:$0xff]
        %v3358 = vld [vmem:[%s3331 + $0xd0] sm:$0xff]
        %v3359 = vld [vmem:[%s3331 + $0xd8] sm:$0xff]
        %v3360 = vld [vmem:[%s3331 + $0xe0] sm:$0xff]
        %v3361 = vld [vmem:[%s3331 + $0xe8] sm:$0xff]
        %v3362 = vld [vmem:[%s3331 + $0xf0] sm:$0xff]
        %v3363 = vld [vmem:[%s3331 + $0xf8] sm:$0xff]
        %v3364 = vld [vmem:[%s3331 + $0x100] sm:$0xff]
        %v3365 = vld [vmem:[%s3331 + $0x108] sm:$0xff]
        %v3366 = vld [vmem:[%s3331 + $0x110] sm:$0xff]
        %v3367 = vld [vmem:[%s3331 + $0x118] sm:$0xff]
        %v3368 = vld [vmem:[%s3331 + $0x120] sm:$0xff]
        %v3369 = vld [vmem:[%s3331 + $0x128] sm:$0xff]
        %v3370 = vld [vmem:[%s3331 + $0x130] sm:$0xff]
        %v3371 = vld [vmem:[%s3331 + $0x138] sm:$0xff]
        %v3372 = vld [vmem:[%s3331 + $0x140] sm:$0xff]
        %v3373 = vld [vmem:[%s3331 + $0x148] sm:$0xff]
        %v3374 = vld [vmem:[%s3331 + $0x150] sm:$0xff]
        %v3375 = vld [vmem:[%s3331 + $0x158] sm:$0xff]
        %v3376 = vld [vmem:[%s3331 + $0x160] sm:$0xff]
        %v3377 = vld [vmem:[%s3331 + $0x168] sm:$0xff]
        %v3378 = vld [vmem:[%s3331 + $0x170] sm:$0xff]
        %v3379 = vld [vmem:[%s3331 + $0x178] sm:$0xff]
        %v3380 = vld [vmem:[%s3331 + $0x180] sm:$0xff]
        %v3381 = vld [vmem:[%s3331 + $0x188] sm:$0xff]
        %v3382 = vld [vmem:[%s3331 + $0x190] sm:$0xff]
        %v3383 = vld [vmem:[%s3331 + $0x198] sm:$0xff]
        %v3384 = vld [vmem:[%s3331 + $0x1a0] sm:$0xff]
        %v3385 = vld [vmem:[%s3331 + $0x1a8] sm:$0xff]
        %v3386 = vld [vmem:[%s3331 + $0x1b0] sm:$0xff]
        %v3387 = vld [vmem:[%s3331 + $0x1b8] sm:$0xff]
        %v3392 = vrot.slane %v3327, 1
        %v3393 = vrot.slane %v3329, 1
        %v3394 = vsel %vm1753, %v3392, %v3393
        %v3395 = vrot.slane %v3328, 1
        %v3396 = vrot.slane %v3330, 1
        %v3397 = vsel %vm1753, %v3395, %v3396
        %v3400 = vsel %vm3262, %v3397, 0
        %v3402 = vsel %vm3262, %v3396, 0
        %3404 = vmatprep.subr.mxu0 %v3363
        %3405 = vmatpush1.msra.mxu0 %v3362
        %3406 = vmatprep.subr.mxu0 %v3361
        %3407 = vmatpush1.msra.mxu0 %v3360
        %3408 = vmatprep.subr.mxu0 %v3359
        %3409 = vmatpush1.msra.mxu0 %v3358
        %3410 = vmatprep.subr.mxu0 %v3357
        %3411 = vmatpush1.msra.mxu0 %v3356
        %3412 = vmatprep.subr.mxu0 %v3355
        %3413 = vmatpush1.msra.mxu0 %v3354
        %3414 = vmatprep.subr.mxu0 %v3353
        %3415 = vmatpush1.msra.mxu0 %v3352
        %3416 = vmatprep.subr.mxu0 %v3351
        %3417 = vmatpush1.msra.mxu0 %v3350
        %3418 = vmatprep.subr.mxu0 %v3349
        %3419 = vmatpush1.msra.mxu0 %v3348
        %3420 = vmatprep.subr.mxu0 %v3347
        %3421 = vmatpush1.msra.mxu0 %v3346
        %3422 = vmatprep.subr.mxu0 %v3345
        %3423 = vmatpush1.msra.mxu0 %v3344
        %3424 = vmatprep.subr.mxu0 %v3343
        %3425 = vmatpush1.msra.mxu0 %v3342
        %3426 = vmatprep.subr.mxu0 %v3341
        %3427 = vmatpush1.msra.mxu0 %v3340
        %3428 = vmatprep.subr.mxu0 %v3339
        %3429 = vmatpush1.msra.mxu0 %v3338
        %3430 = vmatprep.subr.mxu0 %v3337
        %3431 = vmatpush1.msra.mxu0 %v3336
        %3432 = vmatprep.subr.mxu0 %v3335
        %3433 = vmatpush1.msra.mxu0 %v3334
        %3434 = vmatprep.subr.mxu0 %v3333
        %3435 = vmatpush1.msra.mxu0 %v3332
        %3436 = vmatprep.subr.mxu0 0.0
        %3437 = vmatpush2.msra.mxu0 0.0
        %3438 = vmatprep.subr.mxu0 0.0
        %3439 = vmatpush2.msra.mxu0 0.0
        %3440 = vmatprep.subr.mxu0 0.0
        %3441 = vmatpush2.msra.mxu0 0.0
        %3442 = vmatprep.subr.mxu0 0.0
        %3443 = vmatpush2.msra.mxu0 0.0
        %3444 = vmatprep.subr.mxu0 %v3387
        %3445 = vmatpush2.msra.mxu0 %v3386
        %3446 = vmatprep.subr.mxu0 %v3385
        %3447 = vmatpush2.msra.mxu0 %v3384
        %3448 = vmatprep.subr.mxu0 %v3383
        %3449 = vmatpush2.msra.mxu0 %v3382
        %3450 = vmatprep.subr.mxu0 %v3381
        %3451 = vmatpush2.msra.mxu0 %v3380
        %3452 = vmatprep.subr.mxu0 %v3379
        %3453 = vmatpush2.msra.mxu0 %v3378
        %3454 = vmatprep.subr.mxu0 %v3377
        %3455 = vmatpush2.msra.mxu0 %v3376
        %3456 = vmatprep.subr.mxu0 %v3375
        %3457 = vmatpush2.msra.mxu0 %v3374
        %3458 = vmatprep.subr.mxu0 %v3373
        %3459 = vmatpush2.msra.mxu0 %v3372
        %3460 = vmatprep.subr.mxu0 %v3371
        %3461 = vmatpush2.msra.mxu0 %v3370
        %3462 = vmatprep.subr.mxu0 %v3369
        %3463 = vmatpush2.msra.mxu0 %v3368
        %3464 = vmatprep.subr.mxu0 %v3367
        %3465 = vmatpush2.msra.mxu0 %v3366
        %3466 = vmatprep.subr.mxu0 %v3365
        %3467 = vmatpush2.msra.mxu0 %v3364
        %3468 = vmatprep.mubr.f32.mxu0 %v3400
        %3469 = vmatmul.mubr.f32.gmra.mxu0 %v3394
        %v3470 = vpop.f32.mrf.mxu0
        %v3471 = vadd.f32 0.0, %v3470
        %v3472 = vpop.f32.mrf.mxu0
        %v3473 = vadd.f32 0.0, %v3472
        %3474 = vmatprep.mubr.f32.mxu0 %v3402
        %3475 = vmatmul.mubr.f32.gmra.mxu0 %v3393
        %v3476 = vpop.f32.mrf.mxu0
        %v3477 = vadd.f32 0.0, %v3476
        %v3478 = vpop.f32.mrf.mxu0
        %v3479 = vadd.f32 0.0, %v3478
        %3480 = vdwg.mxu0
        %v3482 = vsel %vm3262, %v3268, 0
        %v3485 = vsel %vm3262, %v3270, 0
        %3487 = vmatprep.subr.mxu0 %v3302
        %3488 = vmatpush1.msra.mxu0 %v3301
        %3489 = vmatprep.subr.mxu0 %v3300
        %3490 = vmatpush1.msra.mxu0 %v3299
        %3491 = vmatprep.subr.mxu0 %v3298
        %3492 = vmatpush1.msra.mxu0 %v3297
        %3493 = vmatprep.subr.mxu0 %v3296
        %3494 = vmatpush1.msra.mxu0 %v3295
        %3495 = vmatprep.subr.mxu0 %v3294
        %3496 = vmatpush1.msra.mxu0 %v3293
        %3497 = vmatprep.subr.mxu0 %v3292
        %3498 = vmatpush1.msra.mxu0 %v3291
        %3499 = vmatprep.subr.mxu0 %v3290
        %3500 = vmatpush1.msra.mxu0 %v3289
        %3501 = vmatprep.subr.mxu0 %v3288
        %3502 = vmatpush1.msra.mxu0 %v3287
        %3503 = vmatprep.subr.mxu0 %v3286
        %3504 = vmatpush1.msra.mxu0 %v3285
        %3505 = vmatprep.subr.mxu0 %v3284
        %3506 = vmatpush1.msra.mxu0 %v3283
        %3507 = vmatprep.subr.mxu0 %v3282
        %3508 = vmatpush1.msra.mxu0 %v3281
        %3509 = vmatprep.subr.mxu0 %v3280
        %3510 = vmatpush1.msra.mxu0 %v3279
        %3511 = vmatprep.subr.mxu0 %v3278
        %3512 = vmatpush1.msra.mxu0 %v3277
        %3513 = vmatprep.subr.mxu0 %v3276
        %3514 = vmatpush1.msra.mxu0 %v3275
        %3515 = vmatprep.subr.mxu0 %v3274
        %3516 = vmatpush1.msra.mxu0 %v3273
        %3517 = vmatprep.subr.mxu0 %v3272
        %3518 = vmatpush1.msra.mxu0 %v3271
        %3519 = vmatprep.subr.mxu0 0.0
        %3520 = vmatpush2.msra.mxu0 0.0
        %3521 = vmatprep.subr.mxu0 0.0
        %3522 = vmatpush2.msra.mxu0 0.0
        %3523 = vmatprep.subr.mxu0 0.0
        %3524 = vmatpush2.msra.mxu0 0.0
        %3525 = vmatprep.subr.mxu0 0.0
        %3526 = vmatpush2.msra.mxu0 0.0
        %3527 = vmatprep.subr.mxu0 %v3326
        %3528 = vmatpush2.msra.mxu0 %v3325
        %3529 = vmatprep.subr.mxu0 %v3324
        %3530 = vmatpush2.msra.mxu0 %v3323
        %3531 = vmatprep.subr.mxu0 %v3322
        %3532 = vmatpush2.msra.mxu0 %v3321
        %3533 = vmatprep.subr.mxu0 %v3320
        %3534 = vmatpush2.msra.mxu0 %v3319
        %3535 = vmatprep.subr.mxu0 %v3318
        %3536 = vmatpush2.msra.mxu0 %v3317
        %3537 = vmatprep.subr.mxu0 %v3316
        %3538 = vmatpush2.msra.mxu0 %v3315
        %3539 = vmatprep.subr.mxu0 %v3314
        %3540 = vmatpush2.msra.mxu0 %v3313
        %3541 = vmatprep.subr.mxu0 %v3312
        %3542 = vmatpush2.msra.mxu0 %v3311
        %3543 = vmatprep.subr.mxu0 %v3310
        %3544 = vmatpush2.msra.mxu0 %v3309
        %3545 = vmatprep.subr.mxu0 %v3308
        %3546 = vmatpush2.msra.mxu0 %v3307
        %3547 = vmatprep.subr.mxu0 %v3306
        %3548 = vmatpush2.msra.mxu0 %v3305
        %3549 = vmatprep.subr.mxu0 %v3304
        %3550 = vmatpush2.msra.mxu0 %v3303
        %3551 = vmatprep.mubr.f32.mxu0 %v3482
        %3552 = vmatmul.mubr.f32.gmra.mxu0 %v3267
        %v3553 = vpop.f32.mrf.mxu0
        %v3554 = vadd.f32 %v3471, %v3553
        %v3555 = vpop.f32.mrf.mxu0
        %v3556 = vadd.f32 %v3473, %v3555
        %3557 = vmatprep.mubr.f32.mxu0 %v3485
        %3558 = vmatmul.mubr.f32.gmra.mxu0 %v3269
        %v3559 = vpop.f32.mrf.mxu0
        %v3560 = vadd.f32 %v3477, %v3559
        %v3561 = vpop.f32.mrf.mxu0
        %v3562 = vadd.f32 %v3479, %v3561
        %3563 = vdwg.mxu0
        %v3564 = vld [vmem:[#allocation4] sm:$0xfc]
        %v3565 = vld [vmem:[#allocation4 + $0x8] sm:$0xfc]
        %v3566 = vld [vmem:[#allocation4 + $0x10] sm:$0x3f]
        %v3567 = vld [vmem:[#allocation4 + $0x18] sm:$0x3f]
        %s3568 = scalar_lea.vmem %s11, 896
        %v3569 = vld [vmem:[%s3568] sm:$0xff]
        %v3570 = vld [vmem:[%s3568 + $0x8] sm:$0xff]
        %v3571 = vld [vmem:[%s3568 + $0x10] sm:$0xff]
        %v3572 = vld [vmem:[%s3568 + $0x18] sm:$0xff]
        %v3573 = vld [vmem:[%s3568 + $0x20] sm:$0xff]
        %v3574 = vld [vmem:[%s3568 + $0x28] sm:$0xff]
        %v3575 = vld [vmem:[%s3568 + $0x30] sm:$0xff]
        %v3576 = vld [vmem:[%s3568 + $0x38] sm:$0xff]
        %v3577 = vld [vmem:[%s3568 + $0x40] sm:$0xff]
        %v3578 = vld [vmem:[%s3568 + $0x48] sm:$0xff]
        %v3579 = vld [vmem:[%s3568 + $0x50] sm:$0xff]
        %v3580 = vld [vmem:[%s3568 + $0x58] sm:$0xff]
        %v3581 = vld [vmem:[%s3568 + $0x60] sm:$0xff]
        %v3582 = vld [vmem:[%s3568 + $0x68] sm:$0xff]
        %v3583 = vld [vmem:[%s3568 + $0x70] sm:$0xff]
        %v3584 = vld [vmem:[%s3568 + $0x78] sm:$0xff]
        %v3585 = vld [vmem:[%s3568 + $0x80] sm:$0xff]
        %v3586 = vld [vmem:[%s3568 + $0x88] sm:$0xff]
        %v3587 = vld [vmem:[%s3568 + $0x90] sm:$0xff]
        %v3588 = vld [vmem:[%s3568 + $0x98] sm:$0xff]
        %v3589 = vld [vmem:[%s3568 + $0xa0] sm:$0xff]
        %v3590 = vld [vmem:[%s3568 + $0xa8] sm:$0xff]
        %v3591 = vld [vmem:[%s3568 + $0xb0] sm:$0xff]
        %v3592 = vld [vmem:[%s3568 + $0xb8] sm:$0xff]
        %v3593 = vld [vmem:[%s3568 + $0xc0] sm:$0xff]
        %v3594 = vld [vmem:[%s3568 + $0xc8] sm:$0xff]
        %v3595 = vld [vmem:[%s3568 + $0xd0] sm:$0xff]
        %v3596 = vld [vmem:[%s3568 + $0xd8] sm:$0xff]
        %v3597 = vld [vmem:[%s3568 + $0xe0] sm:$0xff]
        %v3598 = vld [vmem:[%s3568 + $0xe8] sm:$0xff]
        %v3599 = vld [vmem:[%s3568 + $0xf0] sm:$0xff]
        %v3600 = vld [vmem:[%s3568 + $0xf8] sm:$0xff]
        %v3601 = vld [vmem:[%s3568 + $0x100] sm:$0xff]
        %v3602 = vld [vmem:[%s3568 + $0x108] sm:$0xff]
        %v3603 = vld [vmem:[%s3568 + $0x110] sm:$0xff]
        %v3604 = vld [vmem:[%s3568 + $0x118] sm:$0xff]
        %v3605 = vld [vmem:[%s3568 + $0x120] sm:$0xff]
        %v3606 = vld [vmem:[%s3568 + $0x128] sm:$0xff]
        %v3607 = vld [vmem:[%s3568 + $0x130] sm:$0xff]
        %v3608 = vld [vmem:[%s3568 + $0x138] sm:$0xff]
        %v3609 = vld [vmem:[%s3568 + $0x140] sm:$0xff]
        %v3610 = vld [vmem:[%s3568 + $0x148] sm:$0xff]
        %v3611 = vld [vmem:[%s3568 + $0x150] sm:$0xff]
        %v3612 = vld [vmem:[%s3568 + $0x158] sm:$0xff]
        %v3613 = vld [vmem:[%s3568 + $0x160] sm:$0xff]
        %v3614 = vld [vmem:[%s3568 + $0x168] sm:$0xff]
        %v3615 = vld [vmem:[%s3568 + $0x170] sm:$0xff]
        %v3616 = vld [vmem:[%s3568 + $0x178] sm:$0xff]
        %v3617 = vld [vmem:[%s3568 + $0x180] sm:$0xff]
        %v3618 = vld [vmem:[%s3568 + $0x188] sm:$0xff]
        %v3619 = vld [vmem:[%s3568 + $0x190] sm:$0xff]
        %v3620 = vld [vmem:[%s3568 + $0x198] sm:$0xff]
        %v3621 = vld [vmem:[%s3568 + $0x1a0] sm:$0xff]
        %v3622 = vld [vmem:[%s3568 + $0x1a8] sm:$0xff]
        %v3623 = vld [vmem:[%s3568 + $0x1b0] sm:$0xff]
        %v3624 = vld [vmem:[%s3568 + $0x1b8] sm:$0xff]
        %v3629 = vrot.slane %v3564, 2
        %v3630 = vrot.slane %v3566, 2
        %v3631 = vsel %vm2243, %v3629, %v3630
        %v3632 = vrot.slane %v3565, 2
        %v3633 = vrot.slane %v3567, 2
        %v3634 = vsel %vm2243, %v3632, %v3633
        %v3637 = vsel %vm3262, %v3634, 0
        %v3639 = vsel %vm3262, %v3633, 0
        %3641 = vmatprep.subr.mxu0 %v3600
        %3642 = vmatpush1.msra.mxu0 %v3599
        %3643 = vmatprep.subr.mxu0 %v3598
        %3644 = vmatpush1.msra.mxu0 %v3597
        %3645 = vmatprep.subr.mxu0 %v3596
        %3646 = vmatpush1.msra.mxu0 %v3595
        %3647 = vmatprep.subr.mxu0 %v3594
        %3648 = vmatpush1.msra.mxu0 %v3593
        %3649 = vmatprep.subr.mxu0 %v3592
        %3650 = vmatpush1.msra.mxu0 %v3591
        %3651 = vmatprep.subr.mxu0 %v3590
        %3652 = vmatpush1.msra.mxu0 %v3589
        %3653 = vmatprep.subr.mxu0 %v3588
        %3654 = vmatpush1.msra.mxu0 %v3587
        %3655 = vmatprep.subr.mxu0 %v3586
        %3656 = vmatpush1.msra.mxu0 %v3585
        %3657 = vmatprep.subr.mxu0 %v3584
        %3658 = vmatpush1.msra.mxu0 %v3583
        %3659 = vmatprep.subr.mxu0 %v3582
        %3660 = vmatpush1.msra.mxu0 %v3581
        %3661 = vmatprep.subr.mxu0 %v3580
        %3662 = vmatpush1.msra.mxu0 %v3579
        %3663 = vmatprep.subr.mxu0 %v3578
        %3664 = vmatpush1.msra.mxu0 %v3577
        %3665 = vmatprep.subr.mxu0 %v3576
        %3666 = vmatpush1.msra.mxu0 %v3575
        %3667 = vmatprep.subr.mxu0 %v3574
        %3668 = vmatpush1.msra.mxu0 %v3573
        %3669 = vmatprep.subr.mxu0 %v3572
        %3670 = vmatpush1.msra.mxu0 %v3571
        %3671 = vmatprep.subr.mxu0 %v3570
        %3672 = vmatpush1.msra.mxu0 %v3569
        %3673 = vmatprep.subr.mxu0 0.0
        %3674 = vmatpush2.msra.mxu0 0.0
        %3675 = vmatprep.subr.mxu0 0.0
        %3676 = vmatpush2.msra.mxu0 0.0
        %3677 = vmatprep.subr.mxu0 0.0
        %3678 = vmatpush2.msra.mxu0 0.0
        %3679 = vmatprep.subr.mxu0 0.0
        %3680 = vmatpush2.msra.mxu0 0.0
        %3681 = vmatprep.subr.mxu0 %v3624
        %3682 = vmatpush2.msra.mxu0 %v3623
        %3683 = vmatprep.subr.mxu0 %v3622
        %3684 = vmatpush2.msra.mxu0 %v3621
        %3685 = vmatprep.subr.mxu0 %v3620
        %3686 = vmatpush2.msra.mxu0 %v3619
        %3687 = vmatprep.subr.mxu0 %v3618
        %3688 = vmatpush2.msra.mxu0 %v3617
        %3689 = vmatprep.subr.mxu0 %v3616
        %3690 = vmatpush2.msra.mxu0 %v3615
        %3691 = vmatprep.subr.mxu0 %v3614
        %3692 = vmatpush2.msra.mxu0 %v3613
        %3693 = vmatprep.subr.mxu0 %v3612
        %3694 = vmatpush2.msra.mxu0 %v3611
        %3695 = vmatprep.subr.mxu0 %v3610
        %3696 = vmatpush2.msra.mxu0 %v3609
        %3697 = vmatprep.subr.mxu0 %v3608
        %3698 = vmatpush2.msra.mxu0 %v3607
        %3699 = vmatprep.subr.mxu0 %v3606
        %3700 = vmatpush2.msra.mxu0 %v3605
        %3701 = vmatprep.subr.mxu0 %v3604
        %3702 = vmatpush2.msra.mxu0 %v3603
        %3703 = vmatprep.subr.mxu0 %v3602
        %3704 = vmatpush2.msra.mxu0 %v3601
        %3705 = vmatprep.mubr.f32.mxu0 %v3637
        %3706 = vmatmul.mubr.f32.gmra.mxu0 %v3631
        %v3707 = vpop.f32.mrf.mxu0
        %v3708 = vadd.f32 0.0, %v3707
        %v3709 = vpop.f32.mrf.mxu0
        %v3710 = vadd.f32 0.0, %v3709
        %3711 = vmatprep.mubr.f32.mxu0 %v3639
        %3712 = vmatmul.mubr.f32.gmra.mxu0 %v3630
        %v3713 = vpop.f32.mrf.mxu0
        %v3714 = vadd.f32 0.0, %v3713
        %v3715 = vpop.f32.mrf.mxu0
        %v3716 = vadd.f32 0.0, %v3715
        %3717 = vdwg.mxu0
        %v3718 = vadd.f32 %v3554, %v3708
        %v3719 = vadd.f32 %v3556, %v3710
        %v3720 = vadd.f32 %v3560, %v3714
        %v3721 = vadd.f32 %v3562, %v3716
        %v3722 = vld [vmem:[%s12] sm:$0x3]
        %v3724 = vlaneseq
        %v3725 = vshrl.u32 %v3724, 7
        %v3726 = vsub.s32 0, %v3725
        %v3727 = vrot.slane %v3722, %v3726
        %v3728 = vlaneseq
        %v3729 = vshrl.u32 %v3728, 7
        %v3730 = vsub.s32 1, %v3729
        %v3731 = vrot.slane %v3722, %v3730
        %v3734 = vadd.f32 %v3718, %v3727
        %v3735 = vadd.f32 %v3719, %v3731
        %v3736 = vadd.f32 %v3720, %v3727
        %v3737 = vadd.f32 %v3721, %v3731
        %3738 = vst [vmem:[%s731] sm:$0xff] %v3734
        %vm3739 = vcmask 523264
        %3740 = vst.msk [vmem:[%s731 + $0x8] sm:$0xff] %vm3739, %v3735
        %3741 = vst [vmem:[%s731 + $0x10] sm:$0xf] %v3736
        %vm3742 = vcmask 519168
        %3743 = vst.msk [vmem:[%s731 + $0x18] sm:$0xf] %vm3742, %v3737
        %v3744 = vld [vmem:[%s731] sm:$0xff]
        %v3745 = vld [vmem:[%s731 + $0x8] sm:$0xff]
        %v3746 = vld [vmem:[%s731 + $0x10] sm:$0xf]
        %v3747 = vld [vmem:[%s731 + $0x18] sm:$0xf]
        %v3748 = vld [vmem:[%s13] sm:$0x3f]
        %vm3749 = vcmask 97280
        %v3751 = vsel %vm3749, %v3748, 0
        %v3754 = vsel %vm843, %v3746, 0
        %v3757 = vsel %vm843, %v3747, 0
        %3759 = vmatprep.subr.mxu0 0.0
        %3760 = vmatpush1.msra.mxu0 0.0
        %3761 = vmatprep.subr.mxu0 0.0
        %3762 = vmatpush1.msra.mxu0 0.0
        %3763 = vmatprep.subr.mxu0 0.0
        %3764 = vmatpush1.msra.mxu0 0.0
        %3765 = vmatprep.subr.mxu0 0.0
        %3766 = vmatpush1.msra.mxu0 0.0
        %3767 = vmatprep.subr.mxu0 0.0
        %3768 = vmatpush1.msra.mxu0 0.0
        %3769 = vmatprep.subr.mxu0 0.0
        %3770 = vmatpush1.msra.mxu0 0.0
        %3771 = vmatprep.subr.mxu0 0.0
        %3772 = vmatpush1.msra.mxu0 0.0
        %3773 = vmatprep.subr.mxu0 0.0
        %3774 = vmatpush1.msra.mxu0 0.0
        %3775 = vmatprep.subr.mxu0 0.0
        %3776 = vmatpush1.msra.mxu0 0.0
        %3777 = vmatprep.subr.mxu0 0.0
        %3778 = vmatpush1.msra.mxu0 0.0
        %3779 = vmatprep.subr.mxu0 0.0
        %3780 = vmatpush1.msra.mxu0 0.0
        %3781 = vmatprep.subr.mxu0 0.0
        %3782 = vmatpush1.msra.mxu0 0.0
        %3783 = vmatprep.subr.mxu0 0.0
        %3784 = vmatpush1.msra.mxu0 0.0
        %3785 = vmatprep.subr.mxu0 0.0
        %3786 = vmatpush1.msra.mxu0 0.0
        %3787 = vmatprep.subr.mxu0 %v3757
        %3788 = vmatpush1.msra.mxu0 %v3754
        %3789 = vmatprep.subr.mxu0 %v3745
        %3790 = vmatpush1.msra.mxu0 %v3744
        %3791 = vmatprep.subr.mxu0 0.0
        %3792 = vmatpush2.msra.mxu0 0.0
        %3793 = vmatprep.subr.mxu0 0.0
        %3794 = vmatpush2.msra.mxu0 0.0
        %3795 = vmatprep.subr.mxu0 0.0
        %3796 = vmatpush2.msra.mxu0 0.0
        %3797 = vmatprep.subr.mxu0 0.0
        %3798 = vmatpush2.msra.mxu0 0.0
        %3799 = vmatprep.subr.mxu0 0.0
        %3800 = vmatpush2.msra.mxu0 0.0
        %3801 = vmatprep.subr.mxu0 0.0
        %3802 = vmatpush2.msra.mxu0 0.0
        %3803 = vmatprep.subr.mxu0 0.0
        %3804 = vmatpush2.msra.mxu0 0.0
        %3805 = vmatprep.subr.mxu0 0.0
        %3806 = vmatpush2.msra.mxu0 0.0
        %3807 = vmatprep.subr.mxu0 0.0
        %3808 = vmatpush2.msra.mxu0 0.0
        %3809 = vmatprep.subr.mxu0 0.0
        %3810 = vmatpush2.msra.mxu0 0.0
        %3811 = vmatprep.subr.mxu0 0.0
        %3812 = vmatpush2.msra.mxu0 0.0
        %3813 = vmatprep.subr.mxu0 0.0
        %3814 = vmatpush2.msra.mxu0 0.0
        %3815 = vmatprep.subr.mxu0 0.0
        %3816 = vmatpush2.msra.mxu0 0.0
        %3817 = vmatprep.subr.mxu0 0.0
        %3818 = vmatpush2.msra.mxu0 0.0
        %3819 = vmatprep.subr.mxu0 0.0
        %3820 = vmatpush2.msra.mxu0 0.0
        %3821 = vmatprep.subr.mxu0 0.0
        %3822 = vmatpush2.msra.mxu0 0.0
        %3823 = vmatprep.mubr.f32.mxu0 0.0
        %3824 = vmatmul.mubr.f32.gmra.mxu0 %v3751
        %v3825 = vpop.f32.mrf.mxu0
        %v3826 = vadd.f32 0.0, %v3825
        %v3827 = vpop.f32.mrf.mxu0
        %v3828 = vadd.f32 0.0, %v3827
        %3829 = vdwg.mxu0
        %v3830 = vld [vmem:[%s14] sm:$0x3f]
        %v3832 = vsel %vm3749, %v3830, 0
        %3834 = vmatprep.subr.mxu0 0.0
        %3835 = vmatpush1.msra.mxu0 0.0
        %3836 = vmatprep.subr.mxu0 0.0
        %3837 = vmatpush1.msra.mxu0 0.0
        %3838 = vmatprep.subr.mxu0 0.0
        %3839 = vmatpush1.msra.mxu0 0.0
        %3840 = vmatprep.subr.mxu0 0.0
        %3841 = vmatpush1.msra.mxu0 0.0
        %3842 = vmatprep.subr.mxu0 0.0
        %3843 = vmatpush1.msra.mxu0 0.0
        %3844 = vmatprep.subr.mxu0 0.0
        %3845 = vmatpush1.msra.mxu0 0.0
        %3846 = vmatprep.subr.mxu0 0.0
        %3847 = vmatpush1.msra.mxu0 0.0
        %3848 = vmatprep.subr.mxu0 0.0
        %3849 = vmatpush1.msra.mxu0 0.0
        %3850 = vmatprep.subr.mxu0 0.0
        %3851 = vmatpush1.msra.mxu0 0.0
        %3852 = vmatprep.subr.mxu0 0.0
        %3853 = vmatpush1.msra.mxu0 0.0
        %3854 = vmatprep.subr.mxu0 0.0
        %3855 = vmatpush1.msra.mxu0 0.0
        %3856 = vmatprep.subr.mxu0 0.0
        %3857 = vmatpush1.msra.mxu0 0.0
        %3858 = vmatprep.subr.mxu0 0.0
        %3859 = vmatpush1.msra.mxu0 0.0
        %3860 = vmatprep.subr.mxu0 0.0
        %3861 = vmatpush1.msra.mxu0 0.0
        %3862 = vmatprep.subr.mxu0 %v3757
        %3863 = vmatpush1.msra.mxu0 %v3754
        %3864 = vmatprep.subr.mxu0 %v3745
        %3865 = vmatpush1.msra.mxu0 %v3744
        %3866 = vmatprep.subr.mxu0 0.0
        %3867 = vmatpush2.msra.mxu0 0.0
        %3868 = vmatprep.subr.mxu0 0.0
        %3869 = vmatpush2.msra.mxu0 0.0
        %3870 = vmatprep.subr.mxu0 0.0
        %3871 = vmatpush2.msra.mxu0 0.0
        %3872 = vmatprep.subr.mxu0 0.0
        %3873 = vmatpush2.msra.mxu0 0.0
        %3874 = vmatprep.subr.mxu0 0.0
        %3875 = vmatpush2.msra.mxu0 0.0
        %3876 = vmatprep.subr.mxu0 0.0
        %3877 = vmatpush2.msra.mxu0 0.0
        %3878 = vmatprep.subr.mxu0 0.0
        %3879 = vmatpush2.msra.mxu0 0.0
        %3880 = vmatprep.subr.mxu0 0.0
        %3881 = vmatpush2.msra.mxu0 0.0
        %3882 = vmatprep.subr.mxu0 0.0
        %3883 = vmatpush2.msra.mxu0 0.0
        %3884 = vmatprep.subr.mxu0 0.0
        %3885 = vmatpush2.msra.mxu0 0.0
        %3886 = vmatprep.subr.mxu0 0.0
        %3887 = vmatpush2.msra.mxu0 0.0
        %3888 = vmatprep.subr.mxu0 0.0
        %3889 = vmatpush2.msra.mxu0 0.0
        %3890 = vmatprep.subr.mxu0 0.0
        %3891 = vmatpush2.msra.mxu0 0.0
        %3892 = vmatprep.subr.mxu0 0.0
        %3893 = vmatpush2.msra.mxu0 0.0
        %3894 = vmatprep.subr.mxu0 0.0
        %3895 = vmatpush2.msra.mxu0 0.0
        %3896 = vmatprep.subr.mxu0 0.0
        %3897 = vmatpush2.msra.mxu0 0.0
        %3898 = vmatprep.mubr.f32.mxu0 0.0
        %3899 = vmatmul.mubr.f32.gmra.mxu0 %v3832
        %v3900 = vpop.f32.mrf.mxu0
        %v3901 = vadd.f32 0.0, %v3900
        %v3902 = vpop.f32.mrf.mxu0
        %v3903 = vadd.f32 0.0, %v3902
        %3904 = vdwg.mxu0
        %v3905 = vmax.f32 %v3826, %v3901
        %v3906 = vmax.f32 %v3828, %v3903
        %v3907 = vld [vmem:[%s15] sm:$0xff]
        %v3908 = vld [vmem:[%s15 + $0x8] sm:$0xff]
        %v3909 = vld [vmem:[%s15 + $0x10] sm:$0xff]
        %v3910 = vld [vmem:[%s15 + $0x18] sm:$0xff]
        %v3911 = vld [vmem:[%s15 + $0x20] sm:$0xff]
        %v3912 = vld [vmem:[%s15 + $0x28] sm:$0xff]
        %v3913 = vld [vmem:[%s15 + $0x30] sm:$0xff]
        %v3914 = vld [vmem:[%s15 + $0x38] sm:$0xff]
        %v3915 = vld [vmem:[%s15 + $0x40] sm:$0xff]
        %v3916 = vld [vmem:[%s15 + $0x48] sm:$0xff]
        %v3917 = vld [vmem:[%s15 + $0x50] sm:$0xff]
        %v3918 = vld [vmem:[%s15 + $0x58] sm:$0xff]
        %v3919 = vld [vmem:[%s15 + $0x60] sm:$0xff]
        %v3920 = vld [vmem:[%s15 + $0x68] sm:$0xff]
        %v3921 = vld [vmem:[%s15 + $0x70] sm:$0xff]
        %v3922 = vld [vmem:[%s15 + $0x78] sm:$0xff]
        %v3923 = vld [vmem:[%s15 + $0x80] sm:$0xff]
        %v3924 = vld [vmem:[%s15 + $0x88] sm:$0xff]
        %v3925 = vld [vmem:[%s15 + $0x90] sm:$0xff]
        %v3926 = vld [vmem:[%s15 + $0x98] sm:$0xff]
        %v3927 = vld [vmem:[%s15 + $0xa0] sm:$0xff]
        %v3928 = vld [vmem:[%s15 + $0xa8] sm:$0xff]
        %v3929 = vld [vmem:[%s15 + $0xb0] sm:$0xff]
        %v3930 = vld [vmem:[%s15 + $0xb8] sm:$0xff]
        %v3932 = vsel %vm3739, %v3906, 0
        %3934 = vmatprep.subr.mxu0 0.0
        %3935 = vmatpush1.msra.mxu0 %v3922
        %3936 = vmatprep.subr.mxu0 0.0
        %3937 = vmatpush1.msra.mxu0 %v3921
        %3938 = vmatprep.subr.mxu0 0.0
        %3939 = vmatpush1.msra.mxu0 %v3920
        %3940 = vmatprep.subr.mxu0 0.0
        %3941 = vmatpush1.msra.mxu0 %v3919
        %3942 = vmatprep.subr.mxu0 0.0
        %3943 = vmatpush1.msra.mxu0 %v3918
        %3944 = vmatprep.subr.mxu0 0.0
        %3945 = vmatpush1.msra.mxu0 %v3917
        %3946 = vmatprep.subr.mxu0 0.0
        %3947 = vmatpush1.msra.mxu0 %v3916
        %3948 = vmatprep.subr.mxu0 0.0
        %3949 = vmatpush1.msra.mxu0 %v3915
        %3950 = vmatprep.subr.mxu0 0.0
        %3951 = vmatpush1.msra.mxu0 %v3914
        %3952 = vmatprep.subr.mxu0 0.0
        %3953 = vmatpush1.msra.mxu0 %v3913
        %3954 = vmatprep.subr.mxu0 0.0
        %3955 = vmatpush1.msra.mxu0 %v3912
        %3956 = vmatprep.subr.mxu0 0.0
        %3957 = vmatpush1.msra.mxu0 %v3911
        %3958 = vmatprep.subr.mxu0 0.0
        %3959 = vmatpush1.msra.mxu0 %v3910
        %3960 = vmatprep.subr.mxu0 0.0
        %3961 = vmatpush1.msra.mxu0 %v3909
        %3962 = vmatprep.subr.mxu0 0.0
        %3963 = vmatpush1.msra.mxu0 %v3908
        %3964 = vmatprep.subr.mxu0 0.0
        %3965 = vmatpush1.msra.mxu0 %v3907
        %3966 = vmatprep.subr.mxu0 0.0
        %3967 = vmatpush2.msra.mxu0 0.0
        %3968 = vmatprep.subr.mxu0 0.0
        %3969 = vmatpush2.msra.mxu0 0.0
        %3970 = vmatprep.subr.mxu0 0.0
        %3971 = vmatpush2.msra.mxu0 0.0
        %3972 = vmatprep.subr.mxu0 0.0
        %3973 = vmatpush2.msra.mxu0 0.0
        %3974 = vmatprep.subr.mxu0 0.0
        %3975 = vmatpush2.msra.mxu0 0.0
        %3976 = vmatprep.subr.mxu0 0.0
        %3977 = vmatpush2.msra.mxu0 0.0
        %3978 = vmatprep.subr.mxu0 0.0
        %3979 = vmatpush2.msra.mxu0 0.0
        %3980 = vmatprep.subr.mxu0 0.0
        %3981 = vmatpush2.msra.mxu0 0.0
        %3982 = vmatprep.subr.mxu0 0.0
        %3983 = vmatpush2.msra.mxu0 %v3930
        %3984 = vmatprep.subr.mxu0 0.0
        %3985 = vmatpush2.msra.mxu0 %v3929
        %3986 = vmatprep.subr.mxu0 0.0
        %3987 = vmatpush2.msra.mxu0 %v3928
        %3988 = vmatprep.subr.mxu0 0.0
        %3989 = vmatpush2.msra.mxu0 %v3927
        %3990 = vmatprep.subr.mxu0 0.0
        %3991 = vmatpush2.msra.mxu0 %v3926
        %3992 = vmatprep.subr.mxu0 0.0
        %3993 = vmatpush2.msra.mxu0 %v3925
        %3994 = vmatprep.subr.mxu0 0.0
        %3995 = vmatpush2.msra.mxu0 %v3924
        %3996 = vmatprep.subr.mxu0 0.0
        %3997 = vmatpush2.msra.mxu0 %v3923
        %3998 = vmatprep.mubr.f32.mxu0 %v3932
        %3999 = vmatmul.mubr.f32.gmra.mxu0 %v3905
        %v4000 = vpop.f32.mrf.mxu0
        %v4001 = vadd.f32 0.0, %v4000
        %v4002 = vpop.f32.mrf.mxu0
        %4003 = vdwg.mxu0
        %v4004 = vld [vmem:[%s16] sm:$0xff]
        %v4005 = vld [vmem:[%s16 + $0x8] sm:$0xff]
        %v4006 = vld [vmem:[%s16 + $0x10] sm:$0xff]
        %v4007 = vld [vmem:[%s16 + $0x18] sm:$0xff]
        %v4008 = vld [vmem:[%s16 + $0x20] sm:$0xff]
        %v4009 = vld [vmem:[%s16 + $0x28] sm:$0xff]
        %v4010 = vld [vmem:[%s16 + $0x30] sm:$0xff]
        %v4011 = vld [vmem:[%s16 + $0x38] sm:$0xff]
        %v4012 = vld [vmem:[%s16 + $0x40] sm:$0xff]
        %v4013 = vld [vmem:[%s16 + $0x48] sm:$0xff]
        %v4014 = vld [vmem:[%s16 + $0x50] sm:$0xff]
        %v4015 = vld [vmem:[%s16 + $0x58] sm:$0xff]
        %v4016 = vld [vmem:[%s16 + $0x60] sm:$0xff]
        %v4017 = vld [vmem:[%s16 + $0x68] sm:$0xff]
        %v4018 = vld [vmem:[%s16 + $0x70] sm:$0xff]
        %v4019 = vld [vmem:[%s16 + $0x78] sm:$0xff]
        %v4020 = vld [vmem:[%s16 + $0x80] sm:$0xff]
        %v4021 = vld [vmem:[%s16 + $0x88] sm:$0xff]
        %v4022 = vld [vmem:[%s16 + $0x90] sm:$0xff]
        %v4023 = vld [vmem:[%s16 + $0x98] sm:$0xff]
        %v4024 = vld [vmem:[%s16 + $0xa0] sm:$0xff]
        %v4025 = vld [vmem:[%s16 + $0xa8] sm:$0xff]
        %v4026 = vld [vmem:[%s16 + $0xb0] sm:$0xff]
        %v4027 = vld [vmem:[%s16 + $0xb8] sm:$0xff]
        %4028 = vmatprep.subr.mxu0 0.0
        %4029 = vmatpush1.msra.mxu0 %v4019
        %4030 = vmatprep.subr.mxu0 0.0
        %4031 = vmatpush1.msra.mxu0 %v4018
        %4032 = vmatprep.subr.mxu0 0.0
        %4033 = vmatpush1.msra.mxu0 %v4017
        %4034 = vmatprep.subr.mxu0 0.0
        %4035 = vmatpush1.msra.mxu0 %v4016
        %4036 = vmatprep.subr.mxu0 0.0
        %4037 = vmatpush1.msra.mxu0 %v4015
        %4038 = vmatprep.subr.mxu0 0.0
        %4039 = vmatpush1.msra.mxu0 %v4014
        %4040 = vmatprep.subr.mxu0 0.0
        %4041 = vmatpush1.msra.mxu0 %v4013
        %4042 = vmatprep.subr.mxu0 0.0
        %4043 = vmatpush1.msra.mxu0 %v4012
        %4044 = vmatprep.subr.mxu0 0.0
        %4045 = vmatpush1.msra.mxu0 %v4011
        %4046 = vmatprep.subr.mxu0 0.0
        %4047 = vmatpush1.msra.mxu0 %v4010
        %4048 = vmatprep.subr.mxu0 0.0
        %4049 = vmatpush1.msra.mxu0 %v4009
        %4050 = vmatprep.subr.mxu0 0.0
        %4051 = vmatpush1.msra.mxu0 %v4008
        %4052 = vmatprep.subr.mxu0 0.0
        %4053 = vmatpush1.msra.mxu0 %v4007
        %4054 = vmatprep.subr.mxu0 0.0
        %4055 = vmatpush1.msra.mxu0 %v4006
        %4056 = vmatprep.subr.mxu0 0.0
        %4057 = vmatpush1.msra.mxu0 %v4005
        %4058 = vmatprep.subr.mxu0 0.0
        %4059 = vmatpush1.msra.mxu0 %v4004
        %4060 = vmatprep.subr.mxu0 0.0
        %4061 = vmatpush2.msra.mxu0 0.0
        %4062 = vmatprep.subr.mxu0 0.0
        %4063 = vmatpush2.msra.mxu0 0.0
        %4064 = vmatprep.subr.mxu0 0.0
        %4065 = vmatpush2.msra.mxu0 0.0
        %4066 = vmatprep.subr.mxu0 0.0
        %4067 = vmatpush2.msra.mxu0 0.0
        %4068 = vmatprep.subr.mxu0 0.0
        %4069 = vmatpush2.msra.mxu0 0.0
        %4070 = vmatprep.subr.mxu0 0.0
        %4071 = vmatpush2.msra.mxu0 0.0
        %4072 = vmatprep.subr.mxu0 0.0
        %4073 = vmatpush2.msra.mxu0 0.0
        %4074 = vmatprep.subr.mxu0 0.0
        %4075 = vmatpush2.msra.mxu0 0.0
        %4076 = vmatprep.subr.mxu0 0.0
        %4077 = vmatpush2.msra.mxu0 %v4027
        %4078 = vmatprep.subr.mxu0 0.0
        %4079 = vmatpush2.msra.mxu0 %v4026
        %4080 = vmatprep.subr.mxu0 0.0
        %4081 = vmatpush2.msra.mxu0 %v4025
        %4082 = vmatprep.subr.mxu0 0.0
        %4083 = vmatpush2.msra.mxu0 %v4024
        %4084 = vmatprep.subr.mxu0 0.0
        %4085 = vmatpush2.msra.mxu0 %v4023
        %4086 = vmatprep.subr.mxu0 0.0
        %4087 = vmatpush2.msra.mxu0 %v4022
        %4088 = vmatprep.subr.mxu0 0.0
        %4089 = vmatpush2.msra.mxu0 %v4021
        %4090 = vmatprep.subr.mxu0 0.0
        %4091 = vmatpush2.msra.mxu0 %v4020
        %4092 = vmatprep.mubr.f32.mxu0 %v3932
        %4093 = vmatmul.mubr.f32.gmra.mxu0 %v3905
        %v4094 = vpop.f32.mrf.mxu0
        %v4095 = vadd.f32 0.0, %v4094
        %v4096 = vpop.f32.mrf.mxu0
        %4097 = vdwg.mxu0
        %v4098 = vmax.f32 %v4001, %v4095
        %4099 = vst.msk [vmem:[#allocation5] sm:$0x3f] %vm3265, %v4098
        %v4100 = vld [vmem:[#allocation5] sm:$0xf]
        %v4101 = vld [vmem:[%s17] sm:$0xff]
        %v4102 = vld [vmem:[%s17 + $0x8] sm:$0xff]
        %v4103 = vld [vmem:[%s17 + $0x10] sm:$0xff]
        %v4104 = vld [vmem:[%s17 + $0x18] sm:$0xff]
        %v4105 = vld [vmem:[%s17 + $0x20] sm:$0xff]
        %v4106 = vld [vmem:[%s17 + $0x28] sm:$0xff]
        %v4107 = vld [vmem:[%s17 + $0x30] sm:$0xff]
        %v4108 = vld [vmem:[%s17 + $0x38] sm:$0xff]
        %v4109 = vld [vmem:[%s17 + $0x40] sm:$0xff]
        %v4110 = vld [vmem:[%s17 + $0x48] sm:$0xff]
        %v4111 = vld [vmem:[%s17 + $0x50] sm:$0xff]
        %v4112 = vld [vmem:[%s17 + $0x58] sm:$0xff]
        %v4113 = vld [vmem:[#allocation5 + $0x1] sm:$0xf]
        %s4114 = scalar_lea.vmem %s17, 96
        %v4115 = vld [vmem:[%s4114] sm:$0xff]
        %v4116 = vld [vmem:[%s4114 + $0x8] sm:$0xff]
        %v4117 = vld [vmem:[%s4114 + $0x10] sm:$0xff]
        %v4118 = vld [vmem:[%s4114 + $0x18] sm:$0xff]
        %v4119 = vld [vmem:[%s4114 + $0x20] sm:$0xff]
        %v4120 = vld [vmem:[%s4114 + $0x28] sm:$0xff]
        %v4121 = vld [vmem:[%s4114 + $0x30] sm:$0xff]
        %v4122 = vld [vmem:[%s4114 + $0x38] sm:$0xff]
        %v4123 = vld [vmem:[%s4114 + $0x40] sm:$0xff]
        %v4124 = vld [vmem:[%s4114 + $0x48] sm:$0xff]
        %v4125 = vld [vmem:[%s4114 + $0x50] sm:$0xff]
        %v4126 = vld [vmem:[%s4114 + $0x58] sm:$0xff]
        %v4128 = vsel %vm3262, %v4113, 0
        %4130 = vmatprep.subr.mxu0 0.0
        %4131 = vmatpush1.msra.mxu0 0.0
        %4132 = vmatprep.subr.mxu0 0.0
        %4133 = vmatpush1.msra.mxu0 0.0
        %4134 = vmatprep.subr.mxu0 0.0
        %4135 = vmatpush1.msra.mxu0 0.0
        %4136 = vmatprep.subr.mxu0 0.0
        %4137 = vmatpush1.msra.mxu0 0.0
        %4138 = vmatprep.subr.mxu0 0.0
        %4139 = vmatpush1.msra.mxu0 %v4126
        %4140 = vmatprep.subr.mxu0 0.0
        %4141 = vmatpush1.msra.mxu0 %v4125
        %4142 = vmatprep.subr.mxu0 0.0
        %4143 = vmatpush1.msra.mxu0 %v4124
        %4144 = vmatprep.subr.mxu0 0.0
        %4145 = vmatpush1.msra.mxu0 %v4123
        %4146 = vmatprep.subr.mxu0 0.0
        %4147 = vmatpush1.msra.mxu0 %v4122
        %4148 = vmatprep.subr.mxu0 0.0
        %4149 = vmatpush1.msra.mxu0 %v4121
        %4150 = vmatprep.subr.mxu0 0.0
        %4151 = vmatpush1.msra.mxu0 %v4120
        %4152 = vmatprep.subr.mxu0 0.0
        %4153 = vmatpush1.msra.mxu0 %v4119
        %4154 = vmatprep.subr.mxu0 0.0
        %4155 = vmatpush1.msra.mxu0 %v4118
        %4156 = vmatprep.subr.mxu0 0.0
        %4157 = vmatpush1.msra.mxu0 %v4117
        %4158 = vmatprep.subr.mxu0 0.0
        %4159 = vmatpush1.msra.mxu0 %v4116
        %4160 = vmatprep.subr.mxu0 0.0
        %4161 = vmatpush1.msra.mxu0 %v4115
        %4162 = vmatprep.subr.mxu0 0.0
        %4163 = vmatpush2.msra.mxu0 0.0
        %4164 = vmatprep.subr.mxu0 0.0
        %4165 = vmatpush2.msra.mxu0 0.0
        %4166 = vmatprep.subr.mxu0 0.0
        %4167 = vmatpush2.msra.mxu0 0.0
        %4168 = vmatprep.subr.mxu0 0.0
        %4169 = vmatpush2.msra.mxu0 0.0
        %4170 = vmatprep.subr.mxu0 0.0
        %4171 = vmatpush2.msra.mxu0 0.0
        %4172 = vmatprep.subr.mxu0 0.0
        %4173 = vmatpush2.msra.mxu0 0.0
        %4174 = vmatprep.subr.mxu0 0.0
        %4175 = vmatpush2.msra.mxu0 0.0
        %4176 = vmatprep.subr.mxu0 0.0
        %4177 = vmatpush2.msra.mxu0 0.0
        %4178 = vmatprep.subr.mxu0 0.0
        %4179 = vmatpush2.msra.mxu0 0.0
        %4180 = vmatprep.subr.mxu0 0.0
        %4181 = vmatpush2.msra.mxu0 0.0
        %4182 = vmatprep.subr.mxu0 0.0
        %4183 = vmatpush2.msra.mxu0 0.0
        %4184 = vmatprep.subr.mxu0 0.0
        %4185 = vmatpush2.msra.mxu0 0.0
        %4186 = vmatprep.subr.mxu0 0.0
        %4187 = vmatpush2.msra.mxu0 0.0
        %4188 = vmatprep.subr.mxu0 0.0
        %4189 = vmatpush2.msra.mxu0 0.0
        %4190 = vmatprep.subr.mxu0 0.0
        %4191 = vmatpush2.msra.mxu0 0.0
        %4192 = vmatprep.subr.mxu0 0.0
        %4193 = vmatpush2.msra.mxu0 0.0
        %4194 = vmatprep.mubr.f32.mxu0 0.0
        %4195 = vmatmul.mubr.f32.gmra.mxu0 %v4128
        %v4196 = vpop.f32.mrf.mxu0
        %v4197 = vadd.f32 0.0, %v4196
        %v4198 = vpop.f32.mrf.mxu0
        %4199 = vdwg.mxu0
        %v4201 = vsel %vm3262, %v4100, 0
        %4203 = vmatprep.subr.mxu0 0.0
        %4204 = vmatpush1.msra.mxu0 0.0
        %4205 = vmatprep.subr.mxu0 0.0
        %4206 = vmatpush1.msra.mxu0 0.0
        %4207 = vmatprep.subr.mxu0 0.0
        %4208 = vmatpush1.msra.mxu0 0.0
        %4209 = vmatprep.subr.mxu0 0.0
        %4210 = vmatpush1.msra.mxu0 0.0
        %4211 = vmatprep.subr.mxu0 0.0
        %4212 = vmatpush1.msra.mxu0 %v4112
        %4213 = vmatprep.subr.mxu0 0.0
        %4214 = vmatpush1.msra.mxu0 %v4111
        %4215 = vmatprep.subr.mxu0 0.0
        %4216 = vmatpush1.msra.mxu0 %v4110
        %4217 = vmatprep.subr.mxu0 0.0
        %4218 = vmatpush1.msra.mxu0 %v4109
        %4219 = vmatprep.subr.mxu0 0.0
        %4220 = vmatpush1.msra.mxu0 %v4108
        %4221 = vmatprep.subr.mxu0 0.0
        %4222 = vmatpush1.msra.mxu0 %v4107
        %4223 = vmatprep.subr.mxu0 0.0
        %4224 = vmatpush1.msra.mxu0 %v4106
        %4225 = vmatprep.subr.mxu0 0.0
        %4226 = vmatpush1.msra.mxu0 %v4105
        %4227 = vmatprep.subr.mxu0 0.0
        %4228 = vmatpush1.msra.mxu0 %v4104
        %4229 = vmatprep.subr.mxu0 0.0
        %4230 = vmatpush1.msra.mxu0 %v4103
        %4231 = vmatprep.subr.mxu0 0.0
        %4232 = vmatpush1.msra.mxu0 %v4102
        %4233 = vmatprep.subr.mxu0 0.0
        %4234 = vmatpush1.msra.mxu0 %v4101
        %4235 = vmatprep.subr.mxu0 0.0
        %4236 = vmatpush2.msra.mxu0 0.0
        %4237 = vmatprep.subr.mxu0 0.0
        %4238 = vmatpush2.msra.mxu0 0.0
        %4239 = vmatprep.subr.mxu0 0.0
        %4240 = vmatpush2.msra.mxu0 0.0
        %4241 = vmatprep.subr.mxu0 0.0
        %4242 = vmatpush2.msra.mxu0 0.0
        %4243 = vmatprep.subr.mxu0 0.0
        %4244 = vmatpush2.msra.mxu0 0.0
        %4245 = vmatprep.subr.mxu0 0.0
        %4246 = vmatpush2.msra.mxu0 0.0
        %4247 = vmatprep.subr.mxu0 0.0
        %4248 = vmatpush2.msra.mxu0 0.0
        %4249 = vmatprep.subr.mxu0 0.0
        %4250 = vmatpush2.msra.mxu0 0.0
        %4251 = vmatprep.subr.mxu0 0.0
        %4252 = vmatpush2.msra.mxu0 0.0
        %4253 = vmatprep.subr.mxu0 0.0
        %4254 = vmatpush2.msra.mxu0 0.0
        %4255 = vmatprep.subr.mxu0 0.0
        %4256 = vmatpush2.msra.mxu0 0.0
        %4257 = vmatprep.subr.mxu0 0.0
        %4258 = vmatpush2.msra.mxu0 0.0
        %4259 = vmatprep.subr.mxu0 0.0
        %4260 = vmatpush2.msra.mxu0 0.0
        %4261 = vmatprep.subr.mxu0 0.0
        %4262 = vmatpush2.msra.mxu0 0.0
        %4263 = vmatprep.subr.mxu0 0.0
        %4264 = vmatpush2.msra.mxu0 0.0
        %4265 = vmatprep.subr.mxu0 0.0
        %4266 = vmatpush2.msra.mxu0 0.0
        %4267 = vmatprep.mubr.f32.mxu0 0.0
        %4268 = vmatmul.mubr.f32.gmra.mxu0 %v4201
        %v4269 = vpop.f32.mrf.mxu0
        %v4270 = vadd.f32 %v4197, %v4269
        %v4271 = vpop.f32.mrf.mxu0
        %4272 = vdwg.mxu0
        %v4273 = vld [vmem:[#allocation5 + $0x2] sm:$0xf]
        %s4274 = scalar_lea.vmem %s17, 192
        %v4275 = vld [vmem:[%s4274] sm:$0xff]
        %v4276 = vld [vmem:[%s4274 + $0x8] sm:$0xff]
        %v4277 = vld [vmem:[%s4274 + $0x10] sm:$0xff]
        %v4278 = vld [vmem:[%s4274 + $0x18] sm:$0xff]
        %v4279 = vld [vmem:[%s4274 + $0x20] sm:$0xff]
        %v4280 = vld [vmem:[%s4274 + $0x28] sm:$0xff]
        %v4281 = vld [vmem:[%s4274 + $0x30] sm:$0xff]
        %v4282 = vld [vmem:[%s4274 + $0x38] sm:$0xff]
        %v4283 = vld [vmem:[%s4274 + $0x40] sm:$0xff]
        %v4284 = vld [vmem:[%s4274 + $0x48] sm:$0xff]
        %v4285 = vld [vmem:[%s4274 + $0x50] sm:$0xff]
        %v4286 = vld [vmem:[%s4274 + $0x58] sm:$0xff]
        %v4288 = vsel %vm3262, %v4273, 0
        %4290 = vmatprep.subr.mxu0 0.0
        %4291 = vmatpush1.msra.mxu0 0.0
        %4292 = vmatprep.subr.mxu0 0.0
        %4293 = vmatpush1.msra.mxu0 0.0
        %4294 = vmatprep.subr.mxu0 0.0
        %4295 = vmatpush1.msra.mxu0 0.0
        %4296 = vmatprep.subr.mxu0 0.0
        %4297 = vmatpush1.msra.mxu0 0.0
        %4298 = vmatprep.subr.mxu0 0.0
        %4299 = vmatpush1.msra.mxu0 %v4286
        %4300 = vmatprep.subr.mxu0 0.0
        %4301 = vmatpush1.msra.mxu0 %v4285
        %4302 = vmatprep.subr.mxu0 0.0
        %4303 = vmatpush1.msra.mxu0 %v4284
        %4304 = vmatprep.subr.mxu0 0.0
        %4305 = vmatpush1.msra.mxu0 %v4283
        %4306 = vmatprep.subr.mxu0 0.0
        %4307 = vmatpush1.msra.mxu0 %v4282
        %4308 = vmatprep.subr.mxu0 0.0
        %4309 = vmatpush1.msra.mxu0 %v4281
        %4310 = vmatprep.subr.mxu0 0.0
        %4311 = vmatpush1.msra.mxu0 %v4280
        %4312 = vmatprep.subr.mxu0 0.0
        %4313 = vmatpush1.msra.mxu0 %v4279
        %4314 = vmatprep.subr.mxu0 0.0
        %4315 = vmatpush1.msra.mxu0 %v4278
        %4316 = vmatprep.subr.mxu0 0.0
        %4317 = vmatpush1.msra.mxu0 %v4277
        %4318 = vmatprep.subr.mxu0 0.0
        %4319 = vmatpush1.msra.mxu0 %v4276
        %4320 = vmatprep.subr.mxu0 0.0
        %4321 = vmatpush1.msra.mxu0 %v4275
        %4322 = vmatprep.subr.mxu0 0.0
        %4323 = vmatpush2.msra.mxu0 0.0
        %4324 = vmatprep.subr.mxu0 0.0
        %4325 = vmatpush2.msra.mxu0 0.0
        %4326 = vmatprep.subr.mxu0 0.0
        %4327 = vmatpush2.msra.mxu0 0.0
        %4328 = vmatprep.subr.mxu0 0.0
        %4329 = vmatpush2.msra.mxu0 0.0
        %4330 = vmatprep.subr.mxu0 0.0
        %4331 = vmatpush2.msra.mxu0 0.0
        %4332 = vmatprep.subr.mxu0 0.0
        %4333 = vmatpush2.msra.mxu0 0.0
        %4334 = vmatprep.subr.mxu0 0.0
        %4335 = vmatpush2.msra.mxu0 0.0
        %4336 = vmatprep.subr.mxu0 0.0
        %4337 = vmatpush2.msra.mxu0 0.0
        %4338 = vmatprep.subr.mxu0 0.0
        %4339 = vmatpush2.msra.mxu0 0.0
        %4340 = vmatprep.subr.mxu0 0.0
        %4341 = vmatpush2.msra.mxu0 0.0
        %4342 = vmatprep.subr.mxu0 0.0
        %4343 = vmatpush2.msra.mxu0 0.0
        %4344 = vmatprep.subr.mxu0 0.0
        %4345 = vmatpush2.msra.mxu0 0.0
        %4346 = vmatprep.subr.mxu0 0.0
        %4347 = vmatpush2.msra.mxu0 0.0
        %4348 = vmatprep.subr.mxu0 0.0
        %4349 = vmatpush2.msra.mxu0 0.0
        %4350 = vmatprep.subr.mxu0 0.0
        %4351 = vmatpush2.msra.mxu0 0.0
        %4352 = vmatprep.subr.mxu0 0.0
        %4353 = vmatpush2.msra.mxu0 0.0
        %4354 = vmatprep.mubr.f32.mxu0 0.0
        %4355 = vmatmul.mubr.f32.gmra.mxu0 %v4288
        %v4356 = vpop.f32.mrf.mxu0
        %v4357 = vadd.f32 0.0, %v4356
        %v4358 = vpop.f32.mrf.mxu0
        %4359 = vdwg.mxu0
        %v4360 = vadd.f32 %v4270, %v4357
        %v4361 = vld [vmem:[%s18] sm:$0x1]
        %v4363 = vlaneseq
        %v4364 = vshrl.u32 %v4363, 7
        %v4365 = vsub.s32 0, %v4364
        %v4366 = vrot.slane %v4361, %v4365
        %v4368 = vadd.f32 %v4360, %v4366
        %v4369 = vmax.f32 %v4368, 0.0
        %4370 = vst [vmem:[#allocation6] sm:$0xf] %v4369
        %v4371 = vld [vmem:[#allocation6] sm:$0x3]
        %v4372 = vld [vmem:[%s19] sm:$0xff]
        %v4373 = vld [vmem:[%s19 + $0x8] sm:$0xff]
        %v4374 = vld [vmem:[%s19 + $0x10] sm:$0xff]
        %v4375 = vld [vmem:[%s19 + $0x18] sm:$0xff]
        %v4376 = vld [vmem:[%s19 + $0x20] sm:$0xff]
        %v4377 = vld [vmem:[%s19 + $0x28] sm:$0xff]
        %v4378 = vld [vmem:[%s19 + $0x30] sm:$0xff]
        %v4379 = vld [vmem:[%s19 + $0x38] sm:$0xff]
        %v4380 = vld [vmem:[%s19 + $0x40] sm:$0xff]
        %v4381 = vld [vmem:[%s19 + $0x48] sm:$0xff]
        %v4382 = vld [vmem:[%s19 + $0x50] sm:$0xff]
        %v4383 = vld [vmem:[%s19 + $0x58] sm:$0xff]
        %v4384 = vld [vmem:[%s19 + $0x60] sm:$0xff]
        %v4385 = vld [vmem:[%s19 + $0x68] sm:$0xff]
        %v4386 = vld [vmem:[%s19 + $0x70] sm:$0xff]
        %v4387 = vld [vmem:[%s19 + $0x78] sm:$0xff]
        %v4388 = vld [vmem:[#allocation6 + $0x1] sm:$0x3]
        %s4389 = scalar_lea.vmem %s19, 128
        %v4390 = vld [vmem:[%s4389] sm:$0xff]
        %v4391 = vld [vmem:[%s4389 + $0x8] sm:$0xff]
        %v4392 = vld [vmem:[%s4389 + $0x10] sm:$0xff]
        %v4393 = vld [vmem:[%s4389 + $0x18] sm:$0xff]
        %v4394 = vld [vmem:[%s4389 + $0x20] sm:$0xff]
        %v4395 = vld [vmem:[%s4389 + $0x28] sm:$0xff]
        %v4396 = vld [vmem:[%s4389 + $0x30] sm:$0xff]
        %v4397 = vld [vmem:[%s4389 + $0x38] sm:$0xff]
        %v4398 = vld [vmem:[%s4389 + $0x40] sm:$0xff]
        %v4399 = vld [vmem:[%s4389 + $0x48] sm:$0xff]
        %v4400 = vld [vmem:[%s4389 + $0x50] sm:$0xff]
        %v4401 = vld [vmem:[%s4389 + $0x58] sm:$0xff]
        %v4402 = vld [vmem:[%s4389 + $0x60] sm:$0xff]
        %v4403 = vld [vmem:[%s4389 + $0x68] sm:$0xff]
        %v4404 = vld [vmem:[%s4389 + $0x70] sm:$0xff]
        %v4405 = vld [vmem:[%s4389 + $0x78] sm:$0xff]
        %4406 = vmatprep.subr.mxu0 0.0
        %4407 = vmatpush1.msra.mxu0 %v4405
        %4408 = vmatprep.subr.mxu0 0.0
        %4409 = vmatpush1.msra.mxu0 %v4404
        %4410 = vmatprep.subr.mxu0 0.0
        %4411 = vmatpush1.msra.mxu0 %v4403
        %4412 = vmatprep.subr.mxu0 0.0
        %4413 = vmatpush1.msra.mxu0 %v4402
        %4414 = vmatprep.subr.mxu0 0.0
        %4415 = vmatpush1.msra.mxu0 %v4401
        %4416 = vmatprep.subr.mxu0 0.0
        %4417 = vmatpush1.msra.mxu0 %v4400
        %4418 = vmatprep.subr.mxu0 0.0
        %4419 = vmatpush1.msra.mxu0 %v4399
        %4420 = vmatprep.subr.mxu0 0.0
        %4421 = vmatpush1.msra.mxu0 %v4398
        %4422 = vmatprep.subr.mxu0 0.0
        %4423 = vmatpush1.msra.mxu0 %v4397
        %4424 = vmatprep.subr.mxu0 0.0
        %4425 = vmatpush1.msra.mxu0 %v4396
        %4426 = vmatprep.subr.mxu0 0.0
        %4427 = vmatpush1.msra.mxu0 %v4395
        %4428 = vmatprep.subr.mxu0 0.0
        %4429 = vmatpush1.msra.mxu0 %v4394
        %4430 = vmatprep.subr.mxu0 0.0
        %4431 = vmatpush1.msra.mxu0 %v4393
        %4432 = vmatprep.subr.mxu0 0.0
        %4433 = vmatpush1.msra.mxu0 %v4392
        %4434 = vmatprep.subr.mxu0 0.0
        %4435 = vmatpush1.msra.mxu0 %v4391
        %4436 = vmatprep.subr.mxu0 0.0
        %4437 = vmatpush1.msra.mxu0 %v4390
        %4438 = vmatprep.subr.mxu0 0.0
        %4439 = vmatpush2.msra.mxu0 0.0
        %4440 = vmatprep.subr.mxu0 0.0
        %4441 = vmatpush2.msra.mxu0 0.0
        %4442 = vmatprep.subr.mxu0 0.0
        %4443 = vmatpush2.msra.mxu0 0.0
        %4444 = vmatprep.subr.mxu0 0.0
        %4445 = vmatpush2.msra.mxu0 0.0
        %4446 = vmatprep.subr.mxu0 0.0
        %4447 = vmatpush2.msra.mxu0 0.0
        %4448 = vmatprep.subr.mxu0 0.0
        %4449 = vmatpush2.msra.mxu0 0.0
        %4450 = vmatprep.subr.mxu0 0.0
        %4451 = vmatpush2.msra.mxu0 0.0
        %4452 = vmatprep.subr.mxu0 0.0
        %4453 = vmatpush2.msra.mxu0 0.0
        %4454 = vmatprep.subr.mxu0 0.0
        %4455 = vmatpush2.msra.mxu0 0.0
        %4456 = vmatprep.subr.mxu0 0.0
        %4457 = vmatpush2.msra.mxu0 0.0
        %4458 = vmatprep.subr.mxu0 0.0
        %4459 = vmatpush2.msra.mxu0 0.0
        %4460 = vmatprep.subr.mxu0 0.0
        %4461 = vmatpush2.msra.mxu0 0.0
        %4462 = vmatprep.subr.mxu0 0.0
        %4463 = vmatpush2.msra.mxu0 0.0
        %4464 = vmatprep.subr.mxu0 0.0
        %4465 = vmatpush2.msra.mxu0 0.0
        %4466 = vmatprep.subr.mxu0 0.0
        %4467 = vmatpush2.msra.mxu0 0.0
        %4468 = vmatprep.subr.mxu0 0.0
        %4469 = vmatpush2.msra.mxu0 0.0
        %4470 = vmatprep.mubr.f32.mxu0 0.0
        %4471 = vmatmul.mubr.f32.gmra.mxu0 %v4388
        %v4472 = vpop.f32.mrf.mxu0
        %v4473 = vadd.f32 0.0, %v4472
        %v4474 = vpop.f32.mrf.mxu0
        %4475 = vdwg.mxu0
        %4476 = vmatprep.subr.mxu0 0.0
        %4477 = vmatpush1.msra.mxu0 %v4387
        %4478 = vmatprep.subr.mxu0 0.0
        %4479 = vmatpush1.msra.mxu0 %v4386
        %4480 = vmatprep.subr.mxu0 0.0
        %4481 = vmatpush1.msra.mxu0 %v4385
        %4482 = vmatprep.subr.mxu0 0.0
        %4483 = vmatpush1.msra.mxu0 %v4384
        %4484 = vmatprep.subr.mxu0 0.0
        %4485 = vmatpush1.msra.mxu0 %v4383
        %4486 = vmatprep.subr.mxu0 0.0
        %4487 = vmatpush1.msra.mxu0 %v4382
        %4488 = vmatprep.subr.mxu0 0.0
        %4489 = vmatpush1.msra.mxu0 %v4381
        %4490 = vmatprep.subr.mxu0 0.0
        %4491 = vmatpush1.msra.mxu0 %v4380
        %4492 = vmatprep.subr.mxu0 0.0
        %4493 = vmatpush1.msra.mxu0 %v4379
        %4494 = vmatprep.subr.mxu0 0.0
        %4495 = vmatpush1.msra.mxu0 %v4378
        %4496 = vmatprep.subr.mxu0 0.0
        %4497 = vmatpush1.msra.mxu0 %v4377
        %4498 = vmatprep.subr.mxu0 0.0
        %4499 = vmatpush1.msra.mxu0 %v4376
        %4500 = vmatprep.subr.mxu0 0.0
        %4501 = vmatpush1.msra.mxu0 %v4375
        %4502 = vmatprep.subr.mxu0 0.0
        %4503 = vmatpush1.msra.mxu0 %v4374
        %4504 = vmatprep.subr.mxu0 0.0
        %4505 = vmatpush1.msra.mxu0 %v4373
        %4506 = vmatprep.subr.mxu0 0.0
        %4507 = vmatpush1.msra.mxu0 %v4372
        %4508 = vmatprep.subr.mxu0 0.0
        %4509 = vmatpush2.msra.mxu0 0.0
        %4510 = vmatprep.subr.mxu0 0.0
        %4511 = vmatpush2.msra.mxu0 0.0
        %4512 = vmatprep.subr.mxu0 0.0
        %4513 = vmatpush2.msra.mxu0 0.0
        %4514 = vmatprep.subr.mxu0 0.0
        %4515 = vmatpush2.msra.mxu0 0.0
        %4516 = vmatprep.subr.mxu0 0.0
        %4517 = vmatpush2.msra.mxu0 0.0
        %4518 = vmatprep.subr.mxu0 0.0
        %4519 = vmatpush2.msra.mxu0 0.0
        %4520 = vmatprep.subr.mxu0 0.0
        %4521 = vmatpush2.msra.mxu0 0.0
        %4522 = vmatprep.subr.mxu0 0.0
        %4523 = vmatpush2.msra.mxu0 0.0
        %4524 = vmatprep.subr.mxu0 0.0
        %4525 = vmatpush2.msra.mxu0 0.0
        %4526 = vmatprep.subr.mxu0 0.0
        %4527 = vmatpush2.msra.mxu0 0.0
        %4528 = vmatprep.subr.mxu0 0.0
        %4529 = vmatpush2.msra.mxu0 0.0
        %4530 = vmatprep.subr.mxu0 0.0
        %4531 = vmatpush2.msra.mxu0 0.0
        %4532 = vmatprep.subr.mxu0 0.0
        %4533 = vmatpush2.msra.mxu0 0.0
        %4534 = vmatprep.subr.mxu0 0.0
        %4535 = vmatpush2.msra.mxu0 0.0
        %4536 = vmatprep.subr.mxu0 0.0
        %4537 = vmatpush2.msra.mxu0 0.0
        %4538 = vmatprep.subr.mxu0 0.0
        %4539 = vmatpush2.msra.mxu0 0.0
        %4540 = vmatprep.mubr.f32.mxu0 0.0
        %4541 = vmatmul.mubr.f32.gmra.mxu0 %v4371
        %v4542 = vpop.f32.mrf.mxu0
        %v4543 = vadd.f32 %v4473, %v4542
        %v4544 = vpop.f32.mrf.mxu0
        %4545 = vdwg.mxu0
        %v4546 = vld [vmem:[#allocation6 + $0x2] sm:$0x3]
        %s4547 = scalar_lea.vmem %s19, 256
        %v4548 = vld [vmem:[%s4547] sm:$0xff]
        %v4549 = vld [vmem:[%s4547 + $0x8] sm:$0xff]
        %v4550 = vld [vmem:[%s4547 + $0x10] sm:$0xff]
        %v4551 = vld [vmem:[%s4547 + $0x18] sm:$0xff]
        %v4552 = vld [vmem:[%s4547 + $0x20] sm:$0xff]
        %v4553 = vld [vmem:[%s4547 + $0x28] sm:$0xff]
        %v4554 = vld [vmem:[%s4547 + $0x30] sm:$0xff]
        %v4555 = vld [vmem:[%s4547 + $0x38] sm:$0xff]
        %v4556 = vld [vmem:[%s4547 + $0x40] sm:$0xff]
        %v4557 = vld [vmem:[%s4547 + $0x48] sm:$0xff]
        %v4558 = vld [vmem:[%s4547 + $0x50] sm:$0xff]
        %v4559 = vld [vmem:[%s4547 + $0x58] sm:$0xff]
        %v4560 = vld [vmem:[%s4547 + $0x60] sm:$0xff]
        %v4561 = vld [vmem:[%s4547 + $0x68] sm:$0xff]
        %v4562 = vld [vmem:[%s4547 + $0x70] sm:$0xff]
        %v4563 = vld [vmem:[%s4547 + $0x78] sm:$0xff]
        %4564 = vmatprep.subr.mxu0 0.0
        %4565 = vmatpush1.msra.mxu0 %v4563
        %4566 = vmatprep.subr.mxu0 0.0
        %4567 = vmatpush1.msra.mxu0 %v4562
        %4568 = vmatprep.subr.mxu0 0.0
        %4569 = vmatpush1.msra.mxu0 %v4561
        %4570 = vmatprep.subr.mxu0 0.0
        %4571 = vmatpush1.msra.mxu0 %v4560
        %4572 = vmatprep.subr.mxu0 0.0
        %4573 = vmatpush1.msra.mxu0 %v4559
        %4574 = vmatprep.subr.mxu0 0.0
        %4575 = vmatpush1.msra.mxu0 %v4558
        %4576 = vmatprep.subr.mxu0 0.0
        %4577 = vmatpush1.msra.mxu0 %v4557
        %4578 = vmatprep.subr.mxu0 0.0
        %4579 = vmatpush1.msra.mxu0 %v4556
        %4580 = vmatprep.subr.mxu0 0.0
        %4581 = vmatpush1.msra.mxu0 %v4555
        %4582 = vmatprep.subr.mxu0 0.0
        %4583 = vmatpush1.msra.mxu0 %v4554
        %4584 = vmatprep.subr.mxu0 0.0
        %4585 = vmatpush1.msra.mxu0 %v4553
        %4586 = vmatprep.subr.mxu0 0.0
        %4587 = vmatpush1.msra.mxu0 %v4552
        %4588 = vmatprep.subr.mxu0 0.0
        %4589 = vmatpush1.msra.mxu0 %v4551
        %4590 = vmatprep.subr.mxu0 0.0
        %4591 = vmatpush1.msra.mxu0 %v4550
        %4592 = vmatprep.subr.mxu0 0.0
        %4593 = vmatpush1.msra.mxu0 %v4549
        %4594 = vmatprep.subr.mxu0 0.0
        %4595 = vmatpush1.msra.mxu0 %v4548
        %4596 = vmatprep.subr.mxu0 0.0
        %4597 = vmatpush2.msra.mxu0 0.0
        %4598 = vmatprep.subr.mxu0 0.0
        %4599 = vmatpush2.msra.mxu0 0.0
        %4600 = vmatprep.subr.mxu0 0.0
        %4601 = vmatpush2.msra.mxu0 0.0
        %4602 = vmatprep.subr.mxu0 0.0
        %4603 = vmatpush2.msra.mxu0 0.0
        %4604 = vmatprep.subr.mxu0 0.0
        %4605 = vmatpush2.msra.mxu0 0.0
        %4606 = vmatprep.subr.mxu0 0.0
        %4607 = vmatpush2.msra.mxu0 0.0
        %4608 = vmatprep.subr.mxu0 0.0
        %4609 = vmatpush2.msra.mxu0 0.0
        %4610 = vmatprep.subr.mxu0 0.0
        %4611 = vmatpush2.msra.mxu0 0.0
        %4612 = vmatprep.subr.mxu0 0.0
        %4613 = vmatpush2.msra.mxu0 0.0
        %4614 = vmatprep.subr.mxu0 0.0
        %4615 = vmatpush2.msra.mxu0 0.0
        %4616 = vmatprep.subr.mxu0 0.0
        %4617 = vmatpush2.msra.mxu0 0.0
        %4618 = vmatprep.subr.mxu0 0.0
        %4619 = vmatpush2.msra.mxu0 0.0
        %4620 = vmatprep.subr.mxu0 0.0
        %4621 = vmatpush2.msra.mxu0 0.0
        %4622 = vmatprep.subr.mxu0 0.0
        %4623 = vmatpush2.msra.mxu0 0.0
        %4624 = vmatprep.subr.mxu0 0.0
        %4625 = vmatpush2.msra.mxu0 0.0
        %4626 = vmatprep.subr.mxu0 0.0
        %4627 = vmatpush2.msra.mxu0 0.0
        %4628 = vmatprep.mubr.f32.mxu0 0.0
        %4629 = vmatmul.mubr.f32.gmra.mxu0 %v4546
        %v4630 = vpop.f32.mrf.mxu0
        %v4631 = vadd.f32 0.0, %v4630
        %v4632 = vpop.f32.mrf.mxu0
        %4633 = vdwg.mxu0
        %v4634 = vadd.f32 %v4543, %v4631
        %v4635 = vld [vmem:[%s20] sm:$0x1]
        %v4637 = vlaneseq
        %v4638 = vshrl.u32 %v4637, 7
        %v4639 = vsub.s32 0, %v4638
        %v4640 = vrot.slane %v4635, %v4639
        %v4642 = vadd.f32 %v4634, %v4640
        %vm4643 = vcmask 517120
        %4644 = vst.msk [vmem:[%s721] sm:$0x3] %vm4643, %v4642
        %s4645 = sand.u32 %s495, 1
        %s4646 = scalar_lea.sflag [#allocation8], %s4645
        %s4647 = sand.u32 %s495, 1
        %s4648 = smul.addr %s4647, 64
        %s4649 = scalar_lea.vmem [#allocation7], %s4648
        %p4650 = scmp.lt.s32.totalorder %s41, 1
        %s4651 = scalar_select %p4650, %s41, 1
        %s4652 = smul.addr %s4651, 4
        %s4653 = smul.addr %s4652, 8
        %s4654 = scalar_lea.vmem %s22, %s4653
        %s4655 = sand.u32 %s547, 1
        %s4656 = scalar_lea.sflag [#allocation10], %s4655
        %s4657 = sand.u32 %s547, 1
        %s4658 = smul.addr %s4657, 2
        %s4659 = scalar_lea.vmem [#allocation9], %s4658
        // Predicated region
        $region105: #{tpu_custom_call.1} parent=103 // pred_check
          %p4660 = pneg %p505
        $region106: #{tpu_custom_call.1} parent=103 // pred_check_branch
          %4662 = sbr.rel (%p4660) target = $region108
        $region107: #{tpu_custom_call.1} parent=103 // pred_region
          %s4664 = ssub.s32 1024, 1024
          %4665 = vsyncadd %s4646, %s4664
          %s4666 = smul.addr %s41, 8
          %s4667 = smul.addr %s4666, 128
          %s4668 = scalar_lea.hbm %s21, %s4667
          %s4669 = sshll.u32 %s4649, 4
          %s4670 = int_to_ptr.vmem [resolvable:$true] %s4669
          %4675 = dma.vmem_to_hbm [thread:$0]  %s4670, 1024, %s4668, %s4646, 256, 256, 16
        $region108: #{tpu_custom_call.1} parent=103 // pred_fallthru
          _
        // Predicated region
        $region109: #{tpu_custom_call.1} parent=103 // pred_check
          %p4676 = pneg %p531
        $region110: #{tpu_custom_call.1} parent=103 // pred_check_branch
          %4678 = sbr.rel (%p4676) target = $region112
        $region111: #{tpu_custom_call.1} parent=103 // pred_region
          _
        $region112: #{tpu_custom_call.1} parent=103 // pred_fallthru
          _
        // Predicated region
        $region113: #{tpu_custom_call.1} parent=103 // pred_check
          %p4679 = pneg %p557
        $region114: #{tpu_custom_call.1} parent=103 // pred_check_branch
          %4681 = sbr.rel (%p4679) target = $region116
        $region115: #{tpu_custom_call.1} parent=103 // pred_region
          %s4683 = ssub.s32 32, 32
          %4684 = vsyncadd %s4656, %s4683
          %s4685 = smul.addr %s41, 32
          %s4686 = scalar_lea.hbm %s23, %s4685
          %s4688 = sshll.u32 %s4659, 4
          %s4689 = int_to_ptr.vmem [resolvable:$true] %s4688
          %4691 = dma.vmem_to_hbm [thread:$0]  %s4689, 32, %s4686, %s4656
        $region116: #{tpu_custom_call.1} parent=103 // pred_fallthru
          _
      $region104: #{tpu_custom_call.1} parent=5 // pred_fallthru
        _
      %p4692 = scmp.le.s32.totalorder 2, %s36
      // Predicated region
      $region117: #{tpu_custom_call.1} parent=5 // pred_check
        %p4693 = pneg %p4692
      $region118: #{tpu_custom_call.1} parent=5 // pred_check_branch
        %4695 = sbr.rel (%p4693) target = $region120
      $region119: #{tpu_custom_call.1} parent=5 // pred_region
        %s4696 = ssub.s32 %s36, 2
        // Predicated region
        $region121: #{tpu_custom_call.1} parent=119 // pred_check
          %p4697 = pneg %p511
        $region122: #{tpu_custom_call.1} parent=119 // pred_check_branch
          %4699 = sbr.rel (%p4697) target = $region124
        $region123: #{tpu_custom_call.1} parent=119 // pred_region
          %s4700 = sand.u32 %s496, 1
          %s4701 = scalar_lea.sflag [#allocation8], %s4700
          %s4702 = sand.u32 %s496, 1
          %s4703 = smul.addr %s4702, 64
          %s4704 = scalar_lea.vmem [#allocation7], %s4703
          %4705 = dma.done %s4701, 1024
        $region124: #{tpu_custom_call.1} parent=119 // pred_fallthru
          _
        // Predicated region
        $region125: #{tpu_custom_call.1} parent=119 // pred_check
          %p4706 = pneg %p537
        $region126: #{tpu_custom_call.1} parent=119 // pred_check_branch
          %4708 = sbr.rel (%p4706) target = $region128
        $region127: #{tpu_custom_call.1} parent=119 // pred_region
          %p4709 = scmp.lt.s32.totalorder %s42, 1
          %s4710 = scalar_select %p4709, %s42, 1
          %s4711 = smul.addr %s4710, 4
          %s4712 = smul.addr %s4711, 8
          %s4713 = scalar_lea.vmem %s22, %s4712
        $region128: #{tpu_custom_call.1} parent=119 // pred_fallthru
          _
        // Predicated region
        $region129: #{tpu_custom_call.1} parent=119 // pred_check
          %p4714 = pneg %p563
        $region130: #{tpu_custom_call.1} parent=119 // pred_check_branch
          %4716 = sbr.rel (%p4714) target = $region132
        $region131: #{tpu_custom_call.1} parent=119 // pred_region
          %s4717 = sand.u32 %s548, 1
          %s4718 = scalar_lea.sflag [#allocation10], %s4717
          %s4719 = sand.u32 %s548, 1
          %s4720 = smul.addr %s4719, 2
          %s4721 = scalar_lea.vmem [#allocation9], %s4720
          %4722 = dma.done %s4718, 32
        $region132: #{tpu_custom_call.1} parent=119 // pred_fallthru
          _
      $region120: #{tpu_custom_call.1} parent=5 // pred_fallthru
        _
    $region6: #{tpu_custom_call.1} parent=1 // loop_footer
      %s40 = sadd.s32 1, %s36
    $region7: #{tpu_custom_call.1} parent=1 // loop_footer_branch
      %35 = sbr.rel target = $region3
    $region8: #{tpu_custom_call.1} parent=1 // loop_exit
      _
    %4723 = vsyncpa [#allocation8], 1
    %s4724 = scalar_lea.sflag [#allocation8], 1
    %4725 = vsyncpa %s4724, 1
    %4726 = vsyncpa [#allocation10], 1
    %s4727 = scalar_lea.sflag [#allocation10], 1
    %4728 = vsyncpa %s4727, 1

</llo_original>
